<compile_context>
chip_gen: v6e
topology: v6e:2x2x1
jax: 0.10.0
libtpu: 0.0.40
codegen_flags: <defaults>
</compile_context>

<pallas_src>
import functools

import numpy as np

import jax
import jax.numpy as jnp
from jax import lax
from jax.experimental import pallas as pl
from jax.experimental.pallas import tpu as pltpu


_SLAB_ROWS = 8  # packed small-output slab: [grad_b1; adapted_b1; misc; zeros...]


# ----------------------------- fused Pallas kernel -----------------------------


def _meta_task_kernel(xs_ref, ysoh_ref, xq_ref, yqoh_ref,
                      w1_ref, b1_ref, w2t_ref, b2_ref,
                      gw1_ref, gw2t_ref, sw1_ref, sw2t_ref, slab_ref,
                      *, update_lr, update_step):
    """One grid step == one task: inner SGD loop + query fwd/bwd + HVP chain.

    Per-task contributions are accumulated into per-core resident output
    blocks (task axis is 'arbitrary'; output index_map ignores it).
    """
    t = pl.program_id(1)                 # within-core task index

    xs = xs_ref[...]                     # (setsz, D)
    ysoh = ysoh_ref[...]                 # (setsz, C)
    xq = xq_ref[...]                     # (querysz, D)
    yqoh = yqoh_ref[...]                 # (querysz, C)
    ns = xs.shape[0]
    hid = w1_ref.shape[1]
    ncls = b2_ref.shape[1]

    def fwd_bwd(x, yoh, w1, b1, w2t, b2):
        """MLP fwd + softmax-CE + backprop; W2 held lane-dense as (C, HID)."""
        n = x.shape[0]
        h = jnp.dot(x, w1, preferred_element_type=jnp.float32) + b1
        mask = (h > 0.0).astype(jnp.float32)
        a = h * mask                                               # ReLU
        logits = lax.dot_general(a, w2t, (((1,), (1,)), ((), ())),
                                 preferred_element_type=jnp.float32) + b2

        m = jnp.max(logits, axis=-1, keepdims=True)
        z = jnp.exp(logits - m)
        s = jnp.sum(z, axis=-1, keepdims=True)
        p = z / s
        logp = (logits - m) - jnp.log(s)
        loss = jnp.sum(-yoh * logp, keepdims=True) / n             # (1, 1)

        dl = (p - yoh) / n                                         # dLoss/dlogits
        gw2t = lax.dot_general(dl, a, (((0,), (0,)), ((), ())),
                               preferred_element_type=jnp.float32)  # (C, HID)
        gb2 = jnp.sum(dl, axis=0, keepdims=True)                   # (1, C)
        da = jnp.dot(dl, w2t, preferred_element_type=jnp.float32)  # (n, HID)
        dh = da * mask
        gw1 = lax.dot_general(x, dh, (((0,), (0,)), ((), ())),
                              preferred_element_type=jnp.float32)  # (D, HID)
        gb1 = jnp.sum(dh, axis=0, keepdims=True)
        return (gw1, gb1, gw2t, gb2), loss, logits, (mask, a, p, dl)

    # ---- inner-loop adaptation (unrolled; update_step is a small static int) ----
    w1, b1 = w1_ref[...], b1_ref[...]
    w2t, b2 = w2t_ref[...], b2_ref[...]
    hist_w2t = []            # only W2 of each step is read by the HVP chain
    hist_res = []            # (mask, a, p, dl) residuals reused (no recompute)
    for _ in range(update_step):
        (gw1, gb1, gw2t, gb2), _, _, res = fwd_bwd(xs, ysoh, w1, b1, w2t, b2)
        hist_w2t.append(w2t)
        hist_res.append(res)
        w1 = w1 - update_lr * gw1
        b1 = b1 - update_lr * gb1
        w2t = w2t - update_lr * gw2t
        b2 = b2 - update_lr * gb2

    # ---- query loss / gradient / accuracy at the adapted weights ----
    (vw1, vb1, vw2t, vb2), loss_q, logits_q, _ = fwd_bwd(xq, yqoh, w1, b1, w2t, b2)

    iota = lax.broadcasted_iota(jnp.int32, logits_q.shape, 1)
    mx = jnp.max(logits_q, axis=-1, keepdims=True)
    pred = jnp.min(jnp.where(logits_q == mx, iota, ncls), axis=-1, keepdims=True)
    true_idx = jnp.sum(yqoh * iota.astype(jnp.float32), axis=-1,
                       keepdims=True).astype(jnp.int32)
    correct = jnp.sum((pred == true_idx).astype(jnp.float32), keepdims=True)  # (1,1)

    # ---- exact second-order meta-gradient: v <- (I - lr*H_k)^T v, reversed ----
    for k in reversed(range(update_step)):
        w2kt = hist_w2t[k]
        mask, a, p, dl = hist_res[k]

        th = jnp.dot(xs, vw1, preferred_element_type=jnp.float32) + vb1
        ta = th * mask

        # fused: tlogits = ta @ W2_k + a @ vW2   (single K = 2*HID matmul)
        lhs_cat = jnp.concatenate([ta, a], axis=1)            # (ns, 2*HID)
        rhs_cat = jnp.concatenate([w2kt, vw2t], axis=1)       # (C,  2*HID)
        tlogits = lax.dot_general(lhs_cat, rhs_cat, (((1,), (1,)), ((), ())),
                                  preferred_element_type=jnp.float32) + vb2
        tp = p * (tlogits - jnp.sum(p * tlogits, axis=-1, keepdims=True))
        tdl = tp / ns

        # fused: hw2 = a^T @ tdl + ta^T @ dl  -> lane-dense (C, HID)
        dstack = jnp.concatenate([tdl, dl], axis=0)           # (2*ns, C)
        astack = jnp.concatenate([a, ta], axis=0)             # (2*ns, HID)
        hw2t = lax.dot_general(dstack, astack, (((0,), (0,)), ((), ())),
                               preferred_element_type=jnp.float32)
        hb2 = jnp.sum(tdl, axis=0, keepdims=True)

        # tda = tdl @ W2_k^T + dl @ vW2^T (kept as two dots; fusing would need
        # an unaligned 8-lane concat of two (ns, C) tiles)
        tda = (jnp.dot(tdl, w2kt, preferred_element_type=jnp.float32)
               + jnp.dot(dl, vw2t, preferred_element_type=jnp.float32))
        tdh = tda * mask                  # ReLU'' treated as 0 (matches torch)
        hw1 = lax.dot_general(xs, tdh, (((0,), (0,)), ((), ())),
                              preferred_element_type=jnp.float32)
        hb1 = jnp.sum(tdh, axis=0, keepdims=True)

        vw1 = vw1 - update_lr * hw1
        vb1 = vb1 - update_lr * hb1
        vw2t = vw2t - update_lr * hw2t
        vb2 = vb2 - update_lr * hb2

    # ---- pack the small per-task pieces into one lane-dense slab -------------
    # row 0: meta-grad b1        (HID lanes)
    # row 1: adapted b1          (HID lanes)
    # row 2: [meta-grad b2 | adapted b2 | query loss | correct | 0 ...]
    lane = lax.broadcasted_iota(jnp.int32, (1, hid), 1)
    row_i = lax.broadcasted_iota(jnp.int32, (ncls, hid), 0)
    col_i = lax.broadcasted_iota(jnp.int32, (ncls, hid), 1)
    sel_g = (col_i == row_i).astype(jnp.float32)              # -> lanes [0, C)
    sel_s = (col_i == row_i + ncls).astype(jnp.float32)       # -> lanes [C, 2C)
    misc = (jnp.dot(vb2, sel_g, preferred_element_type=jnp.float32)
            + jnp.dot(b2, sel_s, preferred_element_type=jnp.float32)
            + loss_q * (lane == 2 * ncls).astype(jnp.float32)
            + correct * (lane == 2 * ncls + 1).astype(jnp.float32))
    sub = lax.broadcasted_iota(jnp.int32, (slab_ref.shape[0], 1), 0)
    slab = ((sub == 0).astype(jnp.float32) * vb1
            + (sub == 1).astype(jnp.float32) * b1
            + (sub == 2).astype(jnp.float32) * misc)

    # ---- accumulate per-core task sums (reduced & scaled in the wrapper) ----
    @pl.when(t == 0)
    def _():
        gw1_ref[...] = vw1
        gw2t_ref[...] = vw2t
        sw1_ref[...] = w1
        sw2t_ref[...] = w2t
        slab_ref[...] = slab

    @pl.when(t > 0)
    def _():
        gw1_ref[...] += vw1
        gw2t_ref[...] += vw2t
        sw1_ref[...] += w1
        sw2t_ref[...] += w2t
        slab_ref[...] += slab


# ------------------------------- jitted wrapper --------------------------------


def _task_spec(shape, tpc):
    nd = len(shape)
    return pl.BlockSpec((None,) + tuple(shape),
                        lambda c, t, _tpc=tpc, _nd=nd: (c * _tpc + t,) + (0,) * _nd)


def _shared_spec(shape):
    nd = len(shape)
    return pl.BlockSpec(tuple(shape), lambda c, t, _nd=nd: (0,) * _nd)


def _core_spec(shape):
    nd = len(shape)
    return pl.BlockSpec((None,) + tuple(shape),
                        lambda c, t, _nd=nd: (c,) + (0,) * _nd)


def _meta_forward_impl(params, x_spt, y_spt, x_qry, y_qry,
                       *, update_lr, update_step, meta_lr):
    w1, b1, w2, b2 = params
    task_num, setsz = x_spt.shape[0], x_spt.shape[1]
    querysz = x_qry.shape[1]
    d, hid = w1.shape
    n_way = w2.shape[1]
    assert hid >= 2 * n_way + 2, "packed-slab layout needs HIDDEN >= 2*N_WAY + 2"

    xs = x_spt.reshape(task_num, setsz, -1).astype(jnp.float32)
    xq = x_qry.reshape(task_num, querysz, -1).astype(jnp.float32)
    ysoh = jax.nn.one_hot(y_spt, n_way, dtype=jnp.float32)
    yqoh = jax.nn.one_hot(y_qry, n_way, dtype=jnp.float32)
    w2t = w2.T                                   # lane-dense (n_way, hid) layout

    # v7x: one "parallel" block of tasks per TensorCore; per-core partial sums.
    ncores = 2 if task_num % 2 == 0 else 1
    tpc = task_num // ncores

    out_shape = (
        jax.ShapeDtypeStruct((ncores, d, hid), jnp.float32),           # Σ meta-grad W1
        jax.ShapeDtypeStruct((ncores, n_way, hid), jnp.float32),       # Σ meta-grad W2ᵀ
        jax.ShapeDtypeStruct((ncores, d, hid), jnp.float32),           # Σ adapted W1
        jax.ShapeDtypeStruct((ncores, n_way, hid), jnp.float32),       # Σ adapted W2ᵀ
        jax.ShapeDtypeStruct((ncores, _SLAB_ROWS, hid), jnp.float32),  # packed slab
    )
    in_specs = [
        _task_spec((setsz, d), tpc), _task_spec((setsz, n_way), tpc),
        _task_spec((querysz, d), tpc), _task_spec((querysz, n_way), tpc),
        _shared_spec((d, hid)), _shared_spec((1, hid)),
        _shared_spec((n_way, hid)), _shared_spec((1, n_way)),
    ]
    out_specs = [
        _core_spec((d, hid)), _core_spec((n_way, hid)),
        _core_spec((d, hid)), _core_spec((n_way, hid)),
        _core_spec((_SLAB_ROWS, hid)),
    ]

    outs = pl.pallas_call(
        functools.partial(_meta_task_kernel,
                          update_lr=update_lr, update_step=update_step),
        out_shape=out_shape,
        grid=(ncores, tpc),
        in_specs=in_specs,
        out_specs=out_specs,
        compiler_params=pltpu.CompilerParams(
            dimension_semantics=("parallel", "arbitrary")),
    )(xs, ysoh, xq, yqoh, w1, b1, w2t, b2)

    gw1_p, gw2t_p, sw1_p, sw2t_p, slab_p = outs
    inv_tn = 1.0 / task_num

    gw1 = jnp.sum(gw1_p, axis=0) * inv_tn
    gw2 = jnp.sum(gw2t_p, axis=0).T * inv_tn
    sw1 = jnp.sum(sw1_p, axis=0) * inv_tn
    sw2 = jnp.sum(sw2t_p, axis=0).T * inv_tn
    slab = jnp.sum(slab_p, axis=0)               # (_SLAB_ROWS, hid)
    gb1 = slab[0:1, :] * inv_tn
    sb1 = slab[1:2, :] * inv_tn
    gb2 = slab[2:3, 0:n_way] * inv_tn
    sb2 = slab[2:3, n_way:2 * n_way] * inv_tn
    loss_sum = slab[2, 2 * n_way]
    corr_sum = slab[2, 2 * n_way + 1]

    tmp_grad = (gw1, gb1, gw2, gb2)
    tmp_state = (sw1, sb1, sw2, sb2)
    mean_loss_q = loss_sum * inv_tn
    acc = corr_sum / (querysz * task_num)
    loss_value = jnp.stack([acc, mean_loss_q])                     # f32 (2,)

    # meta update p <- p - meta_lr * tmp_grad (tiny axpy; plain JAX in the jit)
    new_params = tuple(p - meta_lr * g for p, g in zip(params, tmp_grad))
    return new_params, tmp_state, loss_value


# --------------------------------- Meta module ----------------------------------


class Meta:
    """JAX/Pallas port of the PyTorch Meta learner (opt='sgd' branch)."""

    def __init__(self, params, update_lr, update_step, meta_lr, task_num,
                 opt="sgd", beta=0.5, alpha=0.5):
        if opt != "sgd":
            # TODO(synk): only the opt='sgd' branch (u_state = adapted fast
            # weights, plain SGD meta step) is ported.
            raise NotImplementedError("only the opt='sgd' branch is ported")
        self.params = list(params)          # (W1, b1, W2, b2)
        self.update_lr = float(update_lr)
        self.update_step = int(update_step)
        self.meta_lr = float(meta_lr)
        self.task_num = task_num
        self.opt = opt
        self.beta = beta
        self.alpha = alpha
        self.momentum_in = None
        self.momentum_ot = None
        # One jitted program for the whole forward (single pallas_call inside).
        self._forward_fn = jax.jit(functools.partial(
            _meta_forward_impl,
            update_lr=self.update_lr,
            update_step=self.update_step,
            meta_lr=self.meta_lr,
        ))
        # TODO(synk): average() uses torch.distributed all_reduce; no
        # single-host Pallas equivalent is meaningful here.

    def forward(self, x_spt, y_spt, x_qry, y_qry):
        new_params, tmp_state, loss_value = self._forward_fn(
            tuple(self.params), x_spt, y_spt, x_qry, y_qry)
        self.momentum_in = list(tmp_state)
        self.params = list(new_params)
        loss_value = jax.block_until_ready(loss_value)
        # Device math is f32; final cast to float64 happens on the host only.
        return np.asarray(loss_value, dtype=np.float64)


# ------------------------------------ main ------------------------------------


if __name__ == "__main__":
    TASK_NUM, SETSZ, QUERYSZ = 2, 8, 8
    IMGC, IMG_H, IMG_W = 1, 16, 16
    N_WAY, HIDDEN = 8, 128
    D = IMGC * IMG_H * IMG_W

    key = jax.random.PRNGKey(0)
    k1, k2, k3, k4, k5, k6 = jax.random.split(key, 6)

    # Deterministic parameter init (Learner = 2-layer MLP)
    w1 = 0.1 * jax.random.normal(k1, (D, HIDDEN), dtype=jnp.float32)
    b1 = jnp.zeros((1, HIDDEN), jnp.float32)
    w2 = 0.1 * jax.random.normal(k2, (HIDDEN, N_WAY), dtype=jnp.float32)
    b2 = jnp.zeros((1, N_WAY), jnp.float32)

    # Inputs:  x_spt [b, setsz, c, h, w], y_spt [b, setsz], etc.
    x_spt = jax.random.normal(k3, (TASK_NUM, SETSZ, IMGC, IMG_H, IMG_W),
                              dtype=jnp.float32)
    y_spt = jax.random.randint(k4, (TASK_NUM, SETSZ), 0, N_WAY, dtype=jnp.int32)
    x_qry = jax.random.normal(k5, (TASK_NUM, QUERYSZ, IMGC, IMG_H, IMG_W),
                              dtype=jnp.float32)
    y_qry = jax.random.randint(k6, (TASK_NUM, QUERYSZ), 0, N_WAY, dtype=jnp.int32)

    meta = Meta(params=(w1, b1, w2, b2), update_lr=0.4, update_step=2,
                meta_lr=0.001, task_num=TASK_NUM, opt="sgd")

    loss_value = meta.forward(x_spt, y_spt, x_qry, y_qry)
    jax.block_until_ready(meta.params)
    jax.block_until_ready(meta.momentum_in)

    assert loss_value.shape == (2,) and loss_value.dtype == np.float64
    assert bool(np.all(np.isfinite(loss_value)))
    assert all(p.shape == q.shape for p, q in zip(meta.params, (w1, b1, w2, b2)))
    print("KERNEL_OK")
</pallas_src>

<mosaic_0001>
module attributes {stable_mosaic.version = 11 : i64} {
  func.func @_meta_task_kernel(%arg0: i32, %arg1: i32, %arg2: memref<1x8x256xf32, #tpu.memory_space<vmem>>, %arg3: memref<1x8x8xf32, #tpu.memory_space<vmem>>, %arg4: memref<1x8x256xf32, #tpu.memory_space<vmem>>, %arg5: memref<1x8x8xf32, #tpu.memory_space<vmem>>, %arg6: memref<256x128xf32, #tpu.memory_space<vmem>>, %arg7: memref<1x128xf32, #tpu.memory_space<vmem>>, %arg8: memref<8x128xf32, #tpu.memory_space<vmem>>, %arg9: memref<1x8xf32, #tpu.memory_space<vmem>>, %arg10: memref<1x256x128xf32, #tpu.memory_space<vmem>>, %arg11: memref<1x8x128xf32, #tpu.memory_space<vmem>>, %arg12: memref<1x256x128xf32, #tpu.memory_space<vmem>>, %arg13: memref<1x8x128xf32, #tpu.memory_space<vmem>>, %arg14: memref<1x8x128xf32, #tpu.memory_space<vmem>>) attributes {dimension_semantics = [#tpu.dimension_semantics<parallel>, #tpu.dimension_semantics<arbitrary>], iteration_bounds = array<i64: 2, 1>, scalar_prefetch = 0 : i64, scratch_operands = 0 : i64, tpu.core_type = #tpu.core_type<tc>, window_params = [{transform_indices = @transform_0, window_bounds = array<i64: 1, 8, 256>}, {transform_indices = @transform_1, window_bounds = array<i64: 1, 8, 8>}, {transform_indices = @transform_2, window_bounds = array<i64: 1, 8, 256>}, {transform_indices = @transform_3, window_bounds = array<i64: 1, 8, 8>}, {pipeline_mode = #tpu.pipeline_mode<synchronous>, transform_indices = @transform_4, window_bounds = array<i64: 256, 128>}, {pipeline_mode = #tpu.pipeline_mode<synchronous>, transform_indices = @transform_5, window_bounds = array<i64: 1, 128>}, {pipeline_mode = #tpu.pipeline_mode<synchronous>, transform_indices = @transform_6, window_bounds = array<i64: 8, 128>}, {pipeline_mode = #tpu.pipeline_mode<synchronous>, transform_indices = @transform_7, window_bounds = array<i64: 1, 8>}, {transform_indices = @transform_8, window_bounds = array<i64: 1, 256, 128>}, {transform_indices = @transform_9, window_bounds = array<i64: 1, 8, 128>}, {transform_indices = @transform_10, window_bounds = array<i64: 1, 256, 128>}, {transform_indices = @transform_11, window_bounds = array<i64: 1, 8, 128>}, {transform_indices = @transform_12, window_bounds = array<i64: 1, 8, 128>}]} {
    %c0 = arith.constant 0 : index
    %c0_0 = arith.constant 0 : index
    %c0_1 = arith.constant 0 : index
    %0 = vector.load %arg2[%c0, %c0_0, %c0_1] : memref<1x8x256xf32, #tpu.memory_space<vmem>>, vector<1x8x256xf32>
    %1 = vector.shape_cast %0 : vector<1x8x256xf32> to vector<8x256xf32>
    %c0_2 = arith.constant 0 : index
    %c0_3 = arith.constant 0 : index
    %c0_4 = arith.constant 0 : index
    %2 = vector.load %arg3[%c0_2, %c0_3, %c0_4] : memref<1x8x8xf32, #tpu.memory_space<vmem>>, vector<1x8x8xf32>
    %3 = vector.shape_cast %2 : vector<1x8x8xf32> to vector<8x8xf32>
    %c0_5 = arith.constant 0 : index
    %c0_6 = arith.constant 0 : index
    %c0_7 = arith.constant 0 : index
    %4 = vector.load %arg4[%c0_5, %c0_6, %c0_7] : memref<1x8x256xf32, #tpu.memory_space<vmem>>, vector<1x8x256xf32>
    %5 = vector.shape_cast %4 : vector<1x8x256xf32> to vector<8x256xf32>
    %c0_8 = arith.constant 0 : index
    %c0_9 = arith.constant 0 : index
    %c0_10 = arith.constant 0 : index
    %6 = vector.load %arg5[%c0_8, %c0_9, %c0_10] : memref<1x8x8xf32, #tpu.memory_space<vmem>>, vector<1x8x8xf32>
    %7 = vector.shape_cast %6 : vector<1x8x8xf32> to vector<8x8xf32>
    %c0_11 = arith.constant 0 : index
    %c0_12 = arith.constant 0 : index
    %8 = vector.load %arg6[%c0_11, %c0_12] : memref<256x128xf32, #tpu.memory_space<vmem>>, vector<256x128xf32>
    %c0_13 = arith.constant 0 : index
    %c0_14 = arith.constant 0 : index
    %9 = vector.load %arg7[%c0_13, %c0_14] : memref<1x128xf32, #tpu.memory_space<vmem>>, vector<1x128xf32>
    %c0_15 = arith.constant 0 : index
    %c0_16 = arith.constant 0 : index
    %10 = vector.load %arg8[%c0_15, %c0_16] : memref<8x128xf32, #tpu.memory_space<vmem>>, vector<8x128xf32>
    %c0_17 = arith.constant 0 : index
    %c0_18 = arith.constant 0 : index
    %11 = vector.load %arg9[%c0_17, %c0_18] : memref<1x8xf32, #tpu.memory_space<vmem>>, vector<1x8xf32>
    %cst = arith.constant dense<0.000000e+00> : vector<8x128xf32>
    %12 = tpu.matmul %1, %8, %cst {dimension_numbers = #tpu.dot_dimension_numbers<[1], [0], [0], [1], [0, 0, 1, 1], [], []>} : vector<8x256xf32>, vector<256x128xf32>, vector<8x128xf32> -> vector<8x128xf32>
    %13 = vector.broadcast %9 : vector<1x128xf32> to vector<8x128xf32>
    %14 = arith.addf %12, %13 : vector<8x128xf32>
    %cst_19 = arith.constant 0.000000e+00 : f32
    %15 = vector.broadcast %cst_19 : f32 to vector<8x128xf32>
    %16 = arith.cmpf ogt, %14, %15 : vector<8x128xf32>
    %17 = arith.extui %16 : vector<8x128xi1> to vector<8x128xi32>
    %18 = arith.sitofp %17 : vector<8x128xi32> to vector<8x128xf32>
    %19 = arith.mulf %14, %18 : vector<8x128xf32>
    %cst_20 = arith.constant dense<0.000000e+00> : vector<8x8xf32>
    %20 = tpu.matmul %19, %10, %cst_20 {dimension_numbers = #tpu.dot_dimension_numbers<[1], [1], [0], [0], [0, 0, 1, 0], [], []>} : vector<8x128xf32>, vector<8x128xf32>, vector<8x8xf32> -> vector<8x8xf32>
    %21 = vector.broadcast %11 : vector<1x8xf32> to vector<8x8xf32>
    %22 = arith.addf %20, %21 : vector<8x8xf32>
    %cst_21 = arith.constant dense<0xFF800000> : vector<8xf32>
    %23 = vector.multi_reduction <maximumf>, %22, %cst_21 [1] : vector<8x8xf32> to vector<8xf32>
    %24 = vector.shape_cast %23 : vector<8xf32> to vector<8x1xf32>
    %25 = vector.broadcast %24 : vector<8x1xf32> to vector<8x8xf32>
    %26 = arith.subf %22, %25 : vector<8x8xf32>
    %27 = math.exp %26 : vector<8x8xf32>
    %cst_22 = arith.constant dense<0.000000e+00> : vector<8xf32>
    %28 = vector.multi_reduction <add>, %27, %cst_22 [1] : vector<8x8xf32> to vector<8xf32>
    %29 = vector.shape_cast %28 : vector<8xf32> to vector<8x1xf32>
    %30 = vector.broadcast %29 : vector<8x1xf32> to vector<8x8xf32>
    %31 = arith.divf %27, %30 : vector<8x8xf32>
    %32 = arith.subf %31, %3 : vector<8x8xf32>
    %cst_23 = arith.constant 8.000000e+00 : f32
    %33 = vector.broadcast %cst_23 : f32 to vector<8x8xf32>
    %34 = arith.divf %32, %33 : vector<8x8xf32>
    %cst_24 = arith.constant dense<0.000000e+00> : vector<8x128xf32>
    %35 = tpu.matmul %34, %19, %cst_24 {dimension_numbers = #tpu.dot_dimension_numbers<[0], [0], [1], [1], [0, 1, 1, 1], [], []>} : vector<8x8xf32>, vector<8x128xf32>, vector<8x128xf32> -> vector<8x128xf32>
    %cst_25 = arith.constant dense<0.000000e+00> : vector<8xf32>
    %36 = vector.multi_reduction <add>, %34, %cst_25 [0] : vector<8x8xf32> to vector<8xf32>
    %37 = vector.shape_cast %36 : vector<8xf32> to vector<1x8xf32>
    %cst_26 = arith.constant dense<0.000000e+00> : vector<8x128xf32>
    %38 = tpu.matmul %34, %10, %cst_26 {dimension_numbers = #tpu.dot_dimension_numbers<[1], [0], [0], [1], [0, 0, 1, 1], [], []>} : vector<8x8xf32>, vector<8x128xf32>, vector<8x128xf32> -> vector<8x128xf32>
    %39 = arith.mulf %38, %18 : vector<8x128xf32>
    %cst_27 = arith.constant dense<0.000000e+00> : vector<256x128xf32>
    %40 = tpu.matmul %1, %39, %cst_27 {dimension_numbers = #tpu.dot_dimension_numbers<[0], [0], [1], [1], [0, 1, 1, 1], [], []>} : vector<8x256xf32>, vector<8x128xf32>, vector<256x128xf32> -> vector<256x128xf32>
    %cst_28 = arith.constant dense<0.000000e+00> : vector<128xf32>
    %41 = vector.multi_reduction <add>, %39, %cst_28 [0] : vector<8x128xf32> to vector<128xf32>
    %42 = vector.shape_cast %41 : vector<128xf32> to vector<1x128xf32>
    %cst_29 = arith.constant 4.000000e-01 : f32
    %43 = vector.broadcast %cst_29 : f32 to vector<256x128xf32>
    %44 = arith.mulf %43, %40 : vector<256x128xf32>
    %45 = arith.subf %8, %44 : vector<256x128xf32>
    %cst_30 = arith.constant 4.000000e-01 : f32
    %46 = vector.broadcast %cst_30 : f32 to vector<1x128xf32>
    %47 = arith.mulf %46, %42 : vector<1x128xf32>
    %48 = arith.subf %9, %47 : vector<1x128xf32>
    %cst_31 = arith.constant 4.000000e-01 : f32
    %49 = vector.broadcast %cst_31 : f32 to vector<8x128xf32>
    %50 = arith.mulf %49, %35 : vector<8x128xf32>
    %51 = arith.subf %10, %50 : vector<8x128xf32>
    %cst_32 = arith.constant 4.000000e-01 : f32
    %52 = vector.broadcast %cst_32 : f32 to vector<1x8xf32>
    %53 = arith.mulf %52, %37 : vector<1x8xf32>
    %54 = arith.subf %11, %53 : vector<1x8xf32>
    %cst_33 = arith.constant dense<0.000000e+00> : vector<8x128xf32>
    %55 = tpu.matmul %1, %45, %cst_33 {dimension_numbers = #tpu.dot_dimension_numbers<[1], [0], [0], [1], [0, 0, 1, 1], [], []>} : vector<8x256xf32>, vector<256x128xf32>, vector<8x128xf32> -> vector<8x128xf32>
    %56 = vector.broadcast %48 : vector<1x128xf32> to vector<8x128xf32>
    %57 = arith.addf %55, %56 : vector<8x128xf32>
    %cst_34 = arith.constant 0.000000e+00 : f32
    %58 = vector.broadcast %cst_34 : f32 to vector<8x128xf32>
    %59 = arith.cmpf ogt, %57, %58 : vector<8x128xf32>
    %60 = arith.extui %59 : vector<8x128xi1> to vector<8x128xi32>
    %61 = arith.sitofp %60 : vector<8x128xi32> to vector<8x128xf32>
    %62 = arith.mulf %57, %61 : vector<8x128xf32>
    %cst_35 = arith.constant dense<0.000000e+00> : vector<8x8xf32>
    %63 = tpu.matmul %62, %51, %cst_35 {dimension_numbers = #tpu.dot_dimension_numbers<[1], [1], [0], [0], [0, 0, 1, 0], [], []>} : vector<8x128xf32>, vector<8x128xf32>, vector<8x8xf32> -> vector<8x8xf32>
    %64 = vector.broadcast %54 : vector<1x8xf32> to vector<8x8xf32>
    %65 = arith.addf %63, %64 : vector<8x8xf32>
    %cst_36 = arith.constant dense<0xFF800000> : vector<8xf32>
    %66 = vector.multi_reduction <maximumf>, %65, %cst_36 [1] : vector<8x8xf32> to vector<8xf32>
    %67 = vector.shape_cast %66 : vector<8xf32> to vector<8x1xf32>
    %68 = vector.broadcast %67 : vector<8x1xf32> to vector<8x8xf32>
    %69 = arith.subf %65, %68 : vector<8x8xf32>
    %70 = math.exp %69 : vector<8x8xf32>
    %cst_37 = arith.constant dense<0.000000e+00> : vector<8xf32>
    %71 = vector.multi_reduction <add>, %70, %cst_37 [1] : vector<8x8xf32> to vector<8xf32>
    %72 = vector.shape_cast %71 : vector<8xf32> to vector<8x1xf32>
    %73 = vector.broadcast %72 : vector<8x1xf32> to vector<8x8xf32>
    %74 = arith.divf %70, %73 : vector<8x8xf32>
    %75 = arith.subf %74, %3 : vector<8x8xf32>
    %cst_38 = arith.constant 8.000000e+00 : f32
    %76 = vector.broadcast %cst_38 : f32 to vector<8x8xf32>
    %77 = arith.divf %75, %76 : vector<8x8xf32>
    %cst_39 = arith.constant dense<0.000000e+00> : vector<8x128xf32>
    %78 = tpu.matmul %77, %62, %cst_39 {dimension_numbers = #tpu.dot_dimension_numbers<[0], [0], [1], [1], [0, 1, 1, 1], [], []>} : vector<8x8xf32>, vector<8x128xf32>, vector<8x128xf32> -> vector<8x128xf32>
    %cst_40 = arith.constant dense<0.000000e+00> : vector<8xf32>
    %79 = vector.multi_reduction <add>, %77, %cst_40 [0] : vector<8x8xf32> to vector<8xf32>
    %80 = vector.shape_cast %79 : vector<8xf32> to vector<1x8xf32>
    %cst_41 = arith.constant dense<0.000000e+00> : vector<8x128xf32>
    %81 = tpu.matmul %77, %51, %cst_41 {dimension_numbers = #tpu.dot_dimension_numbers<[1], [0], [0], [1], [0, 0, 1, 1], [], []>} : vector<8x8xf32>, vector<8x128xf32>, vector<8x128xf32> -> vector<8x128xf32>
    %82 = arith.mulf %81, %61 : vector<8x128xf32>
    %cst_42 = arith.constant dense<0.000000e+00> : vector<256x128xf32>
    %83 = tpu.matmul %1, %82, %cst_42 {dimension_numbers = #tpu.dot_dimension_numbers<[0], [0], [1], [1], [0, 1, 1, 1], [], []>} : vector<8x256xf32>, vector<8x128xf32>, vector<256x128xf32> -> vector<256x128xf32>
    %cst_43 = arith.constant dense<0.000000e+00> : vector<128xf32>
    %84 = vector.multi_reduction <add>, %82, %cst_43 [0] : vector<8x128xf32> to vector<128xf32>
    %85 = vector.shape_cast %84 : vector<128xf32> to vector<1x128xf32>
    %cst_44 = arith.constant 4.000000e-01 : f32
    %86 = vector.broadcast %cst_44 : f32 to vector<256x128xf32>
    %87 = arith.mulf %86, %83 : vector<256x128xf32>
    %88 = arith.subf %45, %87 : vector<256x128xf32>
    %cst_45 = arith.constant 4.000000e-01 : f32
    %89 = vector.broadcast %cst_45 : f32 to vector<1x128xf32>
    %90 = arith.mulf %89, %85 : vector<1x128xf32>
    %91 = arith.subf %48, %90 : vector<1x128xf32>
    %cst_46 = arith.constant 4.000000e-01 : f32
    %92 = vector.broadcast %cst_46 : f32 to vector<8x128xf32>
    %93 = arith.mulf %92, %78 : vector<8x128xf32>
    %94 = arith.subf %51, %93 : vector<8x128xf32>
    %cst_47 = arith.constant 4.000000e-01 : f32
    %95 = vector.broadcast %cst_47 : f32 to vector<1x8xf32>
    %96 = arith.mulf %95, %80 : vector<1x8xf32>
    %97 = arith.subf %54, %96 : vector<1x8xf32>
    %cst_48 = arith.constant dense<0.000000e+00> : vector<8x128xf32>
    %98 = tpu.matmul %5, %88, %cst_48 {dimension_numbers = #tpu.dot_dimension_numbers<[1], [0], [0], [1], [0, 0, 1, 1], [], []>} : vector<8x256xf32>, vector<256x128xf32>, vector<8x128xf32> -> vector<8x128xf32>
    %99 = vector.broadcast %91 : vector<1x128xf32> to vector<8x128xf32>
    %100 = arith.addf %98, %99 : vector<8x128xf32>
    %cst_49 = arith.constant 0.000000e+00 : f32
    %101 = vector.broadcast %cst_49 : f32 to vector<8x128xf32>
    %102 = arith.cmpf ogt, %100, %101 : vector<8x128xf32>
    %103 = arith.extui %102 : vector<8x128xi1> to vector<8x128xi32>
    %104 = arith.sitofp %103 : vector<8x128xi32> to vector<8x128xf32>
    %105 = arith.mulf %100, %104 : vector<8x128xf32>
    %cst_50 = arith.constant dense<0.000000e+00> : vector<8x8xf32>
    %106 = tpu.matmul %105, %94, %cst_50 {dimension_numbers = #tpu.dot_dimension_numbers<[1], [1], [0], [0], [0, 0, 1, 0], [], []>} : vector<8x128xf32>, vector<8x128xf32>, vector<8x8xf32> -> vector<8x8xf32>
    %107 = vector.broadcast %97 : vector<1x8xf32> to vector<8x8xf32>
    %108 = arith.addf %106, %107 : vector<8x8xf32>
    %cst_51 = arith.constant dense<0xFF800000> : vector<8xf32>
    %109 = vector.multi_reduction <maximumf>, %108, %cst_51 [1] : vector<8x8xf32> to vector<8xf32>
    %110 = vector.shape_cast %109 : vector<8xf32> to vector<8x1xf32>
    %111 = vector.broadcast %110 : vector<8x1xf32> to vector<8x8xf32>
    %112 = arith.subf %108, %111 : vector<8x8xf32>
    %113 = math.exp %112 : vector<8x8xf32>
    %cst_52 = arith.constant dense<0.000000e+00> : vector<8xf32>
    %114 = vector.multi_reduction <add>, %113, %cst_52 [1] : vector<8x8xf32> to vector<8xf32>
    %115 = vector.shape_cast %114 : vector<8xf32> to vector<8x1xf32>
    %116 = vector.broadcast %115 : vector<8x1xf32> to vector<8x8xf32>
    %117 = arith.divf %113, %116 : vector<8x8xf32>
    %118 = vector.broadcast %110 : vector<8x1xf32> to vector<8x8xf32>
    %119 = arith.subf %108, %118 : vector<8x8xf32>
    %120 = math.log %115 : vector<8x1xf32>
    %121 = vector.broadcast %120 : vector<8x1xf32> to vector<8x8xf32>
    %122 = arith.subf %119, %121 : vector<8x8xf32>
    %cst_53 = arith.constant 0.000000e+00 : f32
    %123 = vector.broadcast %cst_53 : f32 to vector<8x8xf32>
    %124 = arith.subf %123, %7 : vector<8x8xf32>
    %125 = arith.mulf %124, %122 : vector<8x8xf32>
    %126 = vector.shape_cast %125 : vector<8x8xf32> to vector<1x8x8xf32>
    %cst_54 = arith.constant dense<0.000000e+00> : vector<1xf32>
    %127 = vector.multi_reduction <add>, %126, %cst_54 [1, 2] : vector<1x8x8xf32> to vector<1xf32>
    %128 = vector.shape_cast %127 : vector<1xf32> to vector<1x1x1xf32>
    %129 = vector.extract %128[0, 0, 0] : f32 from vector<1x1x1xf32>
    %130 = vector.broadcast %129 : f32 to vector<1x1xf32>
    %cst_55 = arith.constant 8.000000e+00 : f32
    %131 = vector.broadcast %cst_55 : f32 to vector<1x1xf32>
    %132 = arith.divf %130, %131 : vector<1x1xf32>
    %133 = arith.subf %117, %7 : vector<8x8xf32>
    %cst_56 = arith.constant 8.000000e+00 : f32
    %134 = vector.broadcast %cst_56 : f32 to vector<8x8xf32>
    %135 = arith.divf %133, %134 : vector<8x8xf32>
    %cst_57 = arith.constant dense<0.000000e+00> : vector<8x128xf32>
    %136 = tpu.matmul %135, %105, %cst_57 {dimension_numbers = #tpu.dot_dimension_numbers<[0], [0], [1], [1], [0, 1, 1, 1], [], []>} : vector<8x8xf32>, vector<8x128xf32>, vector<8x128xf32> -> vector<8x128xf32>
    %cst_58 = arith.constant dense<0.000000e+00> : vector<8xf32>
    %137 = vector.multi_reduction <add>, %135, %cst_58 [0] : vector<8x8xf32> to vector<8xf32>
    %138 = vector.shape_cast %137 : vector<8xf32> to vector<1x8xf32>
    %cst_59 = arith.constant dense<0.000000e+00> : vector<8x128xf32>
    %139 = tpu.matmul %135, %94, %cst_59 {dimension_numbers = #tpu.dot_dimension_numbers<[1], [0], [0], [1], [0, 0, 1, 1], [], []>} : vector<8x8xf32>, vector<8x128xf32>, vector<8x128xf32> -> vector<8x128xf32>
    %140 = arith.mulf %139, %104 : vector<8x128xf32>
    %cst_60 = arith.constant dense<0.000000e+00> : vector<256x128xf32>
    %141 = tpu.matmul %5, %140, %cst_60 {dimension_numbers = #tpu.dot_dimension_numbers<[0], [0], [1], [1], [0, 1, 1, 1], [], []>} : vector<8x256xf32>, vector<8x128xf32>, vector<256x128xf32> -> vector<256x128xf32>
    %cst_61 = arith.constant dense<0.000000e+00> : vector<128xf32>
    %142 = vector.multi_reduction <add>, %140, %cst_61 [0] : vector<8x128xf32> to vector<128xf32>
    %143 = vector.shape_cast %142 : vector<128xf32> to vector<1x128xf32>
    %144 = tpu.iota {dimensions = array<i32: 1>} : vector<8x8xi32>
    %cst_62 = arith.constant dense<0xFF800000> : vector<8xf32>
    %145 = vector.multi_reduction <maximumf>, %108, %cst_62 [1] : vector<8x8xf32> to vector<8xf32>
    %146 = vector.shape_cast %145 : vector<8xf32> to vector<8x1xf32>
    %147 = vector.broadcast %146 : vector<8x1xf32> to vector<8x8xf32>
    %148 = arith.cmpf oeq, %108, %147 : vector<8x8xf32>
    %c8_i32 = arith.constant 8 : i32
    %149 = vector.broadcast %c8_i32 : i32 to vector<8x8xi32>
    %150 = arith.select %148, %144, %149 : vector<8x8xi1>, vector<8x8xi32>
    %cst_63 = arith.constant dense<2147483647> : vector<8xi32>
    %151 = vector.multi_reduction <minsi>, %150, %cst_63 [1] : vector<8x8xi32> to vector<8xi32>
    %152 = vector.shape_cast %151 : vector<8xi32> to vector<8x1xi32>
    %153 = arith.sitofp %144 : vector<8x8xi32> to vector<8x8xf32>
    %154 = arith.mulf %7, %153 : vector<8x8xf32>
    %cst_64 = arith.constant dense<0.000000e+00> : vector<8xf32>
    %155 = vector.multi_reduction <add>, %154, %cst_64 [1] : vector<8x8xf32> to vector<8xf32>
    %156 = vector.shape_cast %155 : vector<8xf32> to vector<8x1xf32>
    %157 = arith.fptosi %156 : vector<8x1xf32> to vector<8x1xi32>
    %158 = arith.cmpi eq, %152, %157 : vector<8x1xi32>
    %159 = arith.extui %158 : vector<8x1xi1> to vector<8x1xi32>
    %160 = arith.sitofp %159 : vector<8x1xi32> to vector<8x1xf32>
    %161 = vector.shape_cast %160 : vector<8x1xf32> to vector<1x8x1xf32>
    %cst_65 = arith.constant dense<0.000000e+00> : vector<1xf32>
    %162 = vector.multi_reduction <add>, %161, %cst_65 [1, 2] : vector<1x8x1xf32> to vector<1xf32>
    %163 = vector.shape_cast %162 : vector<1xf32> to vector<1x1x1xf32>
    %164 = vector.extract %163[0, 0, 0] : f32 from vector<1x1x1xf32>
    %165 = vector.broadcast %164 : f32 to vector<1x1xf32>
    %cst_66 = arith.constant dense<0.000000e+00> : vector<8x128xf32>
    %166 = tpu.matmul %1, %141, %cst_66 {dimension_numbers = #tpu.dot_dimension_numbers<[1], [0], [0], [1], [0, 0, 1, 1], [], []>} : vector<8x256xf32>, vector<256x128xf32>, vector<8x128xf32> -> vector<8x128xf32>
    %167 = vector.broadcast %143 : vector<1x128xf32> to vector<8x128xf32>
    %168 = arith.addf %166, %167 : vector<8x128xf32>
    %169 = arith.mulf %168, %61 : vector<8x128xf32>
    %170 = tpu.concatenate %169, %62 in 1 : vector<8x128xf32>, vector<8x128xf32> -> vector<8x256xf32>
    %171 = tpu.concatenate %51, %136 in 1 : vector<8x128xf32>, vector<8x128xf32> -> vector<8x256xf32>
    %cst_67 = arith.constant dense<0.000000e+00> : vector<8x8xf32>
    %172 = tpu.matmul %170, %171, %cst_67 {dimension_numbers = #tpu.dot_dimension_numbers<[1], [1], [0], [0], [0, 0, 1, 0], [], []>} : vector<8x256xf32>, vector<8x256xf32>, vector<8x8xf32> -> vector<8x8xf32>
    %173 = vector.broadcast %138 : vector<1x8xf32> to vector<8x8xf32>
    %174 = arith.addf %172, %173 : vector<8x8xf32>
    %175 = arith.mulf %74, %174 : vector<8x8xf32>
    %cst_68 = arith.constant dense<0.000000e+00> : vector<8xf32>
    %176 = vector.multi_reduction <add>, %175, %cst_68 [1] : vector<8x8xf32> to vector<8xf32>
    %177 = vector.shape_cast %176 : vector<8xf32> to vector<8x1xf32>
    %178 = vector.broadcast %177 : vector<8x1xf32> to vector<8x8xf32>
    %179 = arith.subf %174, %178 : vector<8x8xf32>
    %180 = arith.mulf %74, %179 : vector<8x8xf32>
    %cst_69 = arith.constant 8.000000e+00 : f32
    %181 = vector.broadcast %cst_69 : f32 to vector<8x8xf32>
    %182 = arith.divf %180, %181 : vector<8x8xf32>
    %183 = tpu.concatenate %182, %77 in 0 : vector<8x8xf32>, vector<8x8xf32> -> vector<16x8xf32>
    %184 = tpu.concatenate %62, %169 in 0 : vector<8x128xf32>, vector<8x128xf32> -> vector<16x128xf32>
    %cst_70 = arith.constant dense<0.000000e+00> : vector<8x128xf32>
    %185 = tpu.matmul %183, %184, %cst_70 {dimension_numbers = #tpu.dot_dimension_numbers<[0], [0], [1], [1], [0, 1, 1, 1], [], []>} : vector<16x8xf32>, vector<16x128xf32>, vector<8x128xf32> -> vector<8x128xf32>
    %cst_71 = arith.constant dense<0.000000e+00> : vector<8xf32>
    %186 = vector.multi_reduction <add>, %182, %cst_71 [0] : vector<8x8xf32> to vector<8xf32>
    %187 = vector.shape_cast %186 : vector<8xf32> to vector<1x8xf32>
    %cst_72 = arith.constant dense<0.000000e+00> : vector<8x128xf32>
    %188 = tpu.matmul %182, %51, %cst_72 {dimension_numbers = #tpu.dot_dimension_numbers<[1], [0], [0], [1], [0, 0, 1, 1], [], []>} : vector<8x8xf32>, vector<8x128xf32>, vector<8x128xf32> -> vector<8x128xf32>
    %cst_73 = arith.constant dense<0.000000e+00> : vector<8x128xf32>
    %189 = tpu.matmul %77, %136, %cst_73 {dimension_numbers = #tpu.dot_dimension_numbers<[1], [0], [0], [1], [0, 0, 1, 1], [], []>} : vector<8x8xf32>, vector<8x128xf32>, vector<8x128xf32> -> vector<8x128xf32>
    %190 = arith.addf %188, %189 : vector<8x128xf32>
    %191 = arith.mulf %190, %61 : vector<8x128xf32>
    %cst_74 = arith.constant dense<0.000000e+00> : vector<256x128xf32>
    %192 = tpu.matmul %1, %191, %cst_74 {dimension_numbers = #tpu.dot_dimension_numbers<[0], [0], [1], [1], [0, 1, 1, 1], [], []>} : vector<8x256xf32>, vector<8x128xf32>, vector<256x128xf32> -> vector<256x128xf32>
    %cst_75 = arith.constant dense<0.000000e+00> : vector<128xf32>
    %193 = vector.multi_reduction <add>, %191, %cst_75 [0] : vector<8x128xf32> to vector<128xf32>
    %194 = vector.shape_cast %193 : vector<128xf32> to vector<1x128xf32>
    %cst_76 = arith.constant 4.000000e-01 : f32
    %195 = vector.broadcast %cst_76 : f32 to vector<256x128xf32>
    %196 = arith.mulf %195, %192 : vector<256x128xf32>
    %197 = arith.subf %141, %196 : vector<256x128xf32>
    %cst_77 = arith.constant 4.000000e-01 : f32
    %198 = vector.broadcast %cst_77 : f32 to vector<1x128xf32>
    %199 = arith.mulf %198, %194 : vector<1x128xf32>
    %200 = arith.subf %143, %199 : vector<1x128xf32>
    %cst_78 = arith.constant 4.000000e-01 : f32
    %201 = vector.broadcast %cst_78 : f32 to vector<8x128xf32>
    %202 = arith.mulf %201, %185 : vector<8x128xf32>
    %203 = arith.subf %136, %202 : vector<8x128xf32>
    %cst_79 = arith.constant 4.000000e-01 : f32
    %204 = vector.broadcast %cst_79 : f32 to vector<1x8xf32>
    %205 = arith.mulf %204, %187 : vector<1x8xf32>
    %206 = arith.subf %138, %205 : vector<1x8xf32>
    %cst_80 = arith.constant dense<0.000000e+00> : vector<8x128xf32>
    %207 = tpu.matmul %1, %197, %cst_80 {dimension_numbers = #tpu.dot_dimension_numbers<[1], [0], [0], [1], [0, 0, 1, 1], [], []>} : vector<8x256xf32>, vector<256x128xf32>, vector<8x128xf32> -> vector<8x128xf32>
    %208 = vector.broadcast %200 : vector<1x128xf32> to vector<8x128xf32>
    %209 = arith.addf %207, %208 : vector<8x128xf32>
    %210 = arith.mulf %209, %18 : vector<8x128xf32>
    %211 = tpu.concatenate %210, %19 in 1 : vector<8x128xf32>, vector<8x128xf32> -> vector<8x256xf32>
    %212 = tpu.concatenate %10, %203 in 1 : vector<8x128xf32>, vector<8x128xf32> -> vector<8x256xf32>
    %cst_81 = arith.constant dense<0.000000e+00> : vector<8x8xf32>
    %213 = tpu.matmul %211, %212, %cst_81 {dimension_numbers = #tpu.dot_dimension_numbers<[1], [1], [0], [0], [0, 0, 1, 0], [], []>} : vector<8x256xf32>, vector<8x256xf32>, vector<8x8xf32> -> vector<8x8xf32>
    %214 = vector.broadcast %206 : vector<1x8xf32> to vector<8x8xf32>
    %215 = arith.addf %213, %214 : vector<8x8xf32>
    %216 = arith.mulf %31, %215 : vector<8x8xf32>
    %cst_82 = arith.constant dense<0.000000e+00> : vector<8xf32>
    %217 = vector.multi_reduction <add>, %216, %cst_82 [1] : vector<8x8xf32> to vector<8xf32>
    %218 = vector.shape_cast %217 : vector<8xf32> to vector<8x1xf32>
    %219 = vector.broadcast %218 : vector<8x1xf32> to vector<8x8xf32>
    %220 = arith.subf %215, %219 : vector<8x8xf32>
    %221 = arith.mulf %31, %220 : vector<8x8xf32>
    %cst_83 = arith.constant 8.000000e+00 : f32
    %222 = vector.broadcast %cst_83 : f32 to vector<8x8xf32>
    %223 = arith.divf %221, %222 : vector<8x8xf32>
    %224 = tpu.concatenate %223, %34 in 0 : vector<8x8xf32>, vector<8x8xf32> -> vector<16x8xf32>
    %225 = tpu.concatenate %19, %210 in 0 : vector<8x128xf32>, vector<8x128xf32> -> vector<16x128xf32>
    %cst_84 = arith.constant dense<0.000000e+00> : vector<8x128xf32>
    %226 = tpu.matmul %224, %225, %cst_84 {dimension_numbers = #tpu.dot_dimension_numbers<[0], [0], [1], [1], [0, 1, 1, 1], [], []>} : vector<16x8xf32>, vector<16x128xf32>, vector<8x128xf32> -> vector<8x128xf32>
    %cst_85 = arith.constant dense<0.000000e+00> : vector<8xf32>
    %227 = vector.multi_reduction <add>, %223, %cst_85 [0] : vector<8x8xf32> to vector<8xf32>
    %228 = vector.shape_cast %227 : vector<8xf32> to vector<1x8xf32>
    %cst_86 = arith.constant dense<0.000000e+00> : vector<8x128xf32>
    %229 = tpu.matmul %223, %10, %cst_86 {dimension_numbers = #tpu.dot_dimension_numbers<[1], [0], [0], [1], [0, 0, 1, 1], [], []>} : vector<8x8xf32>, vector<8x128xf32>, vector<8x128xf32> -> vector<8x128xf32>
    %cst_87 = arith.constant dense<0.000000e+00> : vector<8x128xf32>
    %230 = tpu.matmul %34, %203, %cst_87 {dimension_numbers = #tpu.dot_dimension_numbers<[1], [0], [0], [1], [0, 0, 1, 1], [], []>} : vector<8x8xf32>, vector<8x128xf32>, vector<8x128xf32> -> vector<8x128xf32>
    %231 = arith.addf %229, %230 : vector<8x128xf32>
    %232 = arith.mulf %231, %18 : vector<8x128xf32>
    %cst_88 = arith.constant dense<0.000000e+00> : vector<256x128xf32>
    %233 = tpu.matmul %1, %232, %cst_88 {dimension_numbers = #tpu.dot_dimension_numbers<[0], [0], [1], [1], [0, 1, 1, 1], [], []>} : vector<8x256xf32>, vector<8x128xf32>, vector<256x128xf32> -> vector<256x128xf32>
    %cst_89 = arith.constant dense<0.000000e+00> : vector<128xf32>
    %234 = vector.multi_reduction <add>, %232, %cst_89 [0] : vector<8x128xf32> to vector<128xf32>
    %235 = vector.shape_cast %234 : vector<128xf32> to vector<1x128xf32>
    %cst_90 = arith.constant 4.000000e-01 : f32
    %236 = vector.broadcast %cst_90 : f32 to vector<256x128xf32>
    %237 = arith.mulf %236, %233 : vector<256x128xf32>
    %238 = arith.subf %197, %237 : vector<256x128xf32>
    %cst_91 = arith.constant 4.000000e-01 : f32
    %239 = vector.broadcast %cst_91 : f32 to vector<1x128xf32>
    %240 = arith.mulf %239, %235 : vector<1x128xf32>
    %241 = arith.subf %200, %240 : vector<1x128xf32>
    %cst_92 = arith.constant 4.000000e-01 : f32
    %242 = vector.broadcast %cst_92 : f32 to vector<8x128xf32>
    %243 = arith.mulf %242, %226 : vector<8x128xf32>
    %244 = arith.subf %203, %243 : vector<8x128xf32>
    %cst_93 = arith.constant 4.000000e-01 : f32
    %245 = vector.broadcast %cst_93 : f32 to vector<1x8xf32>
    %246 = arith.mulf %245, %228 : vector<1x8xf32>
    %247 = arith.subf %206, %246 : vector<1x8xf32>
    %248 = tpu.iota {dimensions = array<i32: 1>} : vector<1x128xi32>
    %249 = tpu.iota {dimensions = array<i32: 0>} : vector<8x128xi32>
    %250 = tpu.iota {dimensions = array<i32: 1>} : vector<8x128xi32>
    %251 = arith.cmpi eq, %250, %249 : vector<8x128xi32>
    %252 = arith.extui %251 : vector<8x128xi1> to vector<8x128xi32>
    %253 = arith.sitofp %252 : vector<8x128xi32> to vector<8x128xf32>
    %c8_i32_94 = arith.constant 8 : i32
    %254 = vector.broadcast %c8_i32_94 : i32 to vector<8x128xi32>
    %255 = arith.addi %249, %254 : vector<8x128xi32>
    %256 = arith.cmpi eq, %250, %255 : vector<8x128xi32>
    %257 = arith.extui %256 : vector<8x128xi1> to vector<8x128xi32>
    %258 = arith.sitofp %257 : vector<8x128xi32> to vector<8x128xf32>
    %cst_95 = arith.constant dense<0.000000e+00> : vector<1x128xf32>
    %259 = tpu.matmul %247, %253, %cst_95 {dimension_numbers = #tpu.dot_dimension_numbers<[1], [0], [0], [1], [0, 0, 1, 1], [], []>} : vector<1x8xf32>, vector<8x128xf32>, vector<1x128xf32> -> vector<1x128xf32>
    %cst_96 = arith.constant dense<0.000000e+00> : vector<1x128xf32>
    %260 = tpu.matmul %97, %258, %cst_96 {dimension_numbers = #tpu.dot_dimension_numbers<[1], [0], [0], [1], [0, 0, 1, 1], [], []>} : vector<1x8xf32>, vector<8x128xf32>, vector<1x128xf32> -> vector<1x128xf32>
    %261 = arith.addf %259, %260 : vector<1x128xf32>
    %c16_i32 = arith.constant 16 : i32
    %262 = vector.broadcast %c16_i32 : i32 to vector<1x128xi32>
    %263 = arith.cmpi eq, %248, %262 : vector<1x128xi32>
    %264 = arith.extui %263 : vector<1x128xi1> to vector<1x128xi32>
    %265 = arith.sitofp %264 : vector<1x128xi32> to vector<1x128xf32>
    %266 = vector.broadcast %132 : vector<1x1xf32> to vector<1x128xf32>
    %267 = arith.mulf %266, %265 : vector<1x128xf32>
    %268 = arith.addf %261, %267 : vector<1x128xf32>
    %c17_i32 = arith.constant 17 : i32
    %269 = vector.broadcast %c17_i32 : i32 to vector<1x128xi32>
    %270 = arith.cmpi eq, %248, %269 : vector<1x128xi32>
    %271 = arith.extui %270 : vector<1x128xi1> to vector<1x128xi32>
    %272 = arith.sitofp %271 : vector<1x128xi32> to vector<1x128xf32>
    %273 = vector.broadcast %165 : vector<1x1xf32> to vector<1x128xf32>
    %274 = arith.mulf %273, %272 : vector<1x128xf32>
    %275 = arith.addf %268, %274 : vector<1x128xf32>
    %276 = tpu.iota {dimensions = array<i32: 0>} : vector<8x1xi32>
    %c0_i32 = arith.constant 0 : i32
    %277 = vector.broadcast %c0_i32 : i32 to vector<8x1xi32>
    %278 = arith.cmpi eq, %276, %277 : vector<8x1xi32>
    %279 = arith.extui %278 : vector<8x1xi1> to vector<8x1xi32>
    %280 = arith.sitofp %279 : vector<8x1xi32> to vector<8x1xf32>
    %281 = vector.broadcast %280 : vector<8x1xf32> to vector<8x128xf32>
    %282 = vector.broadcast %241 : vector<1x128xf32> to vector<8x128xf32>
    %283 = arith.mulf %281, %282 : vector<8x128xf32>
    %c1_i32 = arith.constant 1 : i32
    %284 = vector.broadcast %c1_i32 : i32 to vector<8x1xi32>
    %285 = arith.cmpi eq, %276, %284 : vector<8x1xi32>
    %286 = arith.extui %285 : vector<8x1xi1> to vector<8x1xi32>
    %287 = arith.sitofp %286 : vector<8x1xi32> to vector<8x1xf32>
    %288 = vector.broadcast %287 : vector<8x1xf32> to vector<8x128xf32>
    %289 = vector.broadcast %91 : vector<1x128xf32> to vector<8x128xf32>
    %290 = arith.mulf %288, %289 : vector<8x128xf32>
    %291 = arith.addf %283, %290 : vector<8x128xf32>
    %c2_i32 = arith.constant 2 : i32
    %292 = vector.broadcast %c2_i32 : i32 to vector<8x1xi32>
    %293 = arith.cmpi eq, %276, %292 : vector<8x1xi32>
    %294 = arith.extui %293 : vector<8x1xi1> to vector<8x1xi32>
    %295 = arith.sitofp %294 : vector<8x1xi32> to vector<8x1xf32>
    %296 = vector.broadcast %295 : vector<8x1xf32> to vector<8x128xf32>
    %297 = vector.broadcast %275 : vector<1x128xf32> to vector<8x128xf32>
    %298 = arith.mulf %296, %297 : vector<8x128xf32>
    %299 = arith.addf %291, %298 : vector<8x128xf32>
    %c0_i32_97 = arith.constant 0 : i32
    %300 = arith.cmpi eq, %arg1, %c0_i32_97 : i32
    %301 = arith.extui %300 : i1 to i32
    %c0_i32_98 = arith.constant 0 : i32
    %302 = arith.cmpi ne, %301, %c0_i32_98 : i32
    scf.if %302 {
      %c0_101 = arith.constant 0 : index
      %c0_102 = arith.constant 0 : index
      %c0_103 = arith.constant 0 : index
      %306 = vector.load %arg10[%c0_101, %c0_102, %c0_103] : memref<1x256x128xf32, #tpu.memory_space<vmem>>, vector<1x256x128xf32>
      %307 = vector.shape_cast %306 : vector<1x256x128xf32> to vector<256x128xf32>
      %308 = vector.shape_cast %238 : vector<256x128xf32> to vector<1x256x128xf32>
      tpu.vector_store %arg10[%c0_101, %c0_102, %c0_103], %308 {strides = array<i32>} : memref<1x256x128xf32, #tpu.memory_space<vmem>>, vector<1x256x128xf32>,
      %c0_104 = arith.constant 0 : index
      %c0_105 = arith.constant 0 : index
      %c0_106 = arith.constant 0 : index
      %309 = vector.load %arg11[%c0_104, %c0_105, %c0_106] : memref<1x8x128xf32, #tpu.memory_space<vmem>>, vector<1x8x128xf32>
      %310 = vector.shape_cast %309 : vector<1x8x128xf32> to vector<8x128xf32>
      %311 = vector.shape_cast %244 : vector<8x128xf32> to vector<1x8x128xf32>
      tpu.vector_store %arg11[%c0_104, %c0_105, %c0_106], %311 {strides = array<i32>} : memref<1x8x128xf32, #tpu.memory_space<vmem>>, vector<1x8x128xf32>,
      %c0_107 = arith.constant 0 : index
      %c0_108 = arith.constant 0 : index
      %c0_109 = arith.constant 0 : index
      %312 = vector.load %arg12[%c0_107, %c0_108, %c0_109] : memref<1x256x128xf32, #tpu.memory_space<vmem>>, vector<1x256x128xf32>
      %313 = vector.shape_cast %312 : vector<1x256x128xf32> to vector<256x128xf32>
      %314 = vector.shape_cast %88 : vector<256x128xf32> to vector<1x256x128xf32>
      tpu.vector_store %arg12[%c0_107, %c0_108, %c0_109], %314 {strides = array<i32>} : memref<1x256x128xf32, #tpu.memory_space<vmem>>, vector<1x256x128xf32>,
      %c0_110 = arith.constant 0 : index
      %c0_111 = arith.constant 0 : index
      %c0_112 = arith.constant 0 : index
      %315 = vector.load %arg13[%c0_110, %c0_111, %c0_112] : memref<1x8x128xf32, #tpu.memory_space<vmem>>, vector<1x8x128xf32>
      %316 = vector.shape_cast %315 : vector<1x8x128xf32> to vector<8x128xf32>
      %317 = vector.shape_cast %94 : vector<8x128xf32> to vector<1x8x128xf32>
      tpu.vector_store %arg13[%c0_110, %c0_111, %c0_112], %317 {strides = array<i32>} : memref<1x8x128xf32, #tpu.memory_space<vmem>>, vector<1x8x128xf32>,
      %c0_113 = arith.constant 0 : index
      %c0_114 = arith.constant 0 : index
      %c0_115 = arith.constant 0 : index
      %318 = vector.load %arg14[%c0_113, %c0_114, %c0_115] : memref<1x8x128xf32, #tpu.memory_space<vmem>>, vector<1x8x128xf32>
      %319 = vector.shape_cast %318 : vector<1x8x128xf32> to vector<8x128xf32>
      %320 = vector.shape_cast %299 : vector<8x128xf32> to vector<1x8x128xf32>
      tpu.vector_store %arg14[%c0_113, %c0_114, %c0_115], %320 {strides = array<i32>} : memref<1x8x128xf32, #tpu.memory_space<vmem>>, vector<1x8x128xf32>,
    } else {
    }
    %c0_i32_99 = arith.constant 0 : i32
    %303 = arith.cmpi sgt, %arg1, %c0_i32_99 : i32
    %304 = arith.extui %303 : i1 to i32
    %c0_i32_100 = arith.constant 0 : i32
    %305 = arith.cmpi ne, %304, %c0_i32_100 : i32
    scf.if %305 {
      %c0_101 = arith.constant 0 : index
      %c0_102 = arith.constant 0 : index
      %c0_103 = arith.constant 0 : index
      %306 = vector.load %arg10[%c0_101, %c0_102, %c0_103] : memref<1x256x128xf32, #tpu.memory_space<vmem>>, vector<1x256x128xf32>
      %307 = vector.shape_cast %306 : vector<1x256x128xf32> to vector<256x128xf32>
      %308 = arith.addf %307, %238 : vector<256x128xf32>
      %c0_104 = arith.constant 0 : index
      %c0_105 = arith.constant 0 : index
      %c0_106 = arith.constant 0 : index
      %309 = vector.load %arg10[%c0_104, %c0_105, %c0_106] : memref<1x256x128xf32, #tpu.memory_space<vmem>>, vector<1x256x128xf32>
      %310 = vector.shape_cast %309 : vector<1x256x128xf32> to vector<256x128xf32>
      %311 = vector.shape_cast %308 : vector<256x128xf32> to vector<1x256x128xf32>
      tpu.vector_store %arg10[%c0_104, %c0_105, %c0_106], %311 {strides = array<i32>} : memref<1x256x128xf32, #tpu.memory_space<vmem>>, vector<1x256x128xf32>,
      %c0_107 = arith.constant 0 : index
      %c0_108 = arith.constant 0 : index
      %c0_109 = arith.constant 0 : index
      %312 = vector.load %arg11[%c0_107, %c0_108, %c0_109] : memref<1x8x128xf32, #tpu.memory_space<vmem>>, vector<1x8x128xf32>
      %313 = vector.shape_cast %312 : vector<1x8x128xf32> to vector<8x128xf32>
      %314 = arith.addf %313, %244 : vector<8x128xf32>
      %c0_110 = arith.constant 0 : index
      %c0_111 = arith.constant 0 : index
      %c0_112 = arith.constant 0 : index
      %315 = vector.load %arg11[%c0_110, %c0_111, %c0_112] : memref<1x8x128xf32, #tpu.memory_space<vmem>>, vector<1x8x128xf32>
      %316 = vector.shape_cast %315 : vector<1x8x128xf32> to vector<8x128xf32>
      %317 = vector.shape_cast %314 : vector<8x128xf32> to vector<1x8x128xf32>
      tpu.vector_store %arg11[%c0_110, %c0_111, %c0_112], %317 {strides = array<i32>} : memref<1x8x128xf32, #tpu.memory_space<vmem>>, vector<1x8x128xf32>,
      %c0_113 = arith.constant 0 : index
      %c0_114 = arith.constant 0 : index
      %c0_115 = arith.constant 0 : index
      %318 = vector.load %arg12[%c0_113, %c0_114, %c0_115] : memref<1x256x128xf32, #tpu.memory_space<vmem>>, vector<1x256x128xf32>
      %319 = vector.shape_cast %318 : vector<1x256x128xf32> to vector<256x128xf32>
      %320 = arith.addf %319, %88 : vector<256x128xf32>
      %c0_116 = arith.constant 0 : index
      %c0_117 = arith.constant 0 : index
      %c0_118 = arith.constant 0 : index
      %321 = vector.load %arg12[%c0_116, %c0_117, %c0_118] : memref<1x256x128xf32, #tpu.memory_space<vmem>>, vector<1x256x128xf32>
      %322 = vector.shape_cast %321 : vector<1x256x128xf32> to vector<256x128xf32>
      %323 = vector.shape_cast %320 : vector<256x128xf32> to vector<1x256x128xf32>
      tpu.vector_store %arg12[%c0_116, %c0_117, %c0_118], %323 {strides = array<i32>} : memref<1x256x128xf32, #tpu.memory_space<vmem>>, vector<1x256x128xf32>,
      %c0_119 = arith.constant 0 : index
      %c0_120 = arith.constant 0 : index
      %c0_121 = arith.constant 0 : index
      %324 = vector.load %arg13[%c0_119, %c0_120, %c0_121] : memref<1x8x128xf32, #tpu.memory_space<vmem>>, vector<1x8x128xf32>
      %325 = vector.shape_cast %324 : vector<1x8x128xf32> to vector<8x128xf32>
      %326 = arith.addf %325, %94 : vector<8x128xf32>
      %c0_122 = arith.constant 0 : index
      %c0_123 = arith.constant 0 : index
      %c0_124 = arith.constant 0 : index
      %327 = vector.load %arg13[%c0_122, %c0_123, %c0_124] : memref<1x8x128xf32, #tpu.memory_space<vmem>>, vector<1x8x128xf32>
      %328 = vector.shape_cast %327 : vector<1x8x128xf32> to vector<8x128xf32>
      %329 = vector.shape_cast %326 : vector<8x128xf32> to vector<1x8x128xf32>
      tpu.vector_store %arg13[%c0_122, %c0_123, %c0_124], %329 {strides = array<i32>} : memref<1x8x128xf32, #tpu.memory_space<vmem>>, vector<1x8x128xf32>,
      %c0_125 = arith.constant 0 : index
      %c0_126 = arith.constant 0 : index
      %c0_127 = arith.constant 0 : index
      %330 = vector.load %arg14[%c0_125, %c0_126, %c0_127] : memref<1x8x128xf32, #tpu.memory_space<vmem>>, vector<1x8x128xf32>
      %331 = vector.shape_cast %330 : vector<1x8x128xf32> to vector<8x128xf32>
      %332 = arith.addf %331, %299 : vector<8x128xf32>
      %c0_128 = arith.constant 0 : index
      %c0_129 = arith.constant 0 : index
      %c0_130 = arith.constant 0 : index
      %333 = vector.load %arg14[%c0_128, %c0_129, %c0_130] : memref<1x8x128xf32, #tpu.memory_space<vmem>>, vector<1x8x128xf32>
      %334 = vector.shape_cast %333 : vector<1x8x128xf32> to vector<8x128xf32>
      %335 = vector.shape_cast %332 : vector<8x128xf32> to vector<1x8x128xf32>
      tpu.vector_store %arg14[%c0_128, %c0_129, %c0_130], %335 {strides = array<i32>} : memref<1x8x128xf32, #tpu.memory_space<vmem>>, vector<1x8x128xf32>,
    } else {
    }
    return
  }
  func.func @transform_0(%arg0: i32, %arg1: i32) -> (i32, i32, i32) {
    %c1_i32 = arith.constant 1 : i32
    %0 = arith.muli %arg0, %c1_i32 : i32
    %1 = arith.addi %0, %arg1 : i32
    %c0_i32 = arith.constant 0 : i32
    %c0_i32_0 = arith.constant 0 : i32
    %c0_i32_1 = arith.constant 0 : i32
    return %1, %c0_i32, %c0_i32_0 : i32, i32, i32
  }
  func.func @transform_1(%arg0: i32, %arg1: i32) -> (i32, i32, i32) {
    %c1_i32 = arith.constant 1 : i32
    %0 = arith.muli %arg0, %c1_i32 : i32
    %1 = arith.addi %0, %arg1 : i32
    %c0_i32 = arith.constant 0 : i32
    %c0_i32_0 = arith.constant 0 : i32
    %c0_i32_1 = arith.constant 0 : i32
    return %1, %c0_i32, %c0_i32_0 : i32, i32, i32
  }
  func.func @transform_2(%arg0: i32, %arg1: i32) -> (i32, i32, i32) {
    %c1_i32 = arith.constant 1 : i32
    %0 = arith.muli %arg0, %c1_i32 : i32
    %1 = arith.addi %0, %arg1 : i32
    %c0_i32 = arith.constant 0 : i32
    %c0_i32_0 = arith.constant 0 : i32
    %c0_i32_1 = arith.constant 0 : i32
    return %1, %c0_i32, %c0_i32_0 : i32, i32, i32
  }
  func.func @transform_3(%arg0: i32, %arg1: i32) -> (i32, i32, i32) {
    %c1_i32 = arith.constant 1 : i32
    %0 = arith.muli %arg0, %c1_i32 : i32
    %1 = arith.addi %0, %arg1 : i32
    %c0_i32 = arith.constant 0 : i32
    %c0_i32_0 = arith.constant 0 : i32
    %c0_i32_1 = arith.constant 0 : i32
    return %1, %c0_i32, %c0_i32_0 : i32, i32, i32
  }
  func.func @transform_4(%arg0: i32, %arg1: i32) -> (i32, i32) {
    %c0_i32 = arith.constant 0 : i32
    %c0_i32_0 = arith.constant 0 : i32
    %c0_i32_1 = arith.constant 0 : i32
    return %c0_i32, %c0_i32_0 : i32, i32
  }
  func.func @transform_5(%arg0: i32, %arg1: i32) -> (i32, i32) {
    %c0_i32 = arith.constant 0 : i32
    %c0_i32_0 = arith.constant 0 : i32
    %c0_i32_1 = arith.constant 0 : i32
    return %c0_i32, %c0_i32_0 : i32, i32
  }
  func.func @transform_6(%arg0: i32, %arg1: i32) -> (i32, i32) {
    %c0_i32 = arith.constant 0 : i32
    %c0_i32_0 = arith.constant 0 : i32
    %c0_i32_1 = arith.constant 0 : i32
    return %c0_i32, %c0_i32_0 : i32, i32
  }
  func.func @transform_7(%arg0: i32, %arg1: i32) -> (i32, i32) {
    %c0_i32 = arith.constant 0 : i32
    %c0_i32_0 = arith.constant 0 : i32
    %c0_i32_1 = arith.constant 0 : i32
    return %c0_i32, %c0_i32_0 : i32, i32
  }
  func.func @transform_8(%arg0: i32, %arg1: i32) -> (i32, i32, i32) {
    %c0_i32 = arith.constant 0 : i32
    %c0_i32_0 = arith.constant 0 : i32
    %c0_i32_1 = arith.constant 0 : i32
    return %arg0, %c0_i32, %c0_i32_0 : i32, i32, i32
  }
  func.func @transform_9(%arg0: i32, %arg1: i32) -> (i32, i32, i32) {
    %c0_i32 = arith.constant 0 : i32
    %c0_i32_0 = arith.constant 0 : i32
    %c0_i32_1 = arith.constant 0 : i32
    return %arg0, %c0_i32, %c0_i32_0 : i32, i32, i32
  }
  func.func @transform_10(%arg0: i32, %arg1: i32) -> (i32, i32, i32) {
    %c0_i32 = arith.constant 0 : i32
    %c0_i32_0 = arith.constant 0 : i32
    %c0_i32_1 = arith.constant 0 : i32
    return %arg0, %c0_i32, %c0_i32_0 : i32, i32, i32
  }
  func.func @transform_11(%arg0: i32, %arg1: i32) -> (i32, i32, i32) {
    %c0_i32 = arith.constant 0 : i32
    %c0_i32_0 = arith.constant 0 : i32
    %c0_i32_1 = arith.constant 0 : i32
    return %arg0, %c0_i32, %c0_i32_0 : i32, i32, i32
  }
  func.func @transform_12(%arg0: i32, %arg1: i32) -> (i32, i32, i32) {
    %c0_i32 = arith.constant 0 : i32
    %c0_i32_0 = arith.constant 0 : i32
    %c0_i32_1 = arith.constant 0 : i32
    return %arg0, %c0_i32, %c0_i32_0 : i32, i32, i32
  }
}

</mosaic_0001>

<llo_original>
// kernel: _meta_forward_impl.1
$region0: #{_meta_forward_impl.1}
  #allocation0 [shape = 'u32[]', space=smem, size = 0x4, offset = 0x4, fixed_abs, tag = 'smem constant byte address 0x4 - core index']
  #allocation1 [shape = 'u32[144,128]{1,0:T(1,128)}', space=vmem, size = 0x12000, scoped, tag = 'internal scratch']
  %s0 = inlined_call_operand.vmem [shape: f32[2,8,256], index: 0, kind: input, shape index: {}]
  %s1 = inlined_call_operand.vmem [shape: f32[2,8,8], index: 1, kind: input, shape index: {}]
  %s2 = inlined_call_operand.vmem [shape: f32[2,8,256], index: 2, kind: input, shape index: {}]
  %s3 = inlined_call_operand.vmem [shape: f32[2,8,8], index: 3, kind: input, shape index: {}]
  %s4 = inlined_call_operand.vmem [shape: f32[256,128], index: 4, kind: input, shape index: {}]
  %s5 = inlined_call_operand.vmem [shape: f32[1,128], index: 5, kind: input, shape index: {}]
  %s6 = inlined_call_operand.vmem [shape: f32[8,128], index: 6, kind: input, shape index: {}]
  %s7 = inlined_call_operand.vmem [shape: f32[1,8], index: 7, kind: input, shape index: {}]
  %s8 = inlined_call_operand.vmem [shape: f32[2,256,128], index: 8, kind: output, shape index: {0}]
  %s9 = inlined_call_operand.vmem [shape: f32[2,8,128], index: 9, kind: output, shape index: {1}]
  %s10 = inlined_call_operand.vmem [shape: f32[2,256,128], index: 10, kind: output, shape index: {2}]
  %s11 = inlined_call_operand.vmem [shape: f32[2,8,128], index: 11, kind: output, shape index: {3}]
  %s12 = inlined_call_operand.vmem [shape: f32[2,8,128], index: 12, kind: output, shape index: {4}]
  %13 = xla_tuple %s8, %s9, %s10, %s11, %s12
  %s14 = sld [smem:[#allocation0]]
  $region105: #{_meta_forward_impl.1} parent=0
    _
  %s16 = ssub.s32 1, %s14
  %s17 = scalar_select 0, %s16, %s14
  loop: start=0, step=1, limit=4
  $region2: #{_meta_forward_impl.1} parent=0 // loop_pre_header
    _
  $region3: #{_meta_forward_impl.1} parent=0 // loop_header
    %s19 = sphi 0, %s23
    %p20 = scmp.ge.s32.totalorder %s19, 4
    %s26 = sphi 0, %s38
    %s27 = sphi 0, %s34
    %s28 = sphi 0, %s26
    %s29 = sphi 0, %s27
    %s30 = sphi 0, %s28
    %s31 = sphi 0, %s29
    %s43 = sphi 0, %s45
    %s46 = sphi 0, %s43
    %s47 = sphi 0, %s46
    %s63 = sphi 0, %s47
    %s71 = sphi 0, %s73
    %s74 = sphi 0, %s71
    %s75 = sphi 0, %s74
    %s91 = sphi 0, %s75
    %s99 = sphi 0, %s101
    %s102 = sphi 0, %s99
    %s103 = sphi 0, %s102
    %s119 = sphi 0, %s103
    %s127 = sphi 0, %s129
    %s130 = sphi 0, %s127
    %s131 = sphi 0, %s130
    %s147 = sphi 0, %s131
    %s151 = sphi 0, %s151
    %s153 = sphi 0, %s151
    %s154 = sphi 0, %s153
    %s168 = sphi 0, %s154
    %s172 = sphi 0, %s172
    %s174 = sphi 0, %s172
    %s175 = sphi 0, %s174
    %s189 = sphi 0, %s175
    %s193 = sphi 0, %s193
    %s195 = sphi 0, %s193
    %s196 = sphi 0, %s195
    %s210 = sphi 0, %s196
    %s214 = sphi 0, %s214
    %s216 = sphi 0, %s214
    %s217 = sphi 0, %s216
    %s231 = sphi 0, %s217
    %s237 = sphi 0, %s239
    %s240 = sphi 0, %s237
    %s241 = sphi 0, %s240
    %s257 = sphi 0, %s241
    %s263 = sphi 0, %s265
    %s266 = sphi 0, %s263
    %s267 = sphi 0, %s266
    %s283 = sphi 0, %s267
    %s289 = sphi 0, %s291
    %s292 = sphi 0, %s289
    %s293 = sphi 0, %s292
    %s309 = sphi 0, %s293
    %s315 = sphi 0, %s317
    %s318 = sphi 0, %s315
    %s319 = sphi 0, %s318
    %s335 = sphi 0, %s319
    %s341 = sphi 0, %s343
    %s344 = sphi 0, %s341
    %s345 = sphi 0, %s344
    %s361 = sphi 0, %s345
  $region4: #{_meta_forward_impl.1} parent=0 // loop_header_branch
    %22 = sbr.rel (%p20) target = $region8
  $region5: #{_meta_forward_impl.1} parent=0 // loop_body
    %s24 = ssub.s32 %s19, 1
    %s25 = ssub.s32 %s19, 2
    %s32 = sadd.s32 1, %s27
    %p33 = scmp.ge.s32.totalorder %s32, 1
    %s34 = scalar_select %p33, 0, %s32
    %s35 = sadd.s32 1, %s26
    %s36 = scalar_select %p33, %s35, %s26
    %p37 = scmp.ge.s32.totalorder %s36, 2
    %s38 = scalar_select %p37, 0, %s36
    %s39 = sadd.s32 %s26, %s27
    %s40 = sadd.s32 %s38, %s34
    %s41 = ssub.s32 %s39, %s40
    %p42 = scmp.eq.s32.totalorder %s41, 0
    %s44 = sadd.s32 %s43, 1
    %s45 = scalar_select %p42, %s43, %s44
    %p48 = pneg %p42
    %p49 = scmp.eq.s32.totalorder %s19, 1
    %p50 = por %p48, %p49
    %p51 = scmp.ne.s32.totalorder %s43, %s46
    %p52 = scmp.eq.s32.totalorder %s19, 0
    %p53 = por %p51, %p52
    %p54 = scmp.ne.s32.totalorder %s43, %s46
    %p55 = scmp.eq.s32.totalorder %s24, 1
    %p56 = por %p54, %p55
    %p57 = scmp.ne.s32.totalorder %s46, %s47
    %p58 = scmp.eq.s32.totalorder %s24, 0
    %p59 = por %p57, %p58
    %p60 = scmp.ne.s32.totalorder %s46, %s47
    %p61 = scmp.eq.s32.totalorder %s25, 1
    %p62 = por %p60, %p61
    %p64 = scmp.ne.s32.totalorder %s47, %s63
    %p65 = scmp.eq.s32.totalorder %s25, 0
    %p66 = por %p64, %p65
    %s67 = sadd.s32 %s26, %s27
    %s68 = sadd.s32 %s38, %s34
    %s69 = ssub.s32 %s67, %s68
    %p70 = scmp.eq.s32.totalorder %s69, 0
    %s72 = sadd.s32 %s71, 1
    %s73 = scalar_select %p70, %s71, %s72
    %p76 = pneg %p70
    %p77 = scmp.eq.s32.totalorder %s19, 1
    %p78 = por %p76, %p77
    %p79 = scmp.ne.s32.totalorder %s71, %s74
    %p80 = scmp.eq.s32.totalorder %s19, 0
    %p81 = por %p79, %p80
    %p82 = scmp.ne.s32.totalorder %s71, %s74
    %p83 = scmp.eq.s32.totalorder %s24, 1
    %p84 = por %p82, %p83
    %p85 = scmp.ne.s32.totalorder %s74, %s75
    %p86 = scmp.eq.s32.totalorder %s24, 0
    %p87 = por %p85, %p86
    %p88 = scmp.ne.s32.totalorder %s74, %s75
    %p89 = scmp.eq.s32.totalorder %s25, 1
    %p90 = por %p88, %p89
    %p92 = scmp.ne.s32.totalorder %s75, %s91
    %p93 = scmp.eq.s32.totalorder %s25, 0
    %p94 = por %p92, %p93
    %s95 = sadd.s32 %s26, %s27
    %s96 = sadd.s32 %s38, %s34
    %s97 = ssub.s32 %s95, %s96
    %p98 = scmp.eq.s32.totalorder %s97, 0
    %s100 = sadd.s32 %s99, 1
    %s101 = scalar_select %p98, %s99, %s100
    %p104 = pneg %p98
    %p105 = scmp.eq.s32.totalorder %s19, 1
    %p106 = por %p104, %p105
    %p107 = scmp.ne.s32.totalorder %s99, %s102
    %p108 = scmp.eq.s32.totalorder %s19, 0
    %p109 = por %p107, %p108
    %p110 = scmp.ne.s32.totalorder %s99, %s102
    %p111 = scmp.eq.s32.totalorder %s24, 1
    %p112 = por %p110, %p111
    %p113 = scmp.ne.s32.totalorder %s102, %s103
    %p114 = scmp.eq.s32.totalorder %s24, 0
    %p115 = por %p113, %p114
    %p116 = scmp.ne.s32.totalorder %s102, %s103
    %p117 = scmp.eq.s32.totalorder %s25, 1
    %p118 = por %p116, %p117
    %p120 = scmp.ne.s32.totalorder %s103, %s119
    %p121 = scmp.eq.s32.totalorder %s25, 0
    %p122 = por %p120, %p121
    %s123 = sadd.s32 %s26, %s27
    %s124 = sadd.s32 %s38, %s34
    %s125 = ssub.s32 %s123, %s124
    %p126 = scmp.eq.s32.totalorder %s125, 0
    %s128 = sadd.s32 %s127, 1
    %s129 = scalar_select %p126, %s127, %s128
    %p132 = pneg %p126
    %p133 = scmp.eq.s32.totalorder %s19, 1
    %p134 = por %p132, %p133
    %p135 = scmp.ne.s32.totalorder %s127, %s130
    %p136 = scmp.eq.s32.totalorder %s19, 0
    %p137 = por %p135, %p136
    %p138 = scmp.ne.s32.totalorder %s127, %s130
    %p139 = scmp.eq.s32.totalorder %s24, 1
    %p140 = por %p138, %p139
    %p141 = scmp.ne.s32.totalorder %s130, %s131
    %p142 = scmp.eq.s32.totalorder %s24, 0
    %p143 = por %p141, %p142
    %p144 = scmp.ne.s32.totalorder %s130, %s131
    %p145 = scmp.eq.s32.totalorder %s25, 1
    %p146 = por %p144, %p145
    %p148 = scmp.ne.s32.totalorder %s131, %s147
    %p149 = scmp.eq.s32.totalorder %s25, 0
    %p150 = por %p148, %p149
    %s152 = sadd.s32 %s151, 1
    %p155 = scmp.eq.s32.totalorder %s19, 1
    %p156 = scmp.ne.s32.totalorder %s151, %s153
    %p157 = scmp.eq.s32.totalorder %s19, 0
    %p158 = por %p156, %p157
    %p159 = scmp.ne.s32.totalorder %s151, %s153
    %p160 = scmp.eq.s32.totalorder %s24, 1
    %p161 = por %p159, %p160
    %p162 = scmp.ne.s32.totalorder %s153, %s154
    %p163 = scmp.eq.s32.totalorder %s24, 0
    %p164 = por %p162, %p163
    %p165 = scmp.ne.s32.totalorder %s153, %s154
    %p166 = scmp.eq.s32.totalorder %s25, 1
    %p167 = por %p165, %p166
    %p169 = scmp.ne.s32.totalorder %s154, %s168
    %p170 = scmp.eq.s32.totalorder %s25, 0
    %p171 = por %p169, %p170
    %s173 = sadd.s32 %s172, 1
    %p176 = scmp.eq.s32.totalorder %s19, 1
    %p177 = scmp.ne.s32.totalorder %s172, %s174
    %p178 = scmp.eq.s32.totalorder %s19, 0
    %p179 = por %p177, %p178
    %p180 = scmp.ne.s32.totalorder %s172, %s174
    %p181 = scmp.eq.s32.totalorder %s24, 1
    %p182 = por %p180, %p181
    %p183 = scmp.ne.s32.totalorder %s174, %s175
    %p184 = scmp.eq.s32.totalorder %s24, 0
    %p185 = por %p183, %p184
    %p186 = scmp.ne.s32.totalorder %s174, %s175
    %p187 = scmp.eq.s32.totalorder %s25, 1
    %p188 = por %p186, %p187
    %p190 = scmp.ne.s32.totalorder %s175, %s189
    %p191 = scmp.eq.s32.totalorder %s25, 0
    %p192 = por %p190, %p191
    %s194 = sadd.s32 %s193, 1
    %p197 = scmp.eq.s32.totalorder %s19, 1
    %p198 = scmp.ne.s32.totalorder %s193, %s195
    %p199 = scmp.eq.s32.totalorder %s19, 0
    %p200 = por %p198, %p199
    %p201 = scmp.ne.s32.totalorder %s193, %s195
    %p202 = scmp.eq.s32.totalorder %s24, 1
    %p203 = por %p201, %p202
    %p204 = scmp.ne.s32.totalorder %s195, %s196
    %p205 = scmp.eq.s32.totalorder %s24, 0
    %p206 = por %p204, %p205
    %p207 = scmp.ne.s32.totalorder %s195, %s196
    %p208 = scmp.eq.s32.totalorder %s25, 1
    %p209 = por %p207, %p208
    %p211 = scmp.ne.s32.totalorder %s196, %s210
    %p212 = scmp.eq.s32.totalorder %s25, 0
    %p213 = por %p211, %p212
    %s215 = sadd.s32 %s214, 1
    %p218 = scmp.eq.s32.totalorder %s19, 1
    %p219 = scmp.ne.s32.totalorder %s214, %s216
    %p220 = scmp.eq.s32.totalorder %s19, 0
    %p221 = por %p219, %p220
    %p222 = scmp.ne.s32.totalorder %s214, %s216
    %p223 = scmp.eq.s32.totalorder %s24, 1
    %p224 = por %p222, %p223
    %p225 = scmp.ne.s32.totalorder %s216, %s217
    %p226 = scmp.eq.s32.totalorder %s24, 0
    %p227 = por %p225, %p226
    %p228 = scmp.ne.s32.totalorder %s216, %s217
    %p229 = scmp.eq.s32.totalorder %s25, 1
    %p230 = por %p228, %p229
    %p232 = scmp.ne.s32.totalorder %s217, %s231
    %p233 = scmp.eq.s32.totalorder %s25, 0
    %p234 = por %p232, %p233
    %s235 = ssub.s32 %s26, %s38
    %p236 = scmp.eq.s32.totalorder %s235, 0
    %s238 = sadd.s32 %s237, 1
    %s239 = scalar_select %p236, %s237, %s238
    %p242 = pneg %p236
    %p243 = scmp.eq.s32.totalorder %s19, 1
    %p244 = por %p242, %p243
    %p245 = scmp.ne.s32.totalorder %s237, %s240
    %p246 = scmp.eq.s32.totalorder %s19, 0
    %p247 = por %p245, %p246
    %p248 = scmp.ne.s32.totalorder %s237, %s240
    %p249 = scmp.eq.s32.totalorder %s24, 1
    %p250 = por %p248, %p249
    %p251 = scmp.ne.s32.totalorder %s240, %s241
    %p252 = scmp.eq.s32.totalorder %s24, 0
    %p253 = por %p251, %p252
    %p254 = scmp.ne.s32.totalorder %s240, %s241
    %p255 = scmp.eq.s32.totalorder %s25, 1
    %p256 = por %p254, %p255
    %p258 = scmp.ne.s32.totalorder %s241, %s257
    %p259 = scmp.eq.s32.totalorder %s25, 0
    %p260 = por %p258, %p259
    %s261 = ssub.s32 %s26, %s38
    %p262 = scmp.eq.s32.totalorder %s261, 0
    %s264 = sadd.s32 %s263, 1
    %s265 = scalar_select %p262, %s263, %s264
    %p268 = pneg %p262
    %p269 = scmp.eq.s32.totalorder %s19, 1
    %p270 = por %p268, %p269
    %p271 = scmp.ne.s32.totalorder %s263, %s266
    %p272 = scmp.eq.s32.totalorder %s19, 0
    %p273 = por %p271, %p272
    %p274 = scmp.ne.s32.totalorder %s263, %s266
    %p275 = scmp.eq.s32.totalorder %s24, 1
    %p276 = por %p274, %p275
    %p277 = scmp.ne.s32.totalorder %s266, %s267
    %p278 = scmp.eq.s32.totalorder %s24, 0
    %p279 = por %p277, %p278
    %p280 = scmp.ne.s32.totalorder %s266, %s267
    %p281 = scmp.eq.s32.totalorder %s25, 1
    %p282 = por %p280, %p281
    %p284 = scmp.ne.s32.totalorder %s267, %s283
    %p285 = scmp.eq.s32.totalorder %s25, 0
    %p286 = por %p284, %p285
    %s287 = ssub.s32 %s26, %s38
    %p288 = scmp.eq.s32.totalorder %s287, 0
    %s290 = sadd.s32 %s289, 1
    %s291 = scalar_select %p288, %s289, %s290
    %p294 = pneg %p288
    %p295 = scmp.eq.s32.totalorder %s19, 1
    %p296 = por %p294, %p295
    %p297 = scmp.ne.s32.totalorder %s289, %s292
    %p298 = scmp.eq.s32.totalorder %s19, 0
    %p299 = por %p297, %p298
    %p300 = scmp.ne.s32.totalorder %s289, %s292
    %p301 = scmp.eq.s32.totalorder %s24, 1
    %p302 = por %p300, %p301
    %p303 = scmp.ne.s32.totalorder %s292, %s293
    %p304 = scmp.eq.s32.totalorder %s24, 0
    %p305 = por %p303, %p304
    %p306 = scmp.ne.s32.totalorder %s292, %s293
    %p307 = scmp.eq.s32.totalorder %s25, 1
    %p308 = por %p306, %p307
    %p310 = scmp.ne.s32.totalorder %s293, %s309
    %p311 = scmp.eq.s32.totalorder %s25, 0
    %p312 = por %p310, %p311
    %s313 = ssub.s32 %s26, %s38
    %p314 = scmp.eq.s32.totalorder %s313, 0
    %s316 = sadd.s32 %s315, 1
    %s317 = scalar_select %p314, %s315, %s316
    %p320 = pneg %p314
    %p321 = scmp.eq.s32.totalorder %s19, 1
    %p322 = por %p320, %p321
    %p323 = scmp.ne.s32.totalorder %s315, %s318
    %p324 = scmp.eq.s32.totalorder %s19, 0
    %p325 = por %p323, %p324
    %p326 = scmp.ne.s32.totalorder %s315, %s318
    %p327 = scmp.eq.s32.totalorder %s24, 1
    %p328 = por %p326, %p327
    %p329 = scmp.ne.s32.totalorder %s318, %s319
    %p330 = scmp.eq.s32.totalorder %s24, 0
    %p331 = por %p329, %p330
    %p332 = scmp.ne.s32.totalorder %s318, %s319
    %p333 = scmp.eq.s32.totalorder %s25, 1
    %p334 = por %p332, %p333
    %p336 = scmp.ne.s32.totalorder %s319, %s335
    %p337 = scmp.eq.s32.totalorder %s25, 0
    %p338 = por %p336, %p337
    %s339 = ssub.s32 %s26, %s38
    %p340 = scmp.eq.s32.totalorder %s339, 0
    %s342 = sadd.s32 %s341, 1
    %s343 = scalar_select %p340, %s341, %s342
    %p346 = pneg %p340
    %p347 = scmp.eq.s32.totalorder %s19, 1
    %p348 = por %p346, %p347
    %p349 = scmp.ne.s32.totalorder %s341, %s344
    %p350 = scmp.eq.s32.totalorder %s19, 0
    %p351 = por %p349, %p350
    %p352 = scmp.ne.s32.totalorder %s341, %s344
    %p353 = scmp.eq.s32.totalorder %s24, 1
    %p354 = por %p352, %p353
    %p355 = scmp.ne.s32.totalorder %s344, %s345
    %p356 = scmp.eq.s32.totalorder %s24, 0
    %p357 = por %p355, %p356
    %p358 = scmp.ne.s32.totalorder %s344, %s345
    %p359 = scmp.eq.s32.totalorder %s25, 1
    %p360 = por %p358, %p359
    %p362 = scmp.ne.s32.totalorder %s345, %s361
    %p363 = scmp.eq.s32.totalorder %s25, 0
    %p364 = por %p362, %p363
    %p365 = scmp.le.s32.totalorder 1, %s19
    %p366 = scmp.lt.s32.totalorder %s19, 3
    %p367 = pnand %p365, %p366
    %p368 = pneg %p367
    // Predicated region
    $region9: #{_meta_forward_impl.1} parent=5 // pred_check
      _
    $region10: #{_meta_forward_impl.1} parent=5 // pred_check_branch
      %370 = sbr.rel (%p367) target = $region12
    $region11: #{_meta_forward_impl.1} parent=5 // pred_region
      %s371 = ssub.s32 %s19, 1
      // Predicated region
      $region13: #{_meta_forward_impl.1} parent=11 // pred_check
        %p372 = pneg %p164
      $region14: #{_meta_forward_impl.1} parent=11 // pred_check_branch
        %374 = sbr.rel (%p372) target = $region16
      $region15: #{_meta_forward_impl.1} parent=11 // pred_region
        _
      $region16: #{_meta_forward_impl.1} parent=11 // pred_fallthru
        _
      // Predicated region
      $region17: #{_meta_forward_impl.1} parent=11 // pred_check
        %p375 = pneg %p185
      $region18: #{_meta_forward_impl.1} parent=11 // pred_check_branch
        %377 = sbr.rel (%p375) target = $region20
      $region19: #{_meta_forward_impl.1} parent=11 // pred_region
        _
      $region20: #{_meta_forward_impl.1} parent=11 // pred_fallthru
        _
      // Predicated region
      $region21: #{_meta_forward_impl.1} parent=11 // pred_check
        %p378 = pneg %p206
      $region22: #{_meta_forward_impl.1} parent=11 // pred_check_branch
        %380 = sbr.rel (%p378) target = $region24
      $region23: #{_meta_forward_impl.1} parent=11 // pred_region
        _
      $region24: #{_meta_forward_impl.1} parent=11 // pred_fallthru
        _
      // Predicated region
      $region25: #{_meta_forward_impl.1} parent=11 // pred_check
        %p381 = pneg %p227
      $region26: #{_meta_forward_impl.1} parent=11 // pred_check_branch
        %383 = sbr.rel (%p381) target = $region28
      $region27: #{_meta_forward_impl.1} parent=11 // pred_region
        _
      $region28: #{_meta_forward_impl.1} parent=11 // pred_fallthru
        _
    $region12: #{_meta_forward_impl.1} parent=5 // pred_fallthru
      _
    %p384 = scmp.lt.s32.totalorder %s19, 2
    // Predicated region
    $region29: #{_meta_forward_impl.1} parent=5 // pred_check
      %p385 = pneg %p384
    $region30: #{_meta_forward_impl.1} parent=5 // pred_check_branch
      %387 = sbr.rel (%p385) target = $region32
    $region31: #{_meta_forward_impl.1} parent=5 // pred_region
      // Predicated region
      $region33: #{_meta_forward_impl.1} parent=31 // pred_check
        %p388 = pneg %p53
      $region34: #{_meta_forward_impl.1} parent=31 // pred_check_branch
        %390 = sbr.rel (%p388) target = $region36
      $region35: #{_meta_forward_impl.1} parent=31 // pred_region
        %s391 = sadd.s32 %s26, %s27
        %p392 = scmp.lt.s32.totalorder %s391, 1
        %s393 = scalar_select %p392, %s391, 1
        %s394 = smul.addr %s393, 2
        %s395 = smul.addr %s394, 8
        %s396 = scalar_lea.vmem %s0, %s395
        %s397 = sadd.s32 %s26, %s27
      $region36: #{_meta_forward_impl.1} parent=31 // pred_fallthru
        _
      // Predicated region
      $region37: #{_meta_forward_impl.1} parent=31 // pred_check
        %p398 = pneg %p81
      $region38: #{_meta_forward_impl.1} parent=31 // pred_check_branch
        %400 = sbr.rel (%p398) target = $region40
      $region39: #{_meta_forward_impl.1} parent=31 // pred_region
        %s401 = sadd.s32 %s26, %s27
        %p402 = scmp.lt.s32.totalorder %s401, 1
        %s403 = scalar_select %p402, %s401, 1
        %s404 = smul.addr %s403, 8
        %s405 = scalar_lea.vmem %s1, %s404
        %s406 = sadd.s32 %s26, %s27
      $region40: #{_meta_forward_impl.1} parent=31 // pred_fallthru
        _
      // Predicated region
      $region41: #{_meta_forward_impl.1} parent=31 // pred_check
        %p407 = pneg %p109
      $region42: #{_meta_forward_impl.1} parent=31 // pred_check_branch
        %409 = sbr.rel (%p407) target = $region44
      $region43: #{_meta_forward_impl.1} parent=31 // pred_region
        %s410 = sadd.s32 %s26, %s27
        %p411 = scmp.lt.s32.totalorder %s410, 1
        %s412 = scalar_select %p411, %s410, 1
        %s413 = smul.addr %s412, 2
        %s414 = smul.addr %s413, 8
        %s415 = scalar_lea.vmem %s2, %s414
        %s416 = sadd.s32 %s26, %s27
      $region44: #{_meta_forward_impl.1} parent=31 // pred_fallthru
        _
      // Predicated region
      $region45: #{_meta_forward_impl.1} parent=31 // pred_check
        %p417 = pneg %p137
      $region46: #{_meta_forward_impl.1} parent=31 // pred_check_branch
        %419 = sbr.rel (%p417) target = $region48
      $region47: #{_meta_forward_impl.1} parent=31 // pred_region
        %s420 = sadd.s32 %s26, %s27
        %p421 = scmp.lt.s32.totalorder %s420, 1
        %s422 = scalar_select %p421, %s420, 1
        %s423 = smul.addr %s422, 8
        %s424 = scalar_lea.vmem %s3, %s423
        %s425 = sadd.s32 %s26, %s27
      $region48: #{_meta_forward_impl.1} parent=31 // pred_fallthru
        _
    $region32: #{_meta_forward_impl.1} parent=5 // pred_fallthru
      _
    %p426 = scmp.le.s32.totalorder 1, %s19
    %p427 = scmp.lt.s32.totalorder %s19, 3
    %p428 = pnand %p426, %p427
    %p429 = pneg %p428
    // Predicated region
    $region49: #{_meta_forward_impl.1} parent=5 // pred_check
      _
    $region50: #{_meta_forward_impl.1} parent=5 // pred_check_branch
      %431 = sbr.rel (%p428) target = $region52
    $region51: #{_meta_forward_impl.1} parent=5 // pred_region
      %s432 = ssub.s32 %s19, 1
      %s433 = sadd.s32 %s28, %s29
      %p434 = scmp.lt.s32.totalorder %s433, 1
      %s435 = scalar_select %p434, %s433, 1
      %s436 = smul.addr %s435, 2
      %s437 = smul.addr %s436, 8
      %s438 = scalar_lea.vmem %s0, %s437
      %p439 = pneg %p59
      %p440 = pneg %p56
      %s441 = sadd.s32 %s28, %s29
      %p442 = scmp.lt.s32.totalorder %s441, 1
      %s443 = scalar_select %p442, %s441, 1
      %s444 = smul.addr %s443, 8
      %s445 = scalar_lea.vmem %s1, %s444
      %p446 = pneg %p87
      %p447 = pneg %p84
      %s448 = sadd.s32 %s28, %s29
      %p449 = scmp.lt.s32.totalorder %s448, 1
      %s450 = scalar_select %p449, %s448, 1
      %s451 = smul.addr %s450, 2
      %s452 = smul.addr %s451, 8
      %s453 = scalar_lea.vmem %s2, %s452
      %p454 = pneg %p115
      %p455 = pneg %p112
      %s456 = sadd.s32 %s28, %s29
      %p457 = scmp.lt.s32.totalorder %s456, 1
      %s458 = scalar_select %p457, %s456, 1
      %s459 = smul.addr %s458, 8
      %s460 = scalar_lea.vmem %s3, %s459
      %p461 = pneg %p143
      %p462 = pneg %p140
      %p463 = pneg %p164
      %p464 = pneg %p161
      %p465 = pneg %p185
      %p466 = pneg %p182
      %p467 = pneg %p206
      %p468 = pneg %p203
      %p469 = pneg %p227
      %p470 = pneg %p224
      %p471 = pneg %p253
      %p472 = pneg %p250
      %p473 = scmp.lt.s32.totalorder %s28, 1
      %s474 = scalar_select %p473, %s28, 1
      %s475 = smul.addr %s474, 32
      %s476 = smul.addr %s475, 8
      %s477 = scalar_lea.vmem %s8, %s476
      %p478 = pneg %p279
      %p479 = pneg %p276
      %p480 = scmp.lt.s32.totalorder %s28, 1
      %s481 = scalar_select %p480, %s28, 1
      %s482 = smul.addr %s481, 8
      %s483 = scalar_lea.vmem %s9, %s482
      %p484 = pneg %p305
      %p485 = pneg %p302
      %p486 = scmp.lt.s32.totalorder %s28, 1
      %s487 = scalar_select %p486, %s28, 1
      %s488 = smul.addr %s487, 32
      %s489 = smul.addr %s488, 8
      %s490 = scalar_lea.vmem %s10, %s489
      %p491 = pneg %p331
      %p492 = pneg %p328
      %p493 = scmp.lt.s32.totalorder %s28, 1
      %s494 = scalar_select %p493, %s28, 1
      %s495 = smul.addr %s494, 8
      %s496 = scalar_lea.vmem %s11, %s495
      %p497 = pneg %p357
      %p498 = pneg %p354
      %p499 = scmp.lt.s32.totalorder %s28, 1
      %s500 = scalar_select %p499, %s28, 1
      %s501 = smul.addr %s500, 8
      %s502 = scalar_lea.vmem %s12, %s501
      %s503 = sadd.s32 %s28, %s29
      %p504 = scmp.lt.s32.totalorder %s503, 1
      %s505 = scalar_select %p504, %s503, 1
      %s506 = smul.addr %s505, 2
      %s507 = smul.addr %s506, 8
      %s508 = scalar_lea.vmem %s0, %s507
      %s509 = sadd.s32 %s28, %s29
      %s510 = sadd.s32 %s28, %s29
      %p511 = scmp.lt.s32.totalorder %s510, 1
      %s512 = scalar_select %p511, %s510, 1
      %s513 = smul.addr %s512, 8
      %s514 = scalar_lea.vmem %s1, %s513
      %s515 = sadd.s32 %s28, %s29
      %s516 = sadd.s32 %s28, %s29
      %p517 = scmp.lt.s32.totalorder %s516, 1
      %s518 = scalar_select %p517, %s516, 1
      %s519 = smul.addr %s518, 2
      %s520 = smul.addr %s519, 8
      %s521 = scalar_lea.vmem %s2, %s520
      %s522 = sadd.s32 %s28, %s29
      %s523 = sadd.s32 %s28, %s29
      %p524 = scmp.lt.s32.totalorder %s523, 1
      %s525 = scalar_select %p524, %s523, 1
      %s526 = smul.addr %s525, 8
      %s527 = scalar_lea.vmem %s3, %s526
      %s528 = sadd.s32 %s28, %s29
      %p529 = scmp.lt.s32.totalorder %s28, 1
      %s530 = scalar_select %p529, %s28, 1
      %s531 = smul.addr %s530, 32
      %s532 = smul.addr %s531, 8
      %s533 = scalar_lea.vmem %s8, %s532
      %p534 = scmp.lt.s32.totalorder %s28, 1
      %s535 = scalar_select %p534, %s28, 1
      %s536 = smul.addr %s535, 8
      %s537 = scalar_lea.vmem %s9, %s536
      %p538 = scmp.lt.s32.totalorder %s28, 1
      %s539 = scalar_select %p538, %s28, 1
      %s540 = smul.addr %s539, 32
      %s541 = smul.addr %s540, 8
      %s542 = scalar_lea.vmem %s10, %s541
      %p543 = scmp.lt.s32.totalorder %s28, 1
      %s544 = scalar_select %p543, %s28, 1
      %s545 = smul.addr %s544, 8
      %s546 = scalar_lea.vmem %s11, %s545
      %p547 = scmp.lt.s32.totalorder %s28, 1
      %s548 = scalar_select %p547, %s28, 1
      %s549 = smul.addr %s548, 8
      %s550 = scalar_lea.vmem %s12, %s549
      %v551 = vld [vmem:[%s508] sm:$0xff]
      %v552 = vld [vmem:[%s508 + $0x8] sm:$0xff]
      %v553 = vld [vmem:[%s514] sm:$0xff]
      %v554 = vld [vmem:[%s521] sm:$0xff]
      %v555 = vld [vmem:[%s521 + $0x8] sm:$0xff]
      %v556 = vld [vmem:[%s527] sm:$0xff]
      %v557 = vld [vmem:[%s4] sm:$0xff]
      %v558 = vld [vmem:[%s4 + $0x8] sm:$0xff]
      %v559 = vld [vmem:[%s4 + $0x10] sm:$0xff]
      %v560 = vld [vmem:[%s4 + $0x18] sm:$0xff]
      %v561 = vld [vmem:[%s4 + $0x20] sm:$0xff]
      %v562 = vld [vmem:[%s4 + $0x28] sm:$0xff]
      %v563 = vld [vmem:[%s4 + $0x30] sm:$0xff]
      %v564 = vld [vmem:[%s4 + $0x38] sm:$0xff]
      %v565 = vld [vmem:[%s4 + $0x40] sm:$0xff]
      %v566 = vld [vmem:[%s4 + $0x48] sm:$0xff]
      %v567 = vld [vmem:[%s4 + $0x50] sm:$0xff]
      %v568 = vld [vmem:[%s4 + $0x58] sm:$0xff]
      %v569 = vld [vmem:[%s4 + $0x60] sm:$0xff]
      %v570 = vld [vmem:[%s4 + $0x68] sm:$0xff]
      %v571 = vld [vmem:[%s4 + $0x70] sm:$0xff]
      %v572 = vld [vmem:[%s4 + $0x78] sm:$0xff]
      %v573 = vld [vmem:[%s4 + $0x80] sm:$0xff]
      %v574 = vld [vmem:[%s4 + $0x88] sm:$0xff]
      %v575 = vld [vmem:[%s4 + $0x90] sm:$0xff]
      %v576 = vld [vmem:[%s4 + $0x98] sm:$0xff]
      %v577 = vld [vmem:[%s4 + $0xa0] sm:$0xff]
      %v578 = vld [vmem:[%s4 + $0xa8] sm:$0xff]
      %v579 = vld [vmem:[%s4 + $0xb0] sm:$0xff]
      %v580 = vld [vmem:[%s4 + $0xb8] sm:$0xff]
      %v581 = vld [vmem:[%s4 + $0xc0] sm:$0xff]
      %v582 = vld [vmem:[%s4 + $0xc8] sm:$0xff]
      %v583 = vld [vmem:[%s4 + $0xd0] sm:$0xff]
      %v584 = vld [vmem:[%s4 + $0xd8] sm:$0xff]
      %v585 = vld [vmem:[%s4 + $0xe0] sm:$0xff]
      %v586 = vld [vmem:[%s4 + $0xe8] sm:$0xff]
      %v587 = vld [vmem:[%s4 + $0xf0] sm:$0xff]
      %v588 = vld [vmem:[%s4 + $0xf8] sm:$0xff]
      %v589 = vld [vmem:[%s5] sm:$0x1]
      %v590 = vld [vmem:[%s6] sm:$0xff]
      %v591 = vld [vmem:[%s7] sm:$0x1]
      %v593 = vlaneseq
      %v594 = vshrl.u32 %v593, 7
      %v595 = vsub.s32 0, %v594
      %v596 = vrot.slane %v589, %v595
      %598 = vmatprep.subr.mxu0 0.0
      %599 = vmatpush1.msra.mxu0 %v572
      %600 = vmatprep.subr.mxu0 0.0
      %601 = vmatpush1.msra.mxu0 %v571
      %602 = vmatprep.subr.mxu0 0.0
      %603 = vmatpush1.msra.mxu0 %v570
      %604 = vmatprep.subr.mxu0 0.0
      %605 = vmatpush1.msra.mxu0 %v569
      %606 = vmatprep.subr.mxu0 0.0
      %607 = vmatpush1.msra.mxu0 %v568
      %608 = vmatprep.subr.mxu0 0.0
      %609 = vmatpush1.msra.mxu0 %v567
      %610 = vmatprep.subr.mxu0 0.0
      %611 = vmatpush1.msra.mxu0 %v566
      %612 = vmatprep.subr.mxu0 0.0
      %613 = vmatpush1.msra.mxu0 %v565
      %614 = vmatprep.subr.mxu0 0.0
      %615 = vmatpush1.msra.mxu0 %v564
      %616 = vmatprep.subr.mxu0 0.0
      %617 = vmatpush1.msra.mxu0 %v563
      %618 = vmatprep.subr.mxu0 0.0
      %619 = vmatpush1.msra.mxu0 %v562
      %620 = vmatprep.subr.mxu0 0.0
      %621 = vmatpush1.msra.mxu0 %v561
      %622 = vmatprep.subr.mxu0 0.0
      %623 = vmatpush1.msra.mxu0 %v560
      %624 = vmatprep.subr.mxu0 0.0
      %625 = vmatpush1.msra.mxu0 %v559
      %626 = vmatprep.subr.mxu0 0.0
      %627 = vmatpush1.msra.mxu0 %v558
      %628 = vmatprep.subr.mxu0 0.0
      %629 = vmatpush1.msra.mxu0 %v557
      %630 = vmatprep.subr.mxu0 0.0
      %631 = vmatpush2.msra.mxu0 %v588
      %632 = vmatprep.subr.mxu0 0.0
      %633 = vmatpush2.msra.mxu0 %v587
      %634 = vmatprep.subr.mxu0 0.0
      %635 = vmatpush2.msra.mxu0 %v586
      %636 = vmatprep.subr.mxu0 0.0
      %637 = vmatpush2.msra.mxu0 %v585
      %638 = vmatprep.subr.mxu0 0.0
      %639 = vmatpush2.msra.mxu0 %v584
      %640 = vmatprep.subr.mxu0 0.0
      %641 = vmatpush2.msra.mxu0 %v583
      %642 = vmatprep.subr.mxu0 0.0
      %643 = vmatpush2.msra.mxu0 %v582
      %644 = vmatprep.subr.mxu0 0.0
      %645 = vmatpush2.msra.mxu0 %v581
      %646 = vmatprep.subr.mxu0 0.0
      %647 = vmatpush2.msra.mxu0 %v580
      %648 = vmatprep.subr.mxu0 0.0
      %649 = vmatpush2.msra.mxu0 %v579
      %650 = vmatprep.subr.mxu0 0.0
      %651 = vmatpush2.msra.mxu0 %v578
      %652 = vmatprep.subr.mxu0 0.0
      %653 = vmatpush2.msra.mxu0 %v577
      %654 = vmatprep.subr.mxu0 0.0
      %655 = vmatpush2.msra.mxu0 %v576
      %656 = vmatprep.subr.mxu0 0.0
      %657 = vmatpush2.msra.mxu0 %v575
      %658 = vmatprep.subr.mxu0 0.0
      %659 = vmatpush2.msra.mxu0 %v574
      %660 = vmatprep.subr.mxu0 0.0
      %661 = vmatpush2.msra.mxu0 %v573
      %662 = vmatprep.mubr.f32.mxu0 %v552
      %663 = vmatmul.mubr.f32.gmra.mxu0 %v551
      %v664 = vpop.f32.mrf.mxu0
      %v665 = vadd.f32 %v596, %v664
      %v666 = vpop.f32.mrf.mxu0
      %667 = vdwg.mxu0
      %vm668 = vcmp.gt.f32.partialorder %v665, 0.0
      %v669 = vsel %vm668, 1, 0
      %v670 = vcvt.s32.f32 %v669
      %v671 = vmul.f32 %v665, %v670
      %v673 = vlaneseq
      %v674 = vshrl.u32 %v673, 7
      %v675 = vsub.s32 0, %v674
      %v676 = vrot.slane %v591, %v675
      %678 = vmatprep.subr.mxu0 0.0
      %679 = vmatpush1.xpose.msra.mxu0 0.0
      %680 = vmatprep.subr.mxu0 0.0
      %681 = vmatpush1.xpose.msra.mxu0 0.0
      %682 = vmatprep.subr.mxu0 0.0
      %683 = vmatpush1.xpose.msra.mxu0 0.0
      %684 = vmatprep.subr.mxu0 0.0
      %685 = vmatpush1.xpose.msra.mxu0 0.0
      %686 = vmatprep.subr.mxu0 0.0
      %687 = vmatpush1.xpose.msra.mxu0 0.0
      %688 = vmatprep.subr.mxu0 0.0
      %689 = vmatpush1.xpose.msra.mxu0 0.0
      %690 = vmatprep.subr.mxu0 0.0
      %691 = vmatpush1.xpose.msra.mxu0 0.0
      %692 = vmatprep.subr.mxu0 0.0
      %693 = vmatpush1.xpose.msra.mxu0 0.0
      %694 = vmatprep.subr.mxu0 0.0
      %695 = vmatpush1.xpose.msra.mxu0 0.0
      %696 = vmatprep.subr.mxu0 0.0
      %697 = vmatpush1.xpose.msra.mxu0 0.0
      %698 = vmatprep.subr.mxu0 0.0
      %699 = vmatpush1.xpose.msra.mxu0 0.0
      %700 = vmatprep.subr.mxu0 0.0
      %701 = vmatpush1.xpose.msra.mxu0 0.0
      %702 = vmatprep.subr.mxu0 0.0
      %703 = vmatpush1.xpose.msra.mxu0 0.0
      %704 = vmatprep.subr.mxu0 0.0
      %705 = vmatpush1.xpose.msra.mxu0 0.0
      %706 = vmatprep.subr.mxu0 0.0
      %707 = vmatpush1.xpose.msra.mxu0 0.0
      %708 = vmatprep.subr.mxu0 0.0
      %709 = vmatpush1.xpose.msra.mxu0 %v590
      %710 = vmatprep.subr.mxu0 0.0
      %711 = vmatpush2.xpose.msra.mxu0 0.0
      %712 = vmatprep.subr.mxu0 0.0
      %713 = vmatpush2.xpose.msra.mxu0 0.0
      %714 = vmatprep.subr.mxu0 0.0
      %715 = vmatpush2.xpose.msra.mxu0 0.0
      %716 = vmatprep.subr.mxu0 0.0
      %717 = vmatpush2.xpose.msra.mxu0 0.0
      %718 = vmatprep.subr.mxu0 0.0
      %719 = vmatpush2.xpose.msra.mxu0 0.0
      %720 = vmatprep.subr.mxu0 0.0
      %721 = vmatpush2.xpose.msra.mxu0 0.0
      %722 = vmatprep.subr.mxu0 0.0
      %723 = vmatpush2.xpose.msra.mxu0 0.0
      %724 = vmatprep.subr.mxu0 0.0
      %725 = vmatpush2.xpose.msra.mxu0 0.0
      %726 = vmatprep.subr.mxu0 0.0
      %727 = vmatpush2.xpose.msra.mxu0 0.0
      %728 = vmatprep.subr.mxu0 0.0
      %729 = vmatpush2.xpose.msra.mxu0 0.0
      %730 = vmatprep.subr.mxu0 0.0
      %731 = vmatpush2.xpose.msra.mxu0 0.0
      %732 = vmatprep.subr.mxu0 0.0
      %733 = vmatpush2.xpose.msra.mxu0 0.0
      %734 = vmatprep.subr.mxu0 0.0
      %735 = vmatpush2.xpose.msra.mxu0 0.0
      %736 = vmatprep.subr.mxu0 0.0
      %737 = vmatpush2.xpose.msra.mxu0 0.0
      %738 = vmatprep.subr.mxu0 0.0
      %739 = vmatpush2.xpose.msra.mxu0 0.0
      %740 = vmatprep.subr.mxu0 0.0
      %741 = vmatpush2.xpose.msra.mxu0 0.0
      %742 = vmatprep.mubr.f32.mxu0 0.0
      %743 = vmatmul.mubr.f32.gmra.mxu0 %v671
      %v744 = vpop.f32.mrf.mxu0
      %v745 = vadd.f32 %v676, %v744
      %v746 = vpop.f32.mrf.mxu0
      %747 = vdwg.mxu0
      %vm748 = vcmask 64512
      %v749 = vsel %vm748, %v745, -inf
      %750 = vmax.xlane.f32.xlu0 %v749
      %v751 = vpop.xlane.xlu0 %750
      %v752 = vsub.f32 %v745, %v751
      %v753 = vmul.f32 %v752, 1.442695
      %v754 = vpow.pop %v753
      %v755 = vsel %vm748, %v754, 0.0
      %756 = vadd.xlane.f32.xlu0 %v755
      %v757 = vpop.xlane.xlu0 %756
      %v758 = vrcp.pop %v757
      %v759 = vmul.f32 %v754, %v758
      %v760 = vsub.f32 %v759, %v553
      %v761 = vrcp.pop 8.0
      %v762 = vmul.f32 %v760, %v761
      %763 = vxpose.xlu0.b32.start [1/16] %v762, 128
      %764 = vxpose.xlu0.b32.cont [2/16] 0.0, 128
      %765 = vxpose.xlu0.b32.cont [3/16] 0.0, 128
      %766 = vxpose.xlu0.b32.cont [4/16] 0.0, 128
      %767 = vxpose.xlu0.b32.cont [5/16] 0.0, 128
      %768 = vxpose.xlu0.b32.cont [6/16] 0.0, 128
      %769 = vxpose.xlu0.b32.cont [7/16] 0.0, 128
      %770 = vxpose.xlu0.b32.cont [8/16] 0.0, 128
      %771 = vxpose.xlu0.b32.cont [9/16] 0.0, 128
      %772 = vxpose.xlu0.b32.cont [10/16] 0.0, 128
      %773 = vxpose.xlu0.b32.cont [11/16] 0.0, 128
      %774 = vxpose.xlu0.b32.cont [12/16] 0.0, 128
      %775 = vxpose.xlu0.b32.cont [13/16] 0.0, 128
      %776 = vxpose.xlu0.b32.cont [14/16] 0.0, 128
      %777 = vxpose.xlu0.b32.cont [15/16] 0.0, 128
      %778 = vxpose.xlu0.b32.end [16/16] 0.0, 128
      %v779 = vpop.trf.xlu0
      %v780 = vpop.trf.xlu0
      %v781 = vpop.trf.xlu0
      %v782 = vpop.trf.xlu0
      %v783 = vpop.trf.xlu0
      %v784 = vpop.trf.xlu0
      %v785 = vpop.trf.xlu0
      %v786 = vpop.trf.xlu0
      %v787 = vpop.trf.xlu0
      %v788 = vpop.trf.xlu0
      %v789 = vpop.trf.xlu0
      %v790 = vpop.trf.xlu0
      %v791 = vpop.trf.xlu0
      %v792 = vpop.trf.xlu0
      %v793 = vpop.trf.xlu0
      %v794 = vpop.trf.xlu0
      %v796 = vsel %vm748, %v779, 0
      %798 = vmatprep.subr.mxu0 0.0
      %799 = vmatpush1.msra.mxu0 0.0
      %800 = vmatprep.subr.mxu0 0.0
      %801 = vmatpush1.msra.mxu0 0.0
      %802 = vmatprep.subr.mxu0 0.0
      %803 = vmatpush1.msra.mxu0 0.0
      %804 = vmatprep.subr.mxu0 0.0
      %805 = vmatpush1.msra.mxu0 0.0
      %806 = vmatprep.subr.mxu0 0.0
      %807 = vmatpush1.msra.mxu0 0.0
      %808 = vmatprep.subr.mxu0 0.0
      %809 = vmatpush1.msra.mxu0 0.0
      %810 = vmatprep.subr.mxu0 0.0
      %811 = vmatpush1.msra.mxu0 0.0
      %812 = vmatprep.subr.mxu0 0.0
      %813 = vmatpush1.msra.mxu0 0.0
      %814 = vmatprep.subr.mxu0 0.0
      %815 = vmatpush1.msra.mxu0 0.0
      %816 = vmatprep.subr.mxu0 0.0
      %817 = vmatpush1.msra.mxu0 0.0
      %818 = vmatprep.subr.mxu0 0.0
      %819 = vmatpush1.msra.mxu0 0.0
      %820 = vmatprep.subr.mxu0 0.0
      %821 = vmatpush1.msra.mxu0 0.0
      %822 = vmatprep.subr.mxu0 0.0
      %823 = vmatpush1.msra.mxu0 0.0
      %824 = vmatprep.subr.mxu0 0.0
      %825 = vmatpush1.msra.mxu0 0.0
      %826 = vmatprep.subr.mxu0 0.0
      %827 = vmatpush1.msra.mxu0 0.0
      %828 = vmatprep.subr.mxu0 0.0
      %829 = vmatpush1.msra.mxu0 %v671
      %830 = vmatprep.subr.mxu0 0.0
      %831 = vmatpush2.msra.mxu0 0.0
      %832 = vmatprep.subr.mxu0 0.0
      %833 = vmatpush2.msra.mxu0 0.0
      %834 = vmatprep.subr.mxu0 0.0
      %835 = vmatpush2.msra.mxu0 0.0
      %836 = vmatprep.subr.mxu0 0.0
      %837 = vmatpush2.msra.mxu0 0.0
      %838 = vmatprep.subr.mxu0 0.0
      %839 = vmatpush2.msra.mxu0 0.0
      %840 = vmatprep.subr.mxu0 0.0
      %841 = vmatpush2.msra.mxu0 0.0
      %842 = vmatprep.subr.mxu0 0.0
      %843 = vmatpush2.msra.mxu0 0.0
      %844 = vmatprep.subr.mxu0 0.0
      %845 = vmatpush2.msra.mxu0 0.0
      %846 = vmatprep.subr.mxu0 0.0
      %847 = vmatpush2.msra.mxu0 0.0
      %848 = vmatprep.subr.mxu0 0.0
      %849 = vmatpush2.msra.mxu0 0.0
      %850 = vmatprep.subr.mxu0 0.0
      %851 = vmatpush2.msra.mxu0 0.0
      %852 = vmatprep.subr.mxu0 0.0
      %853 = vmatpush2.msra.mxu0 0.0
      %854 = vmatprep.subr.mxu0 0.0
      %855 = vmatpush2.msra.mxu0 0.0
      %856 = vmatprep.subr.mxu0 0.0
      %857 = vmatpush2.msra.mxu0 0.0
      %858 = vmatprep.subr.mxu0 0.0
      %859 = vmatpush2.msra.mxu0 0.0
      %860 = vmatprep.subr.mxu0 0.0
      %861 = vmatpush2.msra.mxu0 0.0
      %862 = vmatprep.mubr.f32.mxu0 0.0
      %863 = vmatmul.mubr.f32.gmra.mxu0 %v796
      %v864 = vpop.f32.mrf.mxu0
      %v865 = vadd.f32 0.0, %v864
      %v866 = vpop.f32.mrf.mxu0
      %867 = vdwg.mxu0
      %v868 = vsel %vm748, %v762, 0.0
      %v869 = vrot.slane %v868, 4
      %v870 = vadd.f32 %v868, %v869
      %v871 = vrot.slane %v870, 2
      %v872 = vadd.f32 %v870, %v871
      %v873 = vrot.slane %v872, 1
      %v874 = vadd.f32 %v872, %v873
      %v876 = vsel %vm748, %v762, 0
      %878 = vmatprep.subr.mxu0 0.0
      %879 = vmatpush1.msra.mxu0 0.0
      %880 = vmatprep.subr.mxu0 0.0
      %881 = vmatpush1.msra.mxu0 0.0
      %882 = vmatprep.subr.mxu0 0.0
      %883 = vmatpush1.msra.mxu0 0.0
      %884 = vmatprep.subr.mxu0 0.0
      %885 = vmatpush1.msra.mxu0 0.0
      %886 = vmatprep.subr.mxu0 0.0
      %887 = vmatpush1.msra.mxu0 0.0
      %888 = vmatprep.subr.mxu0 0.0
      %889 = vmatpush1.msra.mxu0 0.0
      %890 = vmatprep.subr.mxu0 0.0
      %891 = vmatpush1.msra.mxu0 0.0
      %892 = vmatprep.subr.mxu0 0.0
      %893 = vmatpush1.msra.mxu0 0.0
      %894 = vmatprep.subr.mxu0 0.0
      %895 = vmatpush1.msra.mxu0 0.0
      %896 = vmatprep.subr.mxu0 0.0
      %897 = vmatpush1.msra.mxu0 0.0
      %898 = vmatprep.subr.mxu0 0.0
      %899 = vmatpush1.msra.mxu0 0.0
      %900 = vmatprep.subr.mxu0 0.0
      %901 = vmatpush1.msra.mxu0 0.0
      %902 = vmatprep.subr.mxu0 0.0
      %903 = vmatpush1.msra.mxu0 0.0
      %904 = vmatprep.subr.mxu0 0.0
      %905 = vmatpush1.msra.mxu0 0.0
      %906 = vmatprep.subr.mxu0 0.0
      %907 = vmatpush1.msra.mxu0 0.0
      %908 = vmatprep.subr.mxu0 0.0
      %909 = vmatpush1.msra.mxu0 %v590
      %910 = vmatprep.subr.mxu0 0.0
      %911 = vmatpush2.msra.mxu0 0.0
      %912 = vmatprep.subr.mxu0 0.0
      %913 = vmatpush2.msra.mxu0 0.0
      %914 = vmatprep.subr.mxu0 0.0
      %915 = vmatpush2.msra.mxu0 0.0
      %916 = vmatprep.subr.mxu0 0.0
      %917 = vmatpush2.msra.mxu0 0.0
      %918 = vmatprep.subr.mxu0 0.0
      %919 = vmatpush2.msra.mxu0 0.0
      %920 = vmatprep.subr.mxu0 0.0
      %921 = vmatpush2.msra.mxu0 0.0
      %922 = vmatprep.subr.mxu0 0.0
      %923 = vmatpush2.msra.mxu0 0.0
      %924 = vmatprep.subr.mxu0 0.0
      %925 = vmatpush2.msra.mxu0 0.0
      %926 = vmatprep.subr.mxu0 0.0
      %927 = vmatpush2.msra.mxu0 0.0
      %928 = vmatprep.subr.mxu0 0.0
      %929 = vmatpush2.msra.mxu0 0.0
      %930 = vmatprep.subr.mxu0 0.0
      %931 = vmatpush2.msra.mxu0 0.0
      %932 = vmatprep.subr.mxu0 0.0
      %933 = vmatpush2.msra.mxu0 0.0
      %934 = vmatprep.subr.mxu0 0.0
      %935 = vmatpush2.msra.mxu0 0.0
      %936 = vmatprep.subr.mxu0 0.0
      %937 = vmatpush2.msra.mxu0 0.0
      %938 = vmatprep.subr.mxu0 0.0
      %939 = vmatpush2.msra.mxu0 0.0
      %940 = vmatprep.subr.mxu0 0.0
      %941 = vmatpush2.msra.mxu0 0.0
      %942 = vmatprep.mubr.f32.mxu0 0.0
      %943 = vmatmul.mubr.f32.gmra.mxu0 %v876
      %v944 = vpop.f32.mrf.mxu0
      %v945 = vadd.f32 0.0, %v944
      %v946 = vpop.f32.mrf.mxu0
      %947 = vdwg.mxu0
      %v948 = vmul.f32 %v945, %v670
      %949 = vxpose.xlu0.b32.start [1/16] %v551, 128
      %950 = vxpose.xlu0.b32.cont [2/16] 0.0, 128
      %951 = vxpose.xlu0.b32.cont [3/16] 0.0, 128
      %952 = vxpose.xlu0.b32.cont [4/16] 0.0, 128
      %953 = vxpose.xlu0.b32.cont [5/16] 0.0, 128
      %954 = vxpose.xlu0.b32.cont [6/16] 0.0, 128
      %955 = vxpose.xlu0.b32.cont [7/16] 0.0, 128
      %956 = vxpose.xlu0.b32.cont [8/16] 0.0, 128
      %957 = vxpose.xlu0.b32.cont [9/16] 0.0, 128
      %958 = vxpose.xlu0.b32.cont [10/16] 0.0, 128
      %959 = vxpose.xlu0.b32.cont [11/16] 0.0, 128
      %960 = vxpose.xlu0.b32.cont [12/16] 0.0, 128
      %961 = vxpose.xlu0.b32.cont [13/16] 0.0, 128
      %962 = vxpose.xlu0.b32.cont [14/16] 0.0, 128
      %963 = vxpose.xlu0.b32.cont [15/16] 0.0, 128
      %964 = vxpose.xlu0.b32.end [16/16] 0.0, 128
      %v965 = vpop.trf.xlu0
      %v966 = vpop.trf.xlu0
      %v967 = vpop.trf.xlu0
      %v968 = vpop.trf.xlu0
      %v969 = vpop.trf.xlu0
      %v970 = vpop.trf.xlu0
      %v971 = vpop.trf.xlu0
      %v972 = vpop.trf.xlu0
      %v973 = vpop.trf.xlu0
      %v974 = vpop.trf.xlu0
      %v975 = vpop.trf.xlu0
      %v976 = vpop.trf.xlu0
      %v977 = vpop.trf.xlu0
      %v978 = vpop.trf.xlu0
      %v979 = vpop.trf.xlu0
      %v980 = vpop.trf.xlu0
      %981 = vxpose.xlu0.b32.start [1/16] %v552, 128
      %982 = vxpose.xlu0.b32.cont [2/16] 0.0, 128
      %983 = vxpose.xlu0.b32.cont [3/16] 0.0, 128
      %984 = vxpose.xlu0.b32.cont [4/16] 0.0, 128
      %985 = vxpose.xlu0.b32.cont [5/16] 0.0, 128
      %986 = vxpose.xlu0.b32.cont [6/16] 0.0, 128
      %987 = vxpose.xlu0.b32.cont [7/16] 0.0, 128
      %988 = vxpose.xlu0.b32.cont [8/16] 0.0, 128
      %989 = vxpose.xlu0.b32.cont [9/16] 0.0, 128
      %990 = vxpose.xlu0.b32.cont [10/16] 0.0, 128
      %991 = vxpose.xlu0.b32.cont [11/16] 0.0, 128
      %992 = vxpose.xlu0.b32.cont [12/16] 0.0, 128
      %993 = vxpose.xlu0.b32.cont [13/16] 0.0, 128
      %994 = vxpose.xlu0.b32.cont [14/16] 0.0, 128
      %995 = vxpose.xlu0.b32.cont [15/16] 0.0, 128
      %996 = vxpose.xlu0.b32.end [16/16] 0.0, 128
      %v997 = vpop.trf.xlu0
      %v998 = vpop.trf.xlu0
      %v999 = vpop.trf.xlu0
      %v1000 = vpop.trf.xlu0
      %v1001 = vpop.trf.xlu0
      %v1002 = vpop.trf.xlu0
      %v1003 = vpop.trf.xlu0
      %v1004 = vpop.trf.xlu0
      %v1005 = vpop.trf.xlu0
      %v1006 = vpop.trf.xlu0
      %v1007 = vpop.trf.xlu0
      %v1008 = vpop.trf.xlu0
      %v1009 = vpop.trf.xlu0
      %v1010 = vpop.trf.xlu0
      %v1011 = vpop.trf.xlu0
      %v1012 = vpop.trf.xlu0
      %v1014 = vsel %vm748, %v965, 0
      %v1017 = vsel %vm748, %v966, 0
      %v1020 = vsel %vm748, %v967, 0
      %v1023 = vsel %vm748, %v968, 0
      %v1026 = vsel %vm748, %v969, 0
      %v1029 = vsel %vm748, %v970, 0
      %v1032 = vsel %vm748, %v971, 0
      %v1035 = vsel %vm748, %v972, 0
      %v1038 = vsel %vm748, %v973, 0
      %v1041 = vsel %vm748, %v974, 0
      %v1044 = vsel %vm748, %v975, 0
      %v1047 = vsel %vm748, %v976, 0
      %v1050 = vsel %vm748, %v977, 0
      %v1053 = vsel %vm748, %v978, 0
      %v1056 = vsel %vm748, %v979, 0
      %v1059 = vsel %vm748, %v980, 0
      %v1062 = vsel %vm748, %v997, 0
      %v1065 = vsel %vm748, %v998, 0
      %v1068 = vsel %vm748, %v999, 0
      %v1071 = vsel %vm748, %v1000, 0
      %v1074 = vsel %vm748, %v1001, 0
      %v1077 = vsel %vm748, %v1002, 0
      %v1080 = vsel %vm748, %v1003, 0
      %v1083 = vsel %vm748, %v1004, 0
      %v1086 = vsel %vm748, %v1005, 0
      %v1089 = vsel %vm748, %v1006, 0
      %v1092 = vsel %vm748, %v1007, 0
      %v1095 = vsel %vm748, %v1008, 0
      %v1098 = vsel %vm748, %v1009, 0
      %v1101 = vsel %vm748, %v1010, 0
      %v1104 = vsel %vm748, %v1011, 0
      %v1107 = vsel %vm748, %v1012, 0
      %1109 = vmatprep.subr.mxu0 0.0
      %1110 = vmatpush1.msra.mxu0 0.0
      %1111 = vmatprep.subr.mxu0 0.0
      %1112 = vmatpush1.msra.mxu0 0.0
      %1113 = vmatprep.subr.mxu0 0.0
      %1114 = vmatpush1.msra.mxu0 0.0
      %1115 = vmatprep.subr.mxu0 0.0
      %1116 = vmatpush1.msra.mxu0 0.0
      %1117 = vmatprep.subr.mxu0 0.0
      %1118 = vmatpush1.msra.mxu0 0.0
      %1119 = vmatprep.subr.mxu0 0.0
      %1120 = vmatpush1.msra.mxu0 0.0
      %1121 = vmatprep.subr.mxu0 0.0
      %1122 = vmatpush1.msra.mxu0 0.0
      %1123 = vmatprep.subr.mxu0 0.0
      %1124 = vmatpush1.msra.mxu0 0.0
      %1125 = vmatprep.subr.mxu0 0.0
      %1126 = vmatpush1.msra.mxu0 0.0
      %1127 = vmatprep.subr.mxu0 0.0
      %1128 = vmatpush1.msra.mxu0 0.0
      %1129 = vmatprep.subr.mxu0 0.0
      %1130 = vmatpush1.msra.mxu0 0.0
      %1131 = vmatprep.subr.mxu0 0.0
      %1132 = vmatpush1.msra.mxu0 0.0
      %1133 = vmatprep.subr.mxu0 0.0
      %1134 = vmatpush1.msra.mxu0 0.0
      %1135 = vmatprep.subr.mxu0 0.0
      %1136 = vmatpush1.msra.mxu0 0.0
      %1137 = vmatprep.subr.mxu0 0.0
      %1138 = vmatpush1.msra.mxu0 0.0
      %1139 = vmatprep.subr.mxu0 0.0
      %1140 = vmatpush1.msra.mxu0 %v948
      %1141 = vmatprep.subr.mxu0 0.0
      %1142 = vmatpush2.msra.mxu0 0.0
      %1143 = vmatprep.subr.mxu0 0.0
      %1144 = vmatpush2.msra.mxu0 0.0
      %1145 = vmatprep.subr.mxu0 0.0
      %1146 = vmatpush2.msra.mxu0 0.0
      %1147 = vmatprep.subr.mxu0 0.0
      %1148 = vmatpush2.msra.mxu0 0.0
      %1149 = vmatprep.subr.mxu0 0.0
      %1150 = vmatpush2.msra.mxu0 0.0
      %1151 = vmatprep.subr.mxu0 0.0
      %1152 = vmatpush2.msra.mxu0 0.0
      %1153 = vmatprep.subr.mxu0 0.0
      %1154 = vmatpush2.msra.mxu0 0.0
      %1155 = vmatprep.subr.mxu0 0.0
      %1156 = vmatpush2.msra.mxu0 0.0
      %1157 = vmatprep.subr.mxu0 0.0
      %1158 = vmatpush2.msra.mxu0 0.0
      %1159 = vmatprep.subr.mxu0 0.0
      %1160 = vmatpush2.msra.mxu0 0.0
      %1161 = vmatprep.subr.mxu0 0.0
      %1162 = vmatpush2.msra.mxu0 0.0
      %1163 = vmatprep.subr.mxu0 0.0
      %1164 = vmatpush2.msra.mxu0 0.0
      %1165 = vmatprep.subr.mxu0 0.0
      %1166 = vmatpush2.msra.mxu0 0.0
      %1167 = vmatprep.subr.mxu0 0.0
      %1168 = vmatpush2.msra.mxu0 0.0
      %1169 = vmatprep.subr.mxu0 0.0
      %1170 = vmatpush2.msra.mxu0 0.0
      %1171 = vmatprep.subr.mxu0 0.0
      %1172 = vmatpush2.msra.mxu0 0.0
      %1173 = vmatprep.mubr.f32.mxu0 0.0
      %1174 = vmatmul.mubr.f32.gmra.mxu0 %v1014
      %v1175 = vpop.f32.mrf.mxu0
      %v1176 = vadd.f32 0.0, %v1175
      %v1177 = vpop.f32.mrf.mxu0
      %1178 = vmatprep.mubr.f32.mxu0 0.0
      %1179 = vmatmul.mubr.f32.gmra.mxu0 %v1017
      %v1180 = vpop.f32.mrf.mxu0
      %v1181 = vadd.f32 0.0, %v1180
      %v1182 = vpop.f32.mrf.mxu0
      %1183 = vmatprep.mubr.f32.mxu0 0.0
      %1184 = vmatmul.mubr.f32.gmra.mxu0 %v1020
      %v1185 = vpop.f32.mrf.mxu0
      %v1186 = vadd.f32 0.0, %v1185
      %v1187 = vpop.f32.mrf.mxu0
      %1188 = vmatprep.mubr.f32.mxu0 0.0
      %1189 = vmatmul.mubr.f32.gmra.mxu0 %v1023
      %v1190 = vpop.f32.mrf.mxu0
      %v1191 = vadd.f32 0.0, %v1190
      %v1192 = vpop.f32.mrf.mxu0
      %1193 = vmatprep.mubr.f32.mxu0 0.0
      %1194 = vmatmul.mubr.f32.gmra.mxu0 %v1026
      %v1195 = vpop.f32.mrf.mxu0
      %v1196 = vadd.f32 0.0, %v1195
      %v1197 = vpop.f32.mrf.mxu0
      %1198 = vmatprep.mubr.f32.mxu0 0.0
      %1199 = vmatmul.mubr.f32.gmra.mxu0 %v1029
      %v1200 = vpop.f32.mrf.mxu0
      %v1201 = vadd.f32 0.0, %v1200
      %v1202 = vpop.f32.mrf.mxu0
      %1203 = vmatprep.mubr.f32.mxu0 0.0
      %1204 = vmatmul.mubr.f32.gmra.mxu0 %v1032
      %v1205 = vpop.f32.mrf.mxu0
      %v1206 = vadd.f32 0.0, %v1205
      %v1207 = vpop.f32.mrf.mxu0
      %1208 = vmatprep.mubr.f32.mxu0 0.0
      %1209 = vmatmul.mubr.f32.gmra.mxu0 %v1035
      %v1210 = vpop.f32.mrf.mxu0
      %v1211 = vadd.f32 0.0, %v1210
      %v1212 = vpop.f32.mrf.mxu0
      %1213 = vmatprep.mubr.f32.mxu0 0.0
      %1214 = vmatmul.mubr.f32.gmra.mxu0 %v1038
      %v1215 = vpop.f32.mrf.mxu0
      %v1216 = vadd.f32 0.0, %v1215
      %v1217 = vpop.f32.mrf.mxu0
      %1218 = vmatprep.mubr.f32.mxu0 0.0
      %1219 = vmatmul.mubr.f32.gmra.mxu0 %v1041
      %v1220 = vpop.f32.mrf.mxu0
      %v1221 = vadd.f32 0.0, %v1220
      %v1222 = vpop.f32.mrf.mxu0
      %1223 = vmatprep.mubr.f32.mxu0 0.0
      %1224 = vmatmul.mubr.f32.gmra.mxu0 %v1044
      %v1225 = vpop.f32.mrf.mxu0
      %v1226 = vadd.f32 0.0, %v1225
      %v1227 = vpop.f32.mrf.mxu0
      %1228 = vmatprep.mubr.f32.mxu0 0.0
      %1229 = vmatmul.mubr.f32.gmra.mxu0 %v1047
      %v1230 = vpop.f32.mrf.mxu0
      %v1231 = vadd.f32 0.0, %v1230
      %v1232 = vpop.f32.mrf.mxu0
      %1233 = vmatprep.mubr.f32.mxu0 0.0
      %1234 = vmatmul.mubr.f32.gmra.mxu0 %v1050
      %v1235 = vpop.f32.mrf.mxu0
      %v1236 = vadd.f32 0.0, %v1235
      %v1237 = vpop.f32.mrf.mxu0
      %1238 = vmatprep.mubr.f32.mxu0 0.0
      %1239 = vmatmul.mubr.f32.gmra.mxu0 %v1053
      %v1240 = vpop.f32.mrf.mxu0
      %v1241 = vadd.f32 0.0, %v1240
      %v1242 = vpop.f32.mrf.mxu0
      %1243 = vmatprep.mubr.f32.mxu0 0.0
      %1244 = vmatmul.mubr.f32.gmra.mxu0 %v1056
      %v1245 = vpop.f32.mrf.mxu0
      %v1246 = vadd.f32 0.0, %v1245
      %v1247 = vpop.f32.mrf.mxu0
      %1248 = vmatprep.mubr.f32.mxu0 0.0
      %1249 = vmatmul.mubr.f32.gmra.mxu0 %v1059
      %v1250 = vpop.f32.mrf.mxu0
      %v1251 = vadd.f32 0.0, %v1250
      %v1252 = vpop.f32.mrf.mxu0
      %1253 = vmatprep.mubr.f32.mxu0 0.0
      %1254 = vmatmul.mubr.f32.gmra.mxu0 %v1062
      %v1255 = vpop.f32.mrf.mxu0
      %v1256 = vadd.f32 0.0, %v1255
      %v1257 = vpop.f32.mrf.mxu0
      %1258 = vmatprep.mubr.f32.mxu0 0.0
      %1259 = vmatmul.mubr.f32.gmra.mxu0 %v1065
      %v1260 = vpop.f32.mrf.mxu0
      %v1261 = vadd.f32 0.0, %v1260
      %v1262 = vpop.f32.mrf.mxu0
      %1263 = vmatprep.mubr.f32.mxu0 0.0
      %1264 = vmatmul.mubr.f32.gmra.mxu0 %v1068
      %v1265 = vpop.f32.mrf.mxu0
      %v1266 = vadd.f32 0.0, %v1265
      %v1267 = vpop.f32.mrf.mxu0
      %1268 = vmatprep.mubr.f32.mxu0 0.0
      %1269 = vmatmul.mubr.f32.gmra.mxu0 %v1071
      %v1270 = vpop.f32.mrf.mxu0
      %v1271 = vadd.f32 0.0, %v1270
      %v1272 = vpop.f32.mrf.mxu0
      %1273 = vmatprep.mubr.f32.mxu0 0.0
      %1274 = vmatmul.mubr.f32.gmra.mxu0 %v1074
      %v1275 = vpop.f32.mrf.mxu0
      %v1276 = vadd.f32 0.0, %v1275
      %v1277 = vpop.f32.mrf.mxu0
      %1278 = vmatprep.mubr.f32.mxu0 0.0
      %1279 = vmatmul.mubr.f32.gmra.mxu0 %v1077
      %v1280 = vpop.f32.mrf.mxu0
      %v1281 = vadd.f32 0.0, %v1280
      %v1282 = vpop.f32.mrf.mxu0
      %1283 = vmatprep.mubr.f32.mxu0 0.0
      %1284 = vmatmul.mubr.f32.gmra.mxu0 %v1080
      %v1285 = vpop.f32.mrf.mxu0
      %v1286 = vadd.f32 0.0, %v1285
      %v1287 = vpop.f32.mrf.mxu0
      %1288 = vmatprep.mubr.f32.mxu0 0.0
      %1289 = vmatmul.mubr.f32.gmra.mxu0 %v1083
      %v1290 = vpop.f32.mrf.mxu0
      %v1291 = vadd.f32 0.0, %v1290
      %v1292 = vpop.f32.mrf.mxu0
      %1293 = vmatprep.mubr.f32.mxu0 0.0
      %1294 = vmatmul.mubr.f32.gmra.mxu0 %v1086
      %v1295 = vpop.f32.mrf.mxu0
      %v1296 = vadd.f32 0.0, %v1295
      %v1297 = vpop.f32.mrf.mxu0
      %1298 = vmatprep.mubr.f32.mxu0 0.0
      %1299 = vmatmul.mubr.f32.gmra.mxu0 %v1089
      %v1300 = vpop.f32.mrf.mxu0
      %v1301 = vadd.f32 0.0, %v1300
      %v1302 = vpop.f32.mrf.mxu0
      %1303 = vmatprep.mubr.f32.mxu0 0.0
      %1304 = vmatmul.mubr.f32.gmra.mxu0 %v1092
      %v1305 = vpop.f32.mrf.mxu0
      %v1306 = vadd.f32 0.0, %v1305
      %v1307 = vpop.f32.mrf.mxu0
      %1308 = vmatprep.mubr.f32.mxu0 0.0
      %1309 = vmatmul.mubr.f32.gmra.mxu0 %v1095
      %v1310 = vpop.f32.mrf.mxu0
      %v1311 = vadd.f32 0.0, %v1310
      %v1312 = vpop.f32.mrf.mxu0
      %1313 = vmatprep.mubr.f32.mxu0 0.0
      %1314 = vmatmul.mubr.f32.gmra.mxu0 %v1098
      %v1315 = vpop.f32.mrf.mxu0
      %v1316 = vadd.f32 0.0, %v1315
      %v1317 = vpop.f32.mrf.mxu0
      %1318 = vmatprep.mubr.f32.mxu0 0.0
      %1319 = vmatmul.mubr.f32.gmra.mxu0 %v1101
      %v1320 = vpop.f32.mrf.mxu0
      %v1321 = vadd.f32 0.0, %v1320
      %v1322 = vpop.f32.mrf.mxu0
      %1323 = vmatprep.mubr.f32.mxu0 0.0
      %1324 = vmatmul.mubr.f32.gmra.mxu0 %v1104
      %v1325 = vpop.f32.mrf.mxu0
      %v1326 = vadd.f32 0.0, %v1325
      %v1327 = vpop.f32.mrf.mxu0
      %1328 = vmatprep.mubr.f32.mxu0 0.0
      %1329 = vmatmul.mubr.f32.gmra.mxu0 %v1107
      %v1330 = vpop.f32.mrf.mxu0
      %v1331 = vadd.f32 0.0, %v1330
      %v1332 = vpop.f32.mrf.mxu0
      %1333 = vdwg.mxu0
      %v1334 = vrot.slane %v948, 4
      %v1335 = vadd.f32 %v948, %v1334
      %v1336 = vrot.slane %v1335, 2
      %v1337 = vadd.f32 %v1335, %v1336
      %v1338 = vrot.slane %v1337, 1
      %v1339 = vadd.f32 %v1337, %v1338
      %v1340 = vmul.f32 %v1176, 0.4
      %v1341 = vmul.f32 %v1181, 0.4
      %v1342 = vmul.f32 %v1186, 0.4
      %v1343 = vmul.f32 %v1191, 0.4
      %v1344 = vmul.f32 %v1196, 0.4
      %v1345 = vmul.f32 %v1201, 0.4
      %v1346 = vmul.f32 %v1206, 0.4
      %v1347 = vmul.f32 %v1211, 0.4
      %v1348 = vmul.f32 %v1216, 0.4
      %v1349 = vmul.f32 %v1221, 0.4
      %v1350 = vmul.f32 %v1226, 0.4
      %v1351 = vmul.f32 %v1231, 0.4
      %v1352 = vmul.f32 %v1236, 0.4
      %v1353 = vmul.f32 %v1241, 0.4
      %v1354 = vmul.f32 %v1246, 0.4
      %v1355 = vmul.f32 %v1251, 0.4
      %v1356 = vmul.f32 %v1256, 0.4
      %v1357 = vmul.f32 %v1261, 0.4
      %v1358 = vmul.f32 %v1266, 0.4
      %v1359 = vmul.f32 %v1271, 0.4
      %v1360 = vmul.f32 %v1276, 0.4
      %v1361 = vmul.f32 %v1281, 0.4
      %v1362 = vmul.f32 %v1286, 0.4
      %v1363 = vmul.f32 %v1291, 0.4
      %v1364 = vmul.f32 %v1296, 0.4
      %v1365 = vmul.f32 %v1301, 0.4
      %v1366 = vmul.f32 %v1306, 0.4
      %v1367 = vmul.f32 %v1311, 0.4
      %v1368 = vmul.f32 %v1316, 0.4
      %v1369 = vmul.f32 %v1321, 0.4
      %v1370 = vmul.f32 %v1326, 0.4
      %v1371 = vmul.f32 %v1331, 0.4
      %v1372 = vsub.f32 %v557, %v1340
      %v1373 = vsub.f32 %v558, %v1341
      %v1374 = vsub.f32 %v559, %v1342
      %v1375 = vsub.f32 %v560, %v1343
      %v1376 = vsub.f32 %v561, %v1344
      %v1377 = vsub.f32 %v562, %v1345
      %v1378 = vsub.f32 %v563, %v1346
      %v1379 = vsub.f32 %v564, %v1347
      %v1380 = vsub.f32 %v565, %v1348
      %v1381 = vsub.f32 %v566, %v1349
      %v1382 = vsub.f32 %v567, %v1350
      %v1383 = vsub.f32 %v568, %v1351
      %v1384 = vsub.f32 %v569, %v1352
      %v1385 = vsub.f32 %v570, %v1353
      %v1386 = vsub.f32 %v571, %v1354
      %v1387 = vsub.f32 %v572, %v1355
      %v1388 = vsub.f32 %v573, %v1356
      %v1389 = vsub.f32 %v574, %v1357
      %v1390 = vsub.f32 %v575, %v1358
      %v1391 = vsub.f32 %v576, %v1359
      %v1392 = vsub.f32 %v577, %v1360
      %v1393 = vsub.f32 %v578, %v1361
      %v1394 = vsub.f32 %v579, %v1362
      %v1395 = vsub.f32 %v580, %v1363
      %v1396 = vsub.f32 %v581, %v1364
      %v1397 = vsub.f32 %v582, %v1365
      %v1398 = vsub.f32 %v583, %v1366
      %v1399 = vsub.f32 %v584, %v1367
      %v1400 = vsub.f32 %v585, %v1368
      %v1401 = vsub.f32 %v586, %v1369
      %v1402 = vsub.f32 %v587, %v1370
      %v1403 = vsub.f32 %v588, %v1371
      %v1404 = vmul.f32 %v1339, 0.4
      %v1405 = vsub.f32 %v589, %v1404
      %v1406 = vmul.f32 %v865, 0.4
      %v1407 = vsub.f32 %v590, %v1406
      %v1408 = vmul.f32 %v874, 0.4
      %v1409 = vsub.f32 %v591, %v1408
      %v1411 = vlaneseq
      %v1412 = vshrl.u32 %v1411, 7
      %v1413 = vsub.s32 0, %v1412
      %v1414 = vrot.slane %v1405, %v1413
      %1416 = vmatprep.subr.mxu0 0.0
      %1417 = vmatpush1.msra.mxu0 %v1387
      %1418 = vmatprep.subr.mxu0 0.0
      %1419 = vmatpush1.msra.mxu0 %v1386
      %1420 = vmatprep.subr.mxu0 0.0
      %1421 = vmatpush1.msra.mxu0 %v1385
      %1422 = vmatprep.subr.mxu0 0.0
      %1423 = vmatpush1.msra.mxu0 %v1384
      %1424 = vmatprep.subr.mxu0 0.0
      %1425 = vmatpush1.msra.mxu0 %v1383
      %1426 = vmatprep.subr.mxu0 0.0
      %1427 = vmatpush1.msra.mxu0 %v1382
      %1428 = vmatprep.subr.mxu0 0.0
      %1429 = vmatpush1.msra.mxu0 %v1381
      %1430 = vmatprep.subr.mxu0 0.0
      %1431 = vmatpush1.msra.mxu0 %v1380
      %1432 = vmatprep.subr.mxu0 0.0
      %1433 = vmatpush1.msra.mxu0 %v1379
      %1434 = vmatprep.subr.mxu0 0.0
      %1435 = vmatpush1.msra.mxu0 %v1378
      %1436 = vmatprep.subr.mxu0 0.0
      %1437 = vmatpush1.msra.mxu0 %v1377
      %1438 = vmatprep.subr.mxu0 0.0
      %1439 = vmatpush1.msra.mxu0 %v1376
      %1440 = vmatprep.subr.mxu0 0.0
      %1441 = vmatpush1.msra.mxu0 %v1375
      %1442 = vmatprep.subr.mxu0 0.0
      %1443 = vmatpush1.msra.mxu0 %v1374
      %1444 = vmatprep.subr.mxu0 0.0
      %1445 = vmatpush1.msra.mxu0 %v1373
      %1446 = vmatprep.subr.mxu0 0.0
      %1447 = vmatpush1.msra.mxu0 %v1372
      %1448 = vmatprep.subr.mxu0 0.0
      %1449 = vmatpush2.msra.mxu0 %v1403
      %1450 = vmatprep.subr.mxu0 0.0
      %1451 = vmatpush2.msra.mxu0 %v1402
      %1452 = vmatprep.subr.mxu0 0.0
      %1453 = vmatpush2.msra.mxu0 %v1401
      %1454 = vmatprep.subr.mxu0 0.0
      %1455 = vmatpush2.msra.mxu0 %v1400
      %1456 = vmatprep.subr.mxu0 0.0
      %1457 = vmatpush2.msra.mxu0 %v1399
      %1458 = vmatprep.subr.mxu0 0.0
      %1459 = vmatpush2.msra.mxu0 %v1398
      %1460 = vmatprep.subr.mxu0 0.0
      %1461 = vmatpush2.msra.mxu0 %v1397
      %1462 = vmatprep.subr.mxu0 0.0
      %1463 = vmatpush2.msra.mxu0 %v1396
      %1464 = vmatprep.subr.mxu0 0.0
      %1465 = vmatpush2.msra.mxu0 %v1395
      %1466 = vmatprep.subr.mxu0 0.0
      %1467 = vmatpush2.msra.mxu0 %v1394
      %1468 = vmatprep.subr.mxu0 0.0
      %1469 = vmatpush2.msra.mxu0 %v1393
      %1470 = vmatprep.subr.mxu0 0.0
      %1471 = vmatpush2.msra.mxu0 %v1392
      %1472 = vmatprep.subr.mxu0 0.0
      %1473 = vmatpush2.msra.mxu0 %v1391
      %1474 = vmatprep.subr.mxu0 0.0
      %1475 = vmatpush2.msra.mxu0 %v1390
      %1476 = vmatprep.subr.mxu0 0.0
      %1477 = vmatpush2.msra.mxu0 %v1389
      %1478 = vmatprep.subr.mxu0 0.0
      %1479 = vmatpush2.msra.mxu0 %v1388
      %1480 = vmatprep.mubr.f32.mxu0 %v552
      %1481 = vmatmul.mubr.f32.gmra.mxu0 %v551
      %v1482 = vpop.f32.mrf.mxu0
      %v1483 = vadd.f32 %v1414, %v1482
      %v1484 = vpop.f32.mrf.mxu0
      %1485 = vdwg.mxu0
      %vm1486 = vcmp.gt.f32.partialorder %v1483, 0.0
      %v1487 = vsel %vm1486, 1, 0
      %v1488 = vcvt.s32.f32 %v1487
      %v1489 = vmul.f32 %v1483, %v1488
      %v1491 = vlaneseq
      %v1492 = vshrl.u32 %v1491, 7
      %v1493 = vsub.s32 0, %v1492
      %v1494 = vrot.slane %v1409, %v1493
      %1496 = vmatprep.subr.mxu0 0.0
      %1497 = vmatpush1.xpose.msra.mxu0 0.0
      %1498 = vmatprep.subr.mxu0 0.0
      %1499 = vmatpush1.xpose.msra.mxu0 0.0
      %1500 = vmatprep.subr.mxu0 0.0
      %1501 = vmatpush1.xpose.msra.mxu0 0.0
      %1502 = vmatprep.subr.mxu0 0.0
      %1503 = vmatpush1.xpose.msra.mxu0 0.0
      %1504 = vmatprep.subr.mxu0 0.0
      %1505 = vmatpush1.xpose.msra.mxu0 0.0
      %1506 = vmatprep.subr.mxu0 0.0
      %1507 = vmatpush1.xpose.msra.mxu0 0.0
      %1508 = vmatprep.subr.mxu0 0.0
      %1509 = vmatpush1.xpose.msra.mxu0 0.0
      %1510 = vmatprep.subr.mxu0 0.0
      %1511 = vmatpush1.xpose.msra.mxu0 0.0
      %1512 = vmatprep.subr.mxu0 0.0
      %1513 = vmatpush1.xpose.msra.mxu0 0.0
      %1514 = vmatprep.subr.mxu0 0.0
      %1515 = vmatpush1.xpose.msra.mxu0 0.0
      %1516 = vmatprep.subr.mxu0 0.0
      %1517 = vmatpush1.xpose.msra.mxu0 0.0
      %1518 = vmatprep.subr.mxu0 0.0
      %1519 = vmatpush1.xpose.msra.mxu0 0.0
      %1520 = vmatprep.subr.mxu0 0.0
      %1521 = vmatpush1.xpose.msra.mxu0 0.0
      %1522 = vmatprep.subr.mxu0 0.0
      %1523 = vmatpush1.xpose.msra.mxu0 0.0
      %1524 = vmatprep.subr.mxu0 0.0
      %1525 = vmatpush1.xpose.msra.mxu0 0.0
      %1526 = vmatprep.subr.mxu0 0.0
      %1527 = vmatpush1.xpose.msra.mxu0 %v1407
      %1528 = vmatprep.subr.mxu0 0.0
      %1529 = vmatpush2.xpose.msra.mxu0 0.0
      %1530 = vmatprep.subr.mxu0 0.0
      %1531 = vmatpush2.xpose.msra.mxu0 0.0
      %1532 = vmatprep.subr.mxu0 0.0
      %1533 = vmatpush2.xpose.msra.mxu0 0.0
      %1534 = vmatprep.subr.mxu0 0.0
      %1535 = vmatpush2.xpose.msra.mxu0 0.0
      %1536 = vmatprep.subr.mxu0 0.0
      %1537 = vmatpush2.xpose.msra.mxu0 0.0
      %1538 = vmatprep.subr.mxu0 0.0
      %1539 = vmatpush2.xpose.msra.mxu0 0.0
      %1540 = vmatprep.subr.mxu0 0.0
      %1541 = vmatpush2.xpose.msra.mxu0 0.0
      %1542 = vmatprep.subr.mxu0 0.0
      %1543 = vmatpush2.xpose.msra.mxu0 0.0
      %1544 = vmatprep.subr.mxu0 0.0
      %1545 = vmatpush2.xpose.msra.mxu0 0.0
      %1546 = vmatprep.subr.mxu0 0.0
      %1547 = vmatpush2.xpose.msra.mxu0 0.0
      %1548 = vmatprep.subr.mxu0 0.0
      %1549 = vmatpush2.xpose.msra.mxu0 0.0
      %1550 = vmatprep.subr.mxu0 0.0
      %1551 = vmatpush2.xpose.msra.mxu0 0.0
      %1552 = vmatprep.subr.mxu0 0.0
      %1553 = vmatpush2.xpose.msra.mxu0 0.0
      %1554 = vmatprep.subr.mxu0 0.0
      %1555 = vmatpush2.xpose.msra.mxu0 0.0
      %1556 = vmatprep.subr.mxu0 0.0
      %1557 = vmatpush2.xpose.msra.mxu0 0.0
      %1558 = vmatprep.subr.mxu0 0.0
      %1559 = vmatpush2.xpose.msra.mxu0 0.0
      %1560 = vmatprep.mubr.f32.mxu0 0.0
      %1561 = vmatmul.mubr.f32.gmra.mxu0 %v1489
      %v1562 = vpop.f32.mrf.mxu0
      %v1563 = vadd.f32 %v1494, %v1562
      %v1564 = vpop.f32.mrf.mxu0
      %1565 = vdwg.mxu0
      %v1566 = vsel %vm748, %v1563, -inf
      %1567 = vmax.xlane.f32.xlu0 %v1566
      %v1568 = vpop.xlane.xlu0 %1567
      %v1569 = vsub.f32 %v1563, %v1568
      %v1570 = vmul.f32 %v1569, 1.442695
      %v1571 = vpow.pop %v1570
      %v1572 = vsel %vm748, %v1571, 0.0
      %1573 = vadd.xlane.f32.xlu0 %v1572
      %v1574 = vpop.xlane.xlu0 %1573
      %v1575 = vrcp.pop %v1574
      %v1576 = vmul.f32 %v1571, %v1575
      %v1577 = vsub.f32 %v1576, %v553
      %v1578 = vmul.f32 %v1577, %v761
      %1579 = vxpose.xlu0.b32.start [1/16] %v1578, 128
      %1580 = vxpose.xlu0.b32.cont [2/16] 0.0, 128
      %1581 = vxpose.xlu0.b32.cont [3/16] 0.0, 128
      %1582 = vxpose.xlu0.b32.cont [4/16] 0.0, 128
      %1583 = vxpose.xlu0.b32.cont [5/16] 0.0, 128
      %1584 = vxpose.xlu0.b32.cont [6/16] 0.0, 128
      %1585 = vxpose.xlu0.b32.cont [7/16] 0.0, 128
      %1586 = vxpose.xlu0.b32.cont [8/16] 0.0, 128
      %1587 = vxpose.xlu0.b32.cont [9/16] 0.0, 128
      %1588 = vxpose.xlu0.b32.cont [10/16] 0.0, 128
      %1589 = vxpose.xlu0.b32.cont [11/16] 0.0, 128
      %1590 = vxpose.xlu0.b32.cont [12/16] 0.0, 128
      %1591 = vxpose.xlu0.b32.cont [13/16] 0.0, 128
      %1592 = vxpose.xlu0.b32.cont [14/16] 0.0, 128
      %1593 = vxpose.xlu0.b32.cont [15/16] 0.0, 128
      %1594 = vxpose.xlu0.b32.end [16/16] 0.0, 128
      %v1595 = vpop.trf.xlu0
      %v1596 = vpop.trf.xlu0
      %v1597 = vpop.trf.xlu0
      %v1598 = vpop.trf.xlu0
      %v1599 = vpop.trf.xlu0
      %v1600 = vpop.trf.xlu0
      %v1601 = vpop.trf.xlu0
      %v1602 = vpop.trf.xlu0
      %v1603 = vpop.trf.xlu0
      %v1604 = vpop.trf.xlu0
      %v1605 = vpop.trf.xlu0
      %v1606 = vpop.trf.xlu0
      %v1607 = vpop.trf.xlu0
      %v1608 = vpop.trf.xlu0
      %v1609 = vpop.trf.xlu0
      %v1610 = vpop.trf.xlu0
      %v1612 = vsel %vm748, %v1595, 0
      %1614 = vmatprep.subr.mxu0 0.0
      %1615 = vmatpush1.msra.mxu0 0.0
      %1616 = vmatprep.subr.mxu0 0.0
      %1617 = vmatpush1.msra.mxu0 0.0
      %1618 = vmatprep.subr.mxu0 0.0
      %1619 = vmatpush1.msra.mxu0 0.0
      %1620 = vmatprep.subr.mxu0 0.0
      %1621 = vmatpush1.msra.mxu0 0.0
      %1622 = vmatprep.subr.mxu0 0.0
      %1623 = vmatpush1.msra.mxu0 0.0
      %1624 = vmatprep.subr.mxu0 0.0
      %1625 = vmatpush1.msra.mxu0 0.0
      %1626 = vmatprep.subr.mxu0 0.0
      %1627 = vmatpush1.msra.mxu0 0.0
      %1628 = vmatprep.subr.mxu0 0.0
      %1629 = vmatpush1.msra.mxu0 0.0
      %1630 = vmatprep.subr.mxu0 0.0
      %1631 = vmatpush1.msra.mxu0 0.0
      %1632 = vmatprep.subr.mxu0 0.0
      %1633 = vmatpush1.msra.mxu0 0.0
      %1634 = vmatprep.subr.mxu0 0.0
      %1635 = vmatpush1.msra.mxu0 0.0
      %1636 = vmatprep.subr.mxu0 0.0
      %1637 = vmatpush1.msra.mxu0 0.0
      %1638 = vmatprep.subr.mxu0 0.0
      %1639 = vmatpush1.msra.mxu0 0.0
      %1640 = vmatprep.subr.mxu0 0.0
      %1641 = vmatpush1.msra.mxu0 0.0
      %1642 = vmatprep.subr.mxu0 0.0
      %1643 = vmatpush1.msra.mxu0 0.0
      %1644 = vmatprep.subr.mxu0 0.0
      %1645 = vmatpush1.msra.mxu0 %v1489
      %1646 = vmatprep.subr.mxu0 0.0
      %1647 = vmatpush2.msra.mxu0 0.0
      %1648 = vmatprep.subr.mxu0 0.0
      %1649 = vmatpush2.msra.mxu0 0.0
      %1650 = vmatprep.subr.mxu0 0.0
      %1651 = vmatpush2.msra.mxu0 0.0
      %1652 = vmatprep.subr.mxu0 0.0
      %1653 = vmatpush2.msra.mxu0 0.0
      %1654 = vmatprep.subr.mxu0 0.0
      %1655 = vmatpush2.msra.mxu0 0.0
      %1656 = vmatprep.subr.mxu0 0.0
      %1657 = vmatpush2.msra.mxu0 0.0
      %1658 = vmatprep.subr.mxu0 0.0
      %1659 = vmatpush2.msra.mxu0 0.0
      %1660 = vmatprep.subr.mxu0 0.0
      %1661 = vmatpush2.msra.mxu0 0.0
      %1662 = vmatprep.subr.mxu0 0.0
      %1663 = vmatpush2.msra.mxu0 0.0
      %1664 = vmatprep.subr.mxu0 0.0
      %1665 = vmatpush2.msra.mxu0 0.0
      %1666 = vmatprep.subr.mxu0 0.0
      %1667 = vmatpush2.msra.mxu0 0.0
      %1668 = vmatprep.subr.mxu0 0.0
      %1669 = vmatpush2.msra.mxu0 0.0
      %1670 = vmatprep.subr.mxu0 0.0
      %1671 = vmatpush2.msra.mxu0 0.0
      %1672 = vmatprep.subr.mxu0 0.0
      %1673 = vmatpush2.msra.mxu0 0.0
      %1674 = vmatprep.subr.mxu0 0.0
      %1675 = vmatpush2.msra.mxu0 0.0
      %1676 = vmatprep.subr.mxu0 0.0
      %1677 = vmatpush2.msra.mxu0 0.0
      %1678 = vmatprep.mubr.f32.mxu0 0.0
      %1679 = vmatmul.mubr.f32.gmra.mxu0 %v1612
      %v1680 = vpop.f32.mrf.mxu0
      %v1681 = vadd.f32 0.0, %v1680
      %v1682 = vpop.f32.mrf.mxu0
      %1683 = vdwg.mxu0
      %v1684 = vsel %vm748, %v1578, 0.0
      %v1685 = vrot.slane %v1684, 4
      %v1686 = vadd.f32 %v1684, %v1685
      %v1687 = vrot.slane %v1686, 2
      %v1688 = vadd.f32 %v1686, %v1687
      %v1689 = vrot.slane %v1688, 1
      %v1690 = vadd.f32 %v1688, %v1689
      %v1692 = vsel %vm748, %v1578, 0
      %1694 = vmatprep.subr.mxu0 0.0
      %1695 = vmatpush1.msra.mxu0 0.0
      %1696 = vmatprep.subr.mxu0 0.0
      %1697 = vmatpush1.msra.mxu0 0.0
      %1698 = vmatprep.subr.mxu0 0.0
      %1699 = vmatpush1.msra.mxu0 0.0
      %1700 = vmatprep.subr.mxu0 0.0
      %1701 = vmatpush1.msra.mxu0 0.0
      %1702 = vmatprep.subr.mxu0 0.0
      %1703 = vmatpush1.msra.mxu0 0.0
      %1704 = vmatprep.subr.mxu0 0.0
      %1705 = vmatpush1.msra.mxu0 0.0
      %1706 = vmatprep.subr.mxu0 0.0
      %1707 = vmatpush1.msra.mxu0 0.0
      %1708 = vmatprep.subr.mxu0 0.0
      %1709 = vmatpush1.msra.mxu0 0.0
      %1710 = vmatprep.subr.mxu0 0.0
      %1711 = vmatpush1.msra.mxu0 0.0
      %1712 = vmatprep.subr.mxu0 0.0
      %1713 = vmatpush1.msra.mxu0 0.0
      %1714 = vmatprep.subr.mxu0 0.0
      %1715 = vmatpush1.msra.mxu0 0.0
      %1716 = vmatprep.subr.mxu0 0.0
      %1717 = vmatpush1.msra.mxu0 0.0
      %1718 = vmatprep.subr.mxu0 0.0
      %1719 = vmatpush1.msra.mxu0 0.0
      %1720 = vmatprep.subr.mxu0 0.0
      %1721 = vmatpush1.msra.mxu0 0.0
      %1722 = vmatprep.subr.mxu0 0.0
      %1723 = vmatpush1.msra.mxu0 0.0
      %1724 = vmatprep.subr.mxu0 0.0
      %1725 = vmatpush1.msra.mxu0 %v1407
      %1726 = vmatprep.subr.mxu0 0.0
      %1727 = vmatpush2.msra.mxu0 0.0
      %1728 = vmatprep.subr.mxu0 0.0
      %1729 = vmatpush2.msra.mxu0 0.0
      %1730 = vmatprep.subr.mxu0 0.0
      %1731 = vmatpush2.msra.mxu0 0.0
      %1732 = vmatprep.subr.mxu0 0.0
      %1733 = vmatpush2.msra.mxu0 0.0
      %1734 = vmatprep.subr.mxu0 0.0
      %1735 = vmatpush2.msra.mxu0 0.0
      %1736 = vmatprep.subr.mxu0 0.0
      %1737 = vmatpush2.msra.mxu0 0.0
      %1738 = vmatprep.subr.mxu0 0.0
      %1739 = vmatpush2.msra.mxu0 0.0
      %1740 = vmatprep.subr.mxu0 0.0
      %1741 = vmatpush2.msra.mxu0 0.0
      %1742 = vmatprep.subr.mxu0 0.0
      %1743 = vmatpush2.msra.mxu0 0.0
      %1744 = vmatprep.subr.mxu0 0.0
      %1745 = vmatpush2.msra.mxu0 0.0
      %1746 = vmatprep.subr.mxu0 0.0
      %1747 = vmatpush2.msra.mxu0 0.0
      %1748 = vmatprep.subr.mxu0 0.0
      %1749 = vmatpush2.msra.mxu0 0.0
      %1750 = vmatprep.subr.mxu0 0.0
      %1751 = vmatpush2.msra.mxu0 0.0
      %1752 = vmatprep.subr.mxu0 0.0
      %1753 = vmatpush2.msra.mxu0 0.0
      %1754 = vmatprep.subr.mxu0 0.0
      %1755 = vmatpush2.msra.mxu0 0.0
      %1756 = vmatprep.subr.mxu0 0.0
      %1757 = vmatpush2.msra.mxu0 0.0
      %1758 = vmatprep.mubr.f32.mxu0 0.0
      %1759 = vmatmul.mubr.f32.gmra.mxu0 %v1692
      %v1760 = vpop.f32.mrf.mxu0
      %v1761 = vadd.f32 0.0, %v1760
      %v1762 = vpop.f32.mrf.mxu0
      %1763 = vdwg.mxu0
      %v1764 = vmul.f32 %v1761, %v1488
      %1765 = vmatprep.subr.mxu0 0.0
      %1766 = vmatpush1.msra.mxu0 0.0
      %1767 = vmatprep.subr.mxu0 0.0
      %1768 = vmatpush1.msra.mxu0 0.0
      %1769 = vmatprep.subr.mxu0 0.0
      %1770 = vmatpush1.msra.mxu0 0.0
      %1771 = vmatprep.subr.mxu0 0.0
      %1772 = vmatpush1.msra.mxu0 0.0
      %1773 = vmatprep.subr.mxu0 0.0
      %1774 = vmatpush1.msra.mxu0 0.0
      %1775 = vmatprep.subr.mxu0 0.0
      %1776 = vmatpush1.msra.mxu0 0.0
      %1777 = vmatprep.subr.mxu0 0.0
      %1778 = vmatpush1.msra.mxu0 0.0
      %1779 = vmatprep.subr.mxu0 0.0
      %1780 = vmatpush1.msra.mxu0 0.0
      %1781 = vmatprep.subr.mxu0 0.0
      %1782 = vmatpush1.msra.mxu0 0.0
      %1783 = vmatprep.subr.mxu0 0.0
      %1784 = vmatpush1.msra.mxu0 0.0
      %1785 = vmatprep.subr.mxu0 0.0
      %1786 = vmatpush1.msra.mxu0 0.0
      %1787 = vmatprep.subr.mxu0 0.0
      %1788 = vmatpush1.msra.mxu0 0.0
      %1789 = vmatprep.subr.mxu0 0.0
      %1790 = vmatpush1.msra.mxu0 0.0
      %1791 = vmatprep.subr.mxu0 0.0
      %1792 = vmatpush1.msra.mxu0 0.0
      %1793 = vmatprep.subr.mxu0 0.0
      %1794 = vmatpush1.msra.mxu0 0.0
      %1795 = vmatprep.subr.mxu0 0.0
      %1796 = vmatpush1.msra.mxu0 %v1764
      %1797 = vmatprep.subr.mxu0 0.0
      %1798 = vmatpush2.msra.mxu0 0.0
      %1799 = vmatprep.subr.mxu0 0.0
      %1800 = vmatpush2.msra.mxu0 0.0
      %1801 = vmatprep.subr.mxu0 0.0
      %1802 = vmatpush2.msra.mxu0 0.0
      %1803 = vmatprep.subr.mxu0 0.0
      %1804 = vmatpush2.msra.mxu0 0.0
      %1805 = vmatprep.subr.mxu0 0.0
      %1806 = vmatpush2.msra.mxu0 0.0
      %1807 = vmatprep.subr.mxu0 0.0
      %1808 = vmatpush2.msra.mxu0 0.0
      %1809 = vmatprep.subr.mxu0 0.0
      %1810 = vmatpush2.msra.mxu0 0.0
      %1811 = vmatprep.subr.mxu0 0.0
      %1812 = vmatpush2.msra.mxu0 0.0
      %1813 = vmatprep.subr.mxu0 0.0
      %1814 = vmatpush2.msra.mxu0 0.0
      %1815 = vmatprep.subr.mxu0 0.0
      %1816 = vmatpush2.msra.mxu0 0.0
      %1817 = vmatprep.subr.mxu0 0.0
      %1818 = vmatpush2.msra.mxu0 0.0
      %1819 = vmatprep.subr.mxu0 0.0
      %1820 = vmatpush2.msra.mxu0 0.0
      %1821 = vmatprep.subr.mxu0 0.0
      %1822 = vmatpush2.msra.mxu0 0.0
      %1823 = vmatprep.subr.mxu0 0.0
      %1824 = vmatpush2.msra.mxu0 0.0
      %1825 = vmatprep.subr.mxu0 0.0
      %1826 = vmatpush2.msra.mxu0 0.0
      %1827 = vmatprep.subr.mxu0 0.0
      %1828 = vmatpush2.msra.mxu0 0.0
      %1829 = vmatprep.mubr.f32.mxu0 0.0
      %1830 = vmatmul.mubr.f32.gmra.mxu0 %v1014
      %v1831 = vpop.f32.mrf.mxu0
      %v1832 = vadd.f32 0.0, %v1831
      %v1833 = vpop.f32.mrf.mxu0
      %1834 = vmatprep.mubr.f32.mxu0 0.0
      %1835 = vmatmul.mubr.f32.gmra.mxu0 %v1017
      %v1836 = vpop.f32.mrf.mxu0
      %v1837 = vadd.f32 0.0, %v1836
      %v1838 = vpop.f32.mrf.mxu0
      %1839 = vmatprep.mubr.f32.mxu0 0.0
      %1840 = vmatmul.mubr.f32.gmra.mxu0 %v1020
      %v1841 = vpop.f32.mrf.mxu0
      %v1842 = vadd.f32 0.0, %v1841
      %v1843 = vpop.f32.mrf.mxu0
      %1844 = vmatprep.mubr.f32.mxu0 0.0
      %1845 = vmatmul.mubr.f32.gmra.mxu0 %v1023
      %v1846 = vpop.f32.mrf.mxu0
      %v1847 = vadd.f32 0.0, %v1846
      %v1848 = vpop.f32.mrf.mxu0
      %1849 = vmatprep.mubr.f32.mxu0 0.0
      %1850 = vmatmul.mubr.f32.gmra.mxu0 %v1026
      %v1851 = vpop.f32.mrf.mxu0
      %v1852 = vadd.f32 0.0, %v1851
      %v1853 = vpop.f32.mrf.mxu0
      %1854 = vmatprep.mubr.f32.mxu0 0.0
      %1855 = vmatmul.mubr.f32.gmra.mxu0 %v1029
      %v1856 = vpop.f32.mrf.mxu0
      %v1857 = vadd.f32 0.0, %v1856
      %v1858 = vpop.f32.mrf.mxu0
      %1859 = vmatprep.mubr.f32.mxu0 0.0
      %1860 = vmatmul.mubr.f32.gmra.mxu0 %v1032
      %v1861 = vpop.f32.mrf.mxu0
      %v1862 = vadd.f32 0.0, %v1861
      %v1863 = vpop.f32.mrf.mxu0
      %1864 = vmatprep.mubr.f32.mxu0 0.0
      %1865 = vmatmul.mubr.f32.gmra.mxu0 %v1035
      %v1866 = vpop.f32.mrf.mxu0
      %v1867 = vadd.f32 0.0, %v1866
      %v1868 = vpop.f32.mrf.mxu0
      %1869 = vmatprep.mubr.f32.mxu0 0.0
      %1870 = vmatmul.mubr.f32.gmra.mxu0 %v1038
      %v1871 = vpop.f32.mrf.mxu0
      %v1872 = vadd.f32 0.0, %v1871
      %v1873 = vpop.f32.mrf.mxu0
      %1874 = vmatprep.mubr.f32.mxu0 0.0
      %1875 = vmatmul.mubr.f32.gmra.mxu0 %v1041
      %v1876 = vpop.f32.mrf.mxu0
      %v1877 = vadd.f32 0.0, %v1876
      %v1878 = vpop.f32.mrf.mxu0
      %1879 = vmatprep.mubr.f32.mxu0 0.0
      %1880 = vmatmul.mubr.f32.gmra.mxu0 %v1044
      %v1881 = vpop.f32.mrf.mxu0
      %v1882 = vadd.f32 0.0, %v1881
      %v1883 = vpop.f32.mrf.mxu0
      %1884 = vmatprep.mubr.f32.mxu0 0.0
      %1885 = vmatmul.mubr.f32.gmra.mxu0 %v1047
      %v1886 = vpop.f32.mrf.mxu0
      %v1887 = vadd.f32 0.0, %v1886
      %v1888 = vpop.f32.mrf.mxu0
      %1889 = vmatprep.mubr.f32.mxu0 0.0
      %1890 = vmatmul.mubr.f32.gmra.mxu0 %v1050
      %v1891 = vpop.f32.mrf.mxu0
      %v1892 = vadd.f32 0.0, %v1891
      %v1893 = vpop.f32.mrf.mxu0
      %1894 = vmatprep.mubr.f32.mxu0 0.0
      %1895 = vmatmul.mubr.f32.gmra.mxu0 %v1053
      %v1896 = vpop.f32.mrf.mxu0
      %v1897 = vadd.f32 0.0, %v1896
      %v1898 = vpop.f32.mrf.mxu0
      %1899 = vmatprep.mubr.f32.mxu0 0.0
      %1900 = vmatmul.mubr.f32.gmra.mxu0 %v1056
      %v1901 = vpop.f32.mrf.mxu0
      %v1902 = vadd.f32 0.0, %v1901
      %v1903 = vpop.f32.mrf.mxu0
      %1904 = vmatprep.mubr.f32.mxu0 0.0
      %1905 = vmatmul.mubr.f32.gmra.mxu0 %v1059
      %v1906 = vpop.f32.mrf.mxu0
      %v1907 = vadd.f32 0.0, %v1906
      %v1908 = vpop.f32.mrf.mxu0
      %1909 = vmatprep.mubr.f32.mxu0 0.0
      %1910 = vmatmul.mubr.f32.gmra.mxu0 %v1062
      %v1911 = vpop.f32.mrf.mxu0
      %v1912 = vadd.f32 0.0, %v1911
      %v1913 = vpop.f32.mrf.mxu0
      %1914 = vmatprep.mubr.f32.mxu0 0.0
      %1915 = vmatmul.mubr.f32.gmra.mxu0 %v1065
      %v1916 = vpop.f32.mrf.mxu0
      %v1917 = vadd.f32 0.0, %v1916
      %v1918 = vpop.f32.mrf.mxu0
      %1919 = vmatprep.mubr.f32.mxu0 0.0
      %1920 = vmatmul.mubr.f32.gmra.mxu0 %v1068
      %v1921 = vpop.f32.mrf.mxu0
      %v1922 = vadd.f32 0.0, %v1921
      %v1923 = vpop.f32.mrf.mxu0
      %1924 = vmatprep.mubr.f32.mxu0 0.0
      %1925 = vmatmul.mubr.f32.gmra.mxu0 %v1071
      %v1926 = vpop.f32.mrf.mxu0
      %v1927 = vadd.f32 0.0, %v1926
      %v1928 = vpop.f32.mrf.mxu0
      %1929 = vmatprep.mubr.f32.mxu0 0.0
      %1930 = vmatmul.mubr.f32.gmra.mxu0 %v1074
      %v1931 = vpop.f32.mrf.mxu0
      %v1932 = vadd.f32 0.0, %v1931
      %v1933 = vpop.f32.mrf.mxu0
      %1934 = vmatprep.mubr.f32.mxu0 0.0
      %1935 = vmatmul.mubr.f32.gmra.mxu0 %v1077
      %v1936 = vpop.f32.mrf.mxu0
      %v1937 = vadd.f32 0.0, %v1936
      %v1938 = vpop.f32.mrf.mxu0
      %1939 = vmatprep.mubr.f32.mxu0 0.0
      %1940 = vmatmul.mubr.f32.gmra.mxu0 %v1080
      %v1941 = vpop.f32.mrf.mxu0
      %v1942 = vadd.f32 0.0, %v1941
      %v1943 = vpop.f32.mrf.mxu0
      %1944 = vmatprep.mubr.f32.mxu0 0.0
      %1945 = vmatmul.mubr.f32.gmra.mxu0 %v1083
      %v1946 = vpop.f32.mrf.mxu0
      %v1947 = vadd.f32 0.0, %v1946
      %v1948 = vpop.f32.mrf.mxu0
      %1949 = vmatprep.mubr.f32.mxu0 0.0
      %1950 = vmatmul.mubr.f32.gmra.mxu0 %v1086
      %v1951 = vpop.f32.mrf.mxu0
      %v1952 = vadd.f32 0.0, %v1951
      %v1953 = vpop.f32.mrf.mxu0
      %1954 = vmatprep.mubr.f32.mxu0 0.0
      %1955 = vmatmul.mubr.f32.gmra.mxu0 %v1089
      %v1956 = vpop.f32.mrf.mxu0
      %v1957 = vadd.f32 0.0, %v1956
      %v1958 = vpop.f32.mrf.mxu0
      %1959 = vmatprep.mubr.f32.mxu0 0.0
      %1960 = vmatmul.mubr.f32.gmra.mxu0 %v1092
      %v1961 = vpop.f32.mrf.mxu0
      %v1962 = vadd.f32 0.0, %v1961
      %v1963 = vpop.f32.mrf.mxu0
      %1964 = vmatprep.mubr.f32.mxu0 0.0
      %1965 = vmatmul.mubr.f32.gmra.mxu0 %v1095
      %v1966 = vpop.f32.mrf.mxu0
      %v1967 = vadd.f32 0.0, %v1966
      %v1968 = vpop.f32.mrf.mxu0
      %1969 = vmatprep.mubr.f32.mxu0 0.0
      %1970 = vmatmul.mubr.f32.gmra.mxu0 %v1098
      %v1971 = vpop.f32.mrf.mxu0
      %v1972 = vadd.f32 0.0, %v1971
      %v1973 = vpop.f32.mrf.mxu0
      %1974 = vmatprep.mubr.f32.mxu0 0.0
      %1975 = vmatmul.mubr.f32.gmra.mxu0 %v1101
      %v1976 = vpop.f32.mrf.mxu0
      %v1977 = vadd.f32 0.0, %v1976
      %v1978 = vpop.f32.mrf.mxu0
      %1979 = vmatprep.mubr.f32.mxu0 0.0
      %1980 = vmatmul.mubr.f32.gmra.mxu0 %v1104
      %v1981 = vpop.f32.mrf.mxu0
      %v1982 = vadd.f32 0.0, %v1981
      %v1983 = vpop.f32.mrf.mxu0
      %1984 = vmatprep.mubr.f32.mxu0 0.0
      %1985 = vmatmul.mubr.f32.gmra.mxu0 %v1107
      %v1986 = vpop.f32.mrf.mxu0
      %v1987 = vadd.f32 0.0, %v1986
      %v1988 = vpop.f32.mrf.mxu0
      %1989 = vdwg.mxu0
      %v1990 = vrot.slane %v1764, 4
      %v1991 = vadd.f32 %v1764, %v1990
      %v1992 = vrot.slane %v1991, 2
      %v1993 = vadd.f32 %v1991, %v1992
      %v1994 = vrot.slane %v1993, 1
      %v1995 = vadd.f32 %v1993, %v1994
      %v1996 = vmul.f32 %v1832, 0.4
      %v1997 = vmul.f32 %v1837, 0.4
      %v1998 = vmul.f32 %v1842, 0.4
      %v1999 = vmul.f32 %v1847, 0.4
      %v2000 = vmul.f32 %v1852, 0.4
      %v2001 = vmul.f32 %v1857, 0.4
      %v2002 = vmul.f32 %v1862, 0.4
      %v2003 = vmul.f32 %v1867, 0.4
      %v2004 = vmul.f32 %v1872, 0.4
      %v2005 = vmul.f32 %v1877, 0.4
      %v2006 = vmul.f32 %v1882, 0.4
      %v2007 = vmul.f32 %v1887, 0.4
      %v2008 = vmul.f32 %v1892, 0.4
      %v2009 = vmul.f32 %v1897, 0.4
      %v2010 = vmul.f32 %v1902, 0.4
      %v2011 = vmul.f32 %v1907, 0.4
      %v2012 = vmul.f32 %v1912, 0.4
      %v2013 = vmul.f32 %v1917, 0.4
      %v2014 = vmul.f32 %v1922, 0.4
      %v2015 = vmul.f32 %v1927, 0.4
      %v2016 = vmul.f32 %v1932, 0.4
      %v2017 = vmul.f32 %v1937, 0.4
      %v2018 = vmul.f32 %v1942, 0.4
      %v2019 = vmul.f32 %v1947, 0.4
      %v2020 = vmul.f32 %v1952, 0.4
      %v2021 = vmul.f32 %v1957, 0.4
      %v2022 = vmul.f32 %v1962, 0.4
      %v2023 = vmul.f32 %v1967, 0.4
      %v2024 = vmul.f32 %v1972, 0.4
      %v2025 = vmul.f32 %v1977, 0.4
      %v2026 = vmul.f32 %v1982, 0.4
      %v2027 = vmul.f32 %v1987, 0.4
      %v2028 = vsub.f32 %v1372, %v1996
      %v2029 = vsub.f32 %v1373, %v1997
      %v2030 = vsub.f32 %v1374, %v1998
      %v2031 = vsub.f32 %v1375, %v1999
      %v2032 = vsub.f32 %v1376, %v2000
      %v2033 = vsub.f32 %v1377, %v2001
      %v2034 = vsub.f32 %v1378, %v2002
      %v2035 = vsub.f32 %v1379, %v2003
      %v2036 = vsub.f32 %v1380, %v2004
      %v2037 = vsub.f32 %v1381, %v2005
      %v2038 = vsub.f32 %v1382, %v2006
      %v2039 = vsub.f32 %v1383, %v2007
      %v2040 = vsub.f32 %v1384, %v2008
      %v2041 = vsub.f32 %v1385, %v2009
      %v2042 = vsub.f32 %v1386, %v2010
      %v2043 = vsub.f32 %v1387, %v2011
      %v2044 = vsub.f32 %v1388, %v2012
      %v2045 = vsub.f32 %v1389, %v2013
      %v2046 = vsub.f32 %v1390, %v2014
      %v2047 = vsub.f32 %v1391, %v2015
      %v2048 = vsub.f32 %v1392, %v2016
      %v2049 = vsub.f32 %v1393, %v2017
      %v2050 = vsub.f32 %v1394, %v2018
      %v2051 = vsub.f32 %v1395, %v2019
      %v2052 = vsub.f32 %v1396, %v2020
      %v2053 = vsub.f32 %v1397, %v2021
      %v2054 = vsub.f32 %v1398, %v2022
      %v2055 = vsub.f32 %v1399, %v2023
      %v2056 = vsub.f32 %v1400, %v2024
      %v2057 = vsub.f32 %v1401, %v2025
      %v2058 = vsub.f32 %v1402, %v2026
      %v2059 = vsub.f32 %v1403, %v2027
      %v2060 = vmul.f32 %v1995, 0.4
      %v2061 = vsub.f32 %v1405, %v2060
      %v2062 = vmul.f32 %v1681, 0.4
      %v2063 = vsub.f32 %v1407, %v2062
      %v2064 = vmul.f32 %v1690, 0.4
      %v2065 = vsub.f32 %v1409, %v2064
      %v2067 = vlaneseq
      %v2068 = vshrl.u32 %v2067, 7
      %v2069 = vsub.s32 0, %v2068
      %v2070 = vrot.slane %v2061, %v2069
      %2072 = vmatprep.subr.mxu0 0.0
      %2073 = vmatpush1.msra.mxu0 %v2043
      %2074 = vmatprep.subr.mxu0 0.0
      %2075 = vmatpush1.msra.mxu0 %v2042
      %2076 = vmatprep.subr.mxu0 0.0
      %2077 = vmatpush1.msra.mxu0 %v2041
      %2078 = vmatprep.subr.mxu0 0.0
      %2079 = vmatpush1.msra.mxu0 %v2040
      %2080 = vmatprep.subr.mxu0 0.0
      %2081 = vmatpush1.msra.mxu0 %v2039
      %2082 = vmatprep.subr.mxu0 0.0
      %2083 = vmatpush1.msra.mxu0 %v2038
      %2084 = vmatprep.subr.mxu0 0.0
      %2085 = vmatpush1.msra.mxu0 %v2037
      %2086 = vmatprep.subr.mxu0 0.0
      %2087 = vmatpush1.msra.mxu0 %v2036
      %2088 = vmatprep.subr.mxu0 0.0
      %2089 = vmatpush1.msra.mxu0 %v2035
      %2090 = vmatprep.subr.mxu0 0.0
      %2091 = vmatpush1.msra.mxu0 %v2034
      %2092 = vmatprep.subr.mxu0 0.0
      %2093 = vmatpush1.msra.mxu0 %v2033
      %2094 = vmatprep.subr.mxu0 0.0
      %2095 = vmatpush1.msra.mxu0 %v2032
      %2096 = vmatprep.subr.mxu0 0.0
      %2097 = vmatpush1.msra.mxu0 %v2031
      %2098 = vmatprep.subr.mxu0 0.0
      %2099 = vmatpush1.msra.mxu0 %v2030
      %2100 = vmatprep.subr.mxu0 0.0
      %2101 = vmatpush1.msra.mxu0 %v2029
      %2102 = vmatprep.subr.mxu0 0.0
      %2103 = vmatpush1.msra.mxu0 %v2028
      %2104 = vmatprep.subr.mxu0 0.0
      %2105 = vmatpush2.msra.mxu0 %v2059
      %2106 = vmatprep.subr.mxu0 0.0
      %2107 = vmatpush2.msra.mxu0 %v2058
      %2108 = vmatprep.subr.mxu0 0.0
      %2109 = vmatpush2.msra.mxu0 %v2057
      %2110 = vmatprep.subr.mxu0 0.0
      %2111 = vmatpush2.msra.mxu0 %v2056
      %2112 = vmatprep.subr.mxu0 0.0
      %2113 = vmatpush2.msra.mxu0 %v2055
      %2114 = vmatprep.subr.mxu0 0.0
      %2115 = vmatpush2.msra.mxu0 %v2054
      %2116 = vmatprep.subr.mxu0 0.0
      %2117 = vmatpush2.msra.mxu0 %v2053
      %2118 = vmatprep.subr.mxu0 0.0
      %2119 = vmatpush2.msra.mxu0 %v2052
      %2120 = vmatprep.subr.mxu0 0.0
      %2121 = vmatpush2.msra.mxu0 %v2051
      %2122 = vmatprep.subr.mxu0 0.0
      %2123 = vmatpush2.msra.mxu0 %v2050
      %2124 = vmatprep.subr.mxu0 0.0
      %2125 = vmatpush2.msra.mxu0 %v2049
      %2126 = vmatprep.subr.mxu0 0.0
      %2127 = vmatpush2.msra.mxu0 %v2048
      %2128 = vmatprep.subr.mxu0 0.0
      %2129 = vmatpush2.msra.mxu0 %v2047
      %2130 = vmatprep.subr.mxu0 0.0
      %2131 = vmatpush2.msra.mxu0 %v2046
      %2132 = vmatprep.subr.mxu0 0.0
      %2133 = vmatpush2.msra.mxu0 %v2045
      %2134 = vmatprep.subr.mxu0 0.0
      %2135 = vmatpush2.msra.mxu0 %v2044
      %2136 = vmatprep.mubr.f32.mxu0 %v555
      %2137 = vmatmul.mubr.f32.gmra.mxu0 %v554
      %v2138 = vpop.f32.mrf.mxu0
      %v2139 = vadd.f32 %v2070, %v2138
      %v2140 = vpop.f32.mrf.mxu0
      %2141 = vdwg.mxu0
      %vm2142 = vcmp.gt.f32.partialorder %v2139, 0.0
      %v2143 = vsel %vm2142, 1, 0
      %v2144 = vcvt.s32.f32 %v2143
      %v2145 = vmul.f32 %v2139, %v2144
      %v2147 = vlaneseq
      %v2148 = vshrl.u32 %v2147, 7
      %v2149 = vsub.s32 0, %v2148
      %v2150 = vrot.slane %v2065, %v2149
      %2152 = vmatprep.subr.mxu0 0.0
      %2153 = vmatpush1.xpose.msra.mxu0 0.0
      %2154 = vmatprep.subr.mxu0 0.0
      %2155 = vmatpush1.xpose.msra.mxu0 0.0
      %2156 = vmatprep.subr.mxu0 0.0
      %2157 = vmatpush1.xpose.msra.mxu0 0.0
      %2158 = vmatprep.subr.mxu0 0.0
      %2159 = vmatpush1.xpose.msra.mxu0 0.0
      %2160 = vmatprep.subr.mxu0 0.0
      %2161 = vmatpush1.xpose.msra.mxu0 0.0
      %2162 = vmatprep.subr.mxu0 0.0
      %2163 = vmatpush1.xpose.msra.mxu0 0.0
      %2164 = vmatprep.subr.mxu0 0.0
      %2165 = vmatpush1.xpose.msra.mxu0 0.0
      %2166 = vmatprep.subr.mxu0 0.0
      %2167 = vmatpush1.xpose.msra.mxu0 0.0
      %2168 = vmatprep.subr.mxu0 0.0
      %2169 = vmatpush1.xpose.msra.mxu0 0.0
      %2170 = vmatprep.subr.mxu0 0.0
      %2171 = vmatpush1.xpose.msra.mxu0 0.0
      %2172 = vmatprep.subr.mxu0 0.0
      %2173 = vmatpush1.xpose.msra.mxu0 0.0
      %2174 = vmatprep.subr.mxu0 0.0
      %2175 = vmatpush1.xpose.msra.mxu0 0.0
      %2176 = vmatprep.subr.mxu0 0.0
      %2177 = vmatpush1.xpose.msra.mxu0 0.0
      %2178 = vmatprep.subr.mxu0 0.0
      %2179 = vmatpush1.xpose.msra.mxu0 0.0
      %2180 = vmatprep.subr.mxu0 0.0
      %2181 = vmatpush1.xpose.msra.mxu0 0.0
      %2182 = vmatprep.subr.mxu0 0.0
      %2183 = vmatpush1.xpose.msra.mxu0 %v2063
      %2184 = vmatprep.subr.mxu0 0.0
      %2185 = vmatpush2.xpose.msra.mxu0 0.0
      %2186 = vmatprep.subr.mxu0 0.0
      %2187 = vmatpush2.xpose.msra.mxu0 0.0
      %2188 = vmatprep.subr.mxu0 0.0
      %2189 = vmatpush2.xpose.msra.mxu0 0.0
      %2190 = vmatprep.subr.mxu0 0.0
      %2191 = vmatpush2.xpose.msra.mxu0 0.0
      %2192 = vmatprep.subr.mxu0 0.0
      %2193 = vmatpush2.xpose.msra.mxu0 0.0
      %2194 = vmatprep.subr.mxu0 0.0
      %2195 = vmatpush2.xpose.msra.mxu0 0.0
      %2196 = vmatprep.subr.mxu0 0.0
      %2197 = vmatpush2.xpose.msra.mxu0 0.0
      %2198 = vmatprep.subr.mxu0 0.0
      %2199 = vmatpush2.xpose.msra.mxu0 0.0
      %2200 = vmatprep.subr.mxu0 0.0
      %2201 = vmatpush2.xpose.msra.mxu0 0.0
      %2202 = vmatprep.subr.mxu0 0.0
      %2203 = vmatpush2.xpose.msra.mxu0 0.0
      %2204 = vmatprep.subr.mxu0 0.0
      %2205 = vmatpush2.xpose.msra.mxu0 0.0
      %2206 = vmatprep.subr.mxu0 0.0
      %2207 = vmatpush2.xpose.msra.mxu0 0.0
      %2208 = vmatprep.subr.mxu0 0.0
      %2209 = vmatpush2.xpose.msra.mxu0 0.0
      %2210 = vmatprep.subr.mxu0 0.0
      %2211 = vmatpush2.xpose.msra.mxu0 0.0
      %2212 = vmatprep.subr.mxu0 0.0
      %2213 = vmatpush2.xpose.msra.mxu0 0.0
      %2214 = vmatprep.subr.mxu0 0.0
      %2215 = vmatpush2.xpose.msra.mxu0 0.0
      %2216 = vmatprep.mubr.f32.mxu0 0.0
      %2217 = vmatmul.mubr.f32.gmra.mxu0 %v2145
      %v2218 = vpop.f32.mrf.mxu0
      %v2219 = vadd.f32 %v2150, %v2218
      %v2220 = vpop.f32.mrf.mxu0
      %2221 = vdwg.mxu0
      %v2222 = vsel %vm748, %v2219, -inf
      %2223 = vmax.xlane.f32.xlu0 %v2222
      %v2224 = vpop.xlane.xlu0 %2223
      %v2225 = vsub.f32 %v2219, %v2224
      %v2226 = vmul.f32 %v2225, 1.442695
      %v2227 = vpow.pop %v2226
      %v2228 = vsel %vm748, %v2227, 0.0
      %2229 = vadd.xlane.f32.xlu0 %v2228
      %v2230 = vpop.xlane.xlu0 %2229
      %v2231 = vrcp.pop %v2230
      %v2232 = vmul.f32 %v2227, %v2231
      %v2233 = vlog2.pop %v2230
      %v2234 = vmul.f32 %v2233, 0.6931472
      %v2235 = vsub.f32 %v2225, %v2234
      %v2236 = vsub.f32 0.0, %v556
      %v2237 = vmul.f32 %v2236, %v2235
      %v2238 = vsel %vm748, %v2237, 0.0
      %2239 = vadd.xlane.f32.xlu0 %v2238
      %v2240 = vpop.xlane.xlu0 %2239
      %v2241 = vrot.slane %v2240, 4
      %v2242 = vadd.f32 %v2240, %v2241
      %v2243 = vrot.slane %v2242, 2
      %v2244 = vadd.f32 %v2242, %v2243
      %v2245 = vrot.slane %v2244, 1
      %v2246 = vadd.f32 %v2244, %v2245
      %s2247 = vtos %v2246
      %v2248 = vstv %s2247
      %v2249 = vmul.f32 %v2248, %v761
      %v2250 = vsub.f32 %v2232, %v556
      %v2251 = vmul.f32 %v2250, %v761
      %2252 = vxpose.xlu0.b32.start [1/16] %v2251, 128
      %2253 = vxpose.xlu0.b32.cont [2/16] 0.0, 128
      %2254 = vxpose.xlu0.b32.cont [3/16] 0.0, 128
      %2255 = vxpose.xlu0.b32.cont [4/16] 0.0, 128
      %2256 = vxpose.xlu0.b32.cont [5/16] 0.0, 128
      %2257 = vxpose.xlu0.b32.cont [6/16] 0.0, 128
      %2258 = vxpose.xlu0.b32.cont [7/16] 0.0, 128
      %2259 = vxpose.xlu0.b32.cont [8/16] 0.0, 128
      %2260 = vxpose.xlu0.b32.cont [9/16] 0.0, 128
      %2261 = vxpose.xlu0.b32.cont [10/16] 0.0, 128
      %2262 = vxpose.xlu0.b32.cont [11/16] 0.0, 128
      %2263 = vxpose.xlu0.b32.cont [12/16] 0.0, 128
      %2264 = vxpose.xlu0.b32.cont [13/16] 0.0, 128
      %2265 = vxpose.xlu0.b32.cont [14/16] 0.0, 128
      %2266 = vxpose.xlu0.b32.cont [15/16] 0.0, 128
      %2267 = vxpose.xlu0.b32.end [16/16] 0.0, 128
      %v2268 = vpop.trf.xlu0
      %v2269 = vpop.trf.xlu0
      %v2270 = vpop.trf.xlu0
      %v2271 = vpop.trf.xlu0
      %v2272 = vpop.trf.xlu0
      %v2273 = vpop.trf.xlu0
      %v2274 = vpop.trf.xlu0
      %v2275 = vpop.trf.xlu0
      %v2276 = vpop.trf.xlu0
      %v2277 = vpop.trf.xlu0
      %v2278 = vpop.trf.xlu0
      %v2279 = vpop.trf.xlu0
      %v2280 = vpop.trf.xlu0
      %v2281 = vpop.trf.xlu0
      %v2282 = vpop.trf.xlu0
      %v2283 = vpop.trf.xlu0
      %v2285 = vsel %vm748, %v2268, 0
      %2287 = vmatprep.subr.mxu0 0.0
      %2288 = vmatpush1.msra.mxu0 0.0
      %2289 = vmatprep.subr.mxu0 0.0
      %2290 = vmatpush1.msra.mxu0 0.0
      %2291 = vmatprep.subr.mxu0 0.0
      %2292 = vmatpush1.msra.mxu0 0.0
      %2293 = vmatprep.subr.mxu0 0.0
      %2294 = vmatpush1.msra.mxu0 0.0
      %2295 = vmatprep.subr.mxu0 0.0
      %2296 = vmatpush1.msra.mxu0 0.0
      %2297 = vmatprep.subr.mxu0 0.0
      %2298 = vmatpush1.msra.mxu0 0.0
      %2299 = vmatprep.subr.mxu0 0.0
      %2300 = vmatpush1.msra.mxu0 0.0
      %2301 = vmatprep.subr.mxu0 0.0
      %2302 = vmatpush1.msra.mxu0 0.0
      %2303 = vmatprep.subr.mxu0 0.0
      %2304 = vmatpush1.msra.mxu0 0.0
      %2305 = vmatprep.subr.mxu0 0.0
      %2306 = vmatpush1.msra.mxu0 0.0
      %2307 = vmatprep.subr.mxu0 0.0
      %2308 = vmatpush1.msra.mxu0 0.0
      %2309 = vmatprep.subr.mxu0 0.0
      %2310 = vmatpush1.msra.mxu0 0.0
      %2311 = vmatprep.subr.mxu0 0.0
      %2312 = vmatpush1.msra.mxu0 0.0
      %2313 = vmatprep.subr.mxu0 0.0
      %2314 = vmatpush1.msra.mxu0 0.0
      %2315 = vmatprep.subr.mxu0 0.0
      %2316 = vmatpush1.msra.mxu0 0.0
      %2317 = vmatprep.subr.mxu0 0.0
      %2318 = vmatpush1.msra.mxu0 %v2145
      %2319 = vmatprep.subr.mxu0 0.0
      %2320 = vmatpush2.msra.mxu0 0.0
      %2321 = vmatprep.subr.mxu0 0.0
      %2322 = vmatpush2.msra.mxu0 0.0
      %2323 = vmatprep.subr.mxu0 0.0
      %2324 = vmatpush2.msra.mxu0 0.0
      %2325 = vmatprep.subr.mxu0 0.0
      %2326 = vmatpush2.msra.mxu0 0.0
      %2327 = vmatprep.subr.mxu0 0.0
      %2328 = vmatpush2.msra.mxu0 0.0
      %2329 = vmatprep.subr.mxu0 0.0
      %2330 = vmatpush2.msra.mxu0 0.0
      %2331 = vmatprep.subr.mxu0 0.0
      %2332 = vmatpush2.msra.mxu0 0.0
      %2333 = vmatprep.subr.mxu0 0.0
      %2334 = vmatpush2.msra.mxu0 0.0
      %2335 = vmatprep.subr.mxu0 0.0
      %2336 = vmatpush2.msra.mxu0 0.0
      %2337 = vmatprep.subr.mxu0 0.0
      %2338 = vmatpush2.msra.mxu0 0.0
      %2339 = vmatprep.subr.mxu0 0.0
      %2340 = vmatpush2.msra.mxu0 0.0
      %2341 = vmatprep.subr.mxu0 0.0
      %2342 = vmatpush2.msra.mxu0 0.0
      %2343 = vmatprep.subr.mxu0 0.0
      %2344 = vmatpush2.msra.mxu0 0.0
      %2345 = vmatprep.subr.mxu0 0.0
      %2346 = vmatpush2.msra.mxu0 0.0
      %2347 = vmatprep.subr.mxu0 0.0
      %2348 = vmatpush2.msra.mxu0 0.0
      %2349 = vmatprep.subr.mxu0 0.0
      %2350 = vmatpush2.msra.mxu0 0.0
      %2351 = vmatprep.mubr.f32.mxu0 0.0
      %2352 = vmatmul.mubr.f32.gmra.mxu0 %v2285
      %v2353 = vpop.f32.mrf.mxu0
      %v2354 = vadd.f32 0.0, %v2353
      %v2355 = vpop.f32.mrf.mxu0
      %2356 = vdwg.mxu0
      %v2357 = vsel %vm748, %v2251, 0.0
      %v2358 = vrot.slane %v2357, 4
      %v2359 = vadd.f32 %v2357, %v2358
      %v2360 = vrot.slane %v2359, 2
      %v2361 = vadd.f32 %v2359, %v2360
      %v2362 = vrot.slane %v2361, 1
      %v2363 = vadd.f32 %v2361, %v2362
      %v2365 = vsel %vm748, %v2251, 0
      %2367 = vmatprep.subr.mxu0 0.0
      %2368 = vmatpush1.msra.mxu0 0.0
      %2369 = vmatprep.subr.mxu0 0.0
      %2370 = vmatpush1.msra.mxu0 0.0
      %2371 = vmatprep.subr.mxu0 0.0
      %2372 = vmatpush1.msra.mxu0 0.0
      %2373 = vmatprep.subr.mxu0 0.0
      %2374 = vmatpush1.msra.mxu0 0.0
      %2375 = vmatprep.subr.mxu0 0.0
      %2376 = vmatpush1.msra.mxu0 0.0
      %2377 = vmatprep.subr.mxu0 0.0
      %2378 = vmatpush1.msra.mxu0 0.0
      %2379 = vmatprep.subr.mxu0 0.0
      %2380 = vmatpush1.msra.mxu0 0.0
      %2381 = vmatprep.subr.mxu0 0.0
      %2382 = vmatpush1.msra.mxu0 0.0
      %2383 = vmatprep.subr.mxu0 0.0
      %2384 = vmatpush1.msra.mxu0 0.0
      %2385 = vmatprep.subr.mxu0 0.0
      %2386 = vmatpush1.msra.mxu0 0.0
      %2387 = vmatprep.subr.mxu0 0.0
      %2388 = vmatpush1.msra.mxu0 0.0
      %2389 = vmatprep.subr.mxu0 0.0
      %2390 = vmatpush1.msra.mxu0 0.0
      %2391 = vmatprep.subr.mxu0 0.0
      %2392 = vmatpush1.msra.mxu0 0.0
      %2393 = vmatprep.subr.mxu0 0.0
      %2394 = vmatpush1.msra.mxu0 0.0
      %2395 = vmatprep.subr.mxu0 0.0
      %2396 = vmatpush1.msra.mxu0 0.0
      %2397 = vmatprep.subr.mxu0 0.0
      %2398 = vmatpush1.msra.mxu0 %v2063
      %2399 = vmatprep.subr.mxu0 0.0
      %2400 = vmatpush2.msra.mxu0 0.0
      %2401 = vmatprep.subr.mxu0 0.0
      %2402 = vmatpush2.msra.mxu0 0.0
      %2403 = vmatprep.subr.mxu0 0.0
      %2404 = vmatpush2.msra.mxu0 0.0
      %2405 = vmatprep.subr.mxu0 0.0
      %2406 = vmatpush2.msra.mxu0 0.0
      %2407 = vmatprep.subr.mxu0 0.0
      %2408 = vmatpush2.msra.mxu0 0.0
      %2409 = vmatprep.subr.mxu0 0.0
      %2410 = vmatpush2.msra.mxu0 0.0
      %2411 = vmatprep.subr.mxu0 0.0
      %2412 = vmatpush2.msra.mxu0 0.0
      %2413 = vmatprep.subr.mxu0 0.0
      %2414 = vmatpush2.msra.mxu0 0.0
      %2415 = vmatprep.subr.mxu0 0.0
      %2416 = vmatpush2.msra.mxu0 0.0
      %2417 = vmatprep.subr.mxu0 0.0
      %2418 = vmatpush2.msra.mxu0 0.0
      %2419 = vmatprep.subr.mxu0 0.0
      %2420 = vmatpush2.msra.mxu0 0.0
      %2421 = vmatprep.subr.mxu0 0.0
      %2422 = vmatpush2.msra.mxu0 0.0
      %2423 = vmatprep.subr.mxu0 0.0
      %2424 = vmatpush2.msra.mxu0 0.0
      %2425 = vmatprep.subr.mxu0 0.0
      %2426 = vmatpush2.msra.mxu0 0.0
      %2427 = vmatprep.subr.mxu0 0.0
      %2428 = vmatpush2.msra.mxu0 0.0
      %2429 = vmatprep.subr.mxu0 0.0
      %2430 = vmatpush2.msra.mxu0 0.0
      %2431 = vmatprep.mubr.f32.mxu0 0.0
      %2432 = vmatmul.mubr.f32.gmra.mxu0 %v2365
      %v2433 = vpop.f32.mrf.mxu0
      %v2434 = vadd.f32 0.0, %v2433
      %v2435 = vpop.f32.mrf.mxu0
      %2436 = vdwg.mxu0
      %v2437 = vmul.f32 %v2434, %v2144
      %2438 = vxpose.xlu0.b32.start [1/16] %v554, 128
      %2439 = vxpose.xlu0.b32.cont [2/16] 0.0, 128
      %2440 = vxpose.xlu0.b32.cont [3/16] 0.0, 128
      %2441 = vxpose.xlu0.b32.cont [4/16] 0.0, 128
      %2442 = vxpose.xlu0.b32.cont [5/16] 0.0, 128
      %2443 = vxpose.xlu0.b32.cont [6/16] 0.0, 128
      %2444 = vxpose.xlu0.b32.cont [7/16] 0.0, 128
      %2445 = vxpose.xlu0.b32.cont [8/16] 0.0, 128
      %2446 = vxpose.xlu0.b32.cont [9/16] 0.0, 128
      %2447 = vxpose.xlu0.b32.cont [10/16] 0.0, 128
      %2448 = vxpose.xlu0.b32.cont [11/16] 0.0, 128
      %2449 = vxpose.xlu0.b32.cont [12/16] 0.0, 128
      %2450 = vxpose.xlu0.b32.cont [13/16] 0.0, 128
      %2451 = vxpose.xlu0.b32.cont [14/16] 0.0, 128
      %2452 = vxpose.xlu0.b32.cont [15/16] 0.0, 128
      %2453 = vxpose.xlu0.b32.end [16/16] 0.0, 128
      %v2454 = vpop.trf.xlu0
      %v2455 = vpop.trf.xlu0
      %v2456 = vpop.trf.xlu0
      %v2457 = vpop.trf.xlu0
      %v2458 = vpop.trf.xlu0
      %v2459 = vpop.trf.xlu0
      %v2460 = vpop.trf.xlu0
      %v2461 = vpop.trf.xlu0
      %v2462 = vpop.trf.xlu0
      %v2463 = vpop.trf.xlu0
      %v2464 = vpop.trf.xlu0
      %v2465 = vpop.trf.xlu0
      %v2466 = vpop.trf.xlu0
      %v2467 = vpop.trf.xlu0
      %v2468 = vpop.trf.xlu0
      %v2469 = vpop.trf.xlu0
      %2470 = vxpose.xlu0.b32.start [1/16] %v555, 128
      %2471 = vxpose.xlu0.b32.cont [2/16] 0.0, 128
      %2472 = vxpose.xlu0.b32.cont [3/16] 0.0, 128
      %2473 = vxpose.xlu0.b32.cont [4/16] 0.0, 128
      %2474 = vxpose.xlu0.b32.cont [5/16] 0.0, 128
      %2475 = vxpose.xlu0.b32.cont [6/16] 0.0, 128
      %2476 = vxpose.xlu0.b32.cont [7/16] 0.0, 128
      %2477 = vxpose.xlu0.b32.cont [8/16] 0.0, 128
      %2478 = vxpose.xlu0.b32.cont [9/16] 0.0, 128
      %2479 = vxpose.xlu0.b32.cont [10/16] 0.0, 128
      %2480 = vxpose.xlu0.b32.cont [11/16] 0.0, 128
      %2481 = vxpose.xlu0.b32.cont [12/16] 0.0, 128
      %2482 = vxpose.xlu0.b32.cont [13/16] 0.0, 128
      %2483 = vxpose.xlu0.b32.cont [14/16] 0.0, 128
      %2484 = vxpose.xlu0.b32.cont [15/16] 0.0, 128
      %2485 = vxpose.xlu0.b32.end [16/16] 0.0, 128
      %v2486 = vpop.trf.xlu0
      %v2487 = vpop.trf.xlu0
      %v2488 = vpop.trf.xlu0
      %v2489 = vpop.trf.xlu0
      %v2490 = vpop.trf.xlu0
      %v2491 = vpop.trf.xlu0
      %v2492 = vpop.trf.xlu0
      %v2493 = vpop.trf.xlu0
      %v2494 = vpop.trf.xlu0
      %v2495 = vpop.trf.xlu0
      %v2496 = vpop.trf.xlu0
      %v2497 = vpop.trf.xlu0
      %v2498 = vpop.trf.xlu0
      %v2499 = vpop.trf.xlu0
      %v2500 = vpop.trf.xlu0
      %v2501 = vpop.trf.xlu0
      %v2503 = vsel %vm748, %v2454, 0
      %v2506 = vsel %vm748, %v2455, 0
      %v2509 = vsel %vm748, %v2456, 0
      %v2512 = vsel %vm748, %v2457, 0
      %v2515 = vsel %vm748, %v2458, 0
      %v2518 = vsel %vm748, %v2459, 0
      %v2521 = vsel %vm748, %v2460, 0
      %v2524 = vsel %vm748, %v2461, 0
      %v2527 = vsel %vm748, %v2462, 0
      %v2530 = vsel %vm748, %v2463, 0
      %v2533 = vsel %vm748, %v2464, 0
      %v2536 = vsel %vm748, %v2465, 0
      %v2539 = vsel %vm748, %v2466, 0
      %v2542 = vsel %vm748, %v2467, 0
      %v2545 = vsel %vm748, %v2468, 0
      %v2548 = vsel %vm748, %v2469, 0
      %v2551 = vsel %vm748, %v2486, 0
      %v2554 = vsel %vm748, %v2487, 0
      %v2557 = vsel %vm748, %v2488, 0
      %v2560 = vsel %vm748, %v2489, 0
      %v2563 = vsel %vm748, %v2490, 0
      %v2566 = vsel %vm748, %v2491, 0
      %v2569 = vsel %vm748, %v2492, 0
      %v2572 = vsel %vm748, %v2493, 0
      %v2575 = vsel %vm748, %v2494, 0
      %v2578 = vsel %vm748, %v2495, 0
      %v2581 = vsel %vm748, %v2496, 0
      %v2584 = vsel %vm748, %v2497, 0
      %v2587 = vsel %vm748, %v2498, 0
      %v2590 = vsel %vm748, %v2499, 0
      %v2593 = vsel %vm748, %v2500, 0
      %v2596 = vsel %vm748, %v2501, 0
      %2598 = vmatprep.subr.mxu0 0.0
      %2599 = vmatpush1.msra.mxu0 0.0
      %2600 = vmatprep.subr.mxu0 0.0
      %2601 = vmatpush1.msra.mxu0 0.0
      %2602 = vmatprep.subr.mxu0 0.0
      %2603 = vmatpush1.msra.mxu0 0.0
      %2604 = vmatprep.subr.mxu0 0.0
      %2605 = vmatpush1.msra.mxu0 0.0
      %2606 = vmatprep.subr.mxu0 0.0
      %2607 = vmatpush1.msra.mxu0 0.0
      %2608 = vmatprep.subr.mxu0 0.0
      %2609 = vmatpush1.msra.mxu0 0.0
      %2610 = vmatprep.subr.mxu0 0.0
      %2611 = vmatpush1.msra.mxu0 0.0
      %2612 = vmatprep.subr.mxu0 0.0
      %2613 = vmatpush1.msra.mxu0 0.0
      %2614 = vmatprep.subr.mxu0 0.0
      %2615 = vmatpush1.msra.mxu0 0.0
      %2616 = vmatprep.subr.mxu0 0.0
      %2617 = vmatpush1.msra.mxu0 0.0
      %2618 = vmatprep.subr.mxu0 0.0
      %2619 = vmatpush1.msra.mxu0 0.0
      %2620 = vmatprep.subr.mxu0 0.0
      %2621 = vmatpush1.msra.mxu0 0.0
      %2622 = vmatprep.subr.mxu0 0.0
      %2623 = vmatpush1.msra.mxu0 0.0
      %2624 = vmatprep.subr.mxu0 0.0
      %2625 = vmatpush1.msra.mxu0 0.0
      %2626 = vmatprep.subr.mxu0 0.0
      %2627 = vmatpush1.msra.mxu0 0.0
      %2628 = vmatprep.subr.mxu0 0.0
      %2629 = vmatpush1.msra.mxu0 %v2437
      %2630 = vmatprep.subr.mxu0 0.0
      %2631 = vmatpush2.msra.mxu0 0.0
      %2632 = vmatprep.subr.mxu0 0.0
      %2633 = vmatpush2.msra.mxu0 0.0
      %2634 = vmatprep.subr.mxu0 0.0
      %2635 = vmatpush2.msra.mxu0 0.0
      %2636 = vmatprep.subr.mxu0 0.0
      %2637 = vmatpush2.msra.mxu0 0.0
      %2638 = vmatprep.subr.mxu0 0.0
      %2639 = vmatpush2.msra.mxu0 0.0
      %2640 = vmatprep.subr.mxu0 0.0
      %2641 = vmatpush2.msra.mxu0 0.0
      %2642 = vmatprep.subr.mxu0 0.0
      %2643 = vmatpush2.msra.mxu0 0.0
      %2644 = vmatprep.subr.mxu0 0.0
      %2645 = vmatpush2.msra.mxu0 0.0
      %2646 = vmatprep.subr.mxu0 0.0
      %2647 = vmatpush2.msra.mxu0 0.0
      %2648 = vmatprep.subr.mxu0 0.0
      %2649 = vmatpush2.msra.mxu0 0.0
      %2650 = vmatprep.subr.mxu0 0.0
      %2651 = vmatpush2.msra.mxu0 0.0
      %2652 = vmatprep.subr.mxu0 0.0
      %2653 = vmatpush2.msra.mxu0 0.0
      %2654 = vmatprep.subr.mxu0 0.0
      %2655 = vmatpush2.msra.mxu0 0.0
      %2656 = vmatprep.subr.mxu0 0.0
      %2657 = vmatpush2.msra.mxu0 0.0
      %2658 = vmatprep.subr.mxu0 0.0
      %2659 = vmatpush2.msra.mxu0 0.0
      %2660 = vmatprep.subr.mxu0 0.0
      %2661 = vmatpush2.msra.mxu0 0.0
      %2662 = vmatprep.mubr.f32.mxu0 0.0
      %2663 = vmatmul.mubr.f32.gmra.mxu0 %v2503
      %v2664 = vpop.f32.mrf.mxu0
      %v2665 = vadd.f32 0.0, %v2664
      %v2666 = vpop.f32.mrf.mxu0
      %2667 = vmatprep.mubr.f32.mxu0 0.0
      %2668 = vmatmul.mubr.f32.gmra.mxu0 %v2506
      %v2669 = vpop.f32.mrf.mxu0
      %v2670 = vadd.f32 0.0, %v2669
      %v2671 = vpop.f32.mrf.mxu0
      %2672 = vmatprep.mubr.f32.mxu0 0.0
      %2673 = vmatmul.mubr.f32.gmra.mxu0 %v2509
      %v2674 = vpop.f32.mrf.mxu0
      %v2675 = vadd.f32 0.0, %v2674
      %v2676 = vpop.f32.mrf.mxu0
      %2677 = vmatprep.mubr.f32.mxu0 0.0
      %2678 = vmatmul.mubr.f32.gmra.mxu0 %v2512
      %v2679 = vpop.f32.mrf.mxu0
      %v2680 = vadd.f32 0.0, %v2679
      %v2681 = vpop.f32.mrf.mxu0
      %2682 = vmatprep.mubr.f32.mxu0 0.0
      %2683 = vmatmul.mubr.f32.gmra.mxu0 %v2515
      %v2684 = vpop.f32.mrf.mxu0
      %v2685 = vadd.f32 0.0, %v2684
      %v2686 = vpop.f32.mrf.mxu0
      %2687 = vmatprep.mubr.f32.mxu0 0.0
      %2688 = vmatmul.mubr.f32.gmra.mxu0 %v2518
      %v2689 = vpop.f32.mrf.mxu0
      %v2690 = vadd.f32 0.0, %v2689
      %v2691 = vpop.f32.mrf.mxu0
      %2692 = vmatprep.mubr.f32.mxu0 0.0
      %2693 = vmatmul.mubr.f32.gmra.mxu0 %v2521
      %v2694 = vpop.f32.mrf.mxu0
      %v2695 = vadd.f32 0.0, %v2694
      %v2696 = vpop.f32.mrf.mxu0
      %2697 = vmatprep.mubr.f32.mxu0 0.0
      %2698 = vmatmul.mubr.f32.gmra.mxu0 %v2524
      %v2699 = vpop.f32.mrf.mxu0
      %v2700 = vadd.f32 0.0, %v2699
      %v2701 = vpop.f32.mrf.mxu0
      %2702 = vmatprep.mubr.f32.mxu0 0.0
      %2703 = vmatmul.mubr.f32.gmra.mxu0 %v2527
      %v2704 = vpop.f32.mrf.mxu0
      %v2705 = vadd.f32 0.0, %v2704
      %v2706 = vpop.f32.mrf.mxu0
      %2707 = vmatprep.mubr.f32.mxu0 0.0
      %2708 = vmatmul.mubr.f32.gmra.mxu0 %v2530
      %v2709 = vpop.f32.mrf.mxu0
      %v2710 = vadd.f32 0.0, %v2709
      %v2711 = vpop.f32.mrf.mxu0
      %2712 = vmatprep.mubr.f32.mxu0 0.0
      %2713 = vmatmul.mubr.f32.gmra.mxu0 %v2533
      %v2714 = vpop.f32.mrf.mxu0
      %v2715 = vadd.f32 0.0, %v2714
      %v2716 = vpop.f32.mrf.mxu0
      %2717 = vmatprep.mubr.f32.mxu0 0.0
      %2718 = vmatmul.mubr.f32.gmra.mxu0 %v2536
      %v2719 = vpop.f32.mrf.mxu0
      %v2720 = vadd.f32 0.0, %v2719
      %v2721 = vpop.f32.mrf.mxu0
      %2722 = vmatprep.mubr.f32.mxu0 0.0
      %2723 = vmatmul.mubr.f32.gmra.mxu0 %v2539
      %v2724 = vpop.f32.mrf.mxu0
      %v2725 = vadd.f32 0.0, %v2724
      %v2726 = vpop.f32.mrf.mxu0
      %2727 = vmatprep.mubr.f32.mxu0 0.0
      %2728 = vmatmul.mubr.f32.gmra.mxu0 %v2542
      %v2729 = vpop.f32.mrf.mxu0
      %v2730 = vadd.f32 0.0, %v2729
      %v2731 = vpop.f32.mrf.mxu0
      %2732 = vmatprep.mubr.f32.mxu0 0.0
      %2733 = vmatmul.mubr.f32.gmra.mxu0 %v2545
      %v2734 = vpop.f32.mrf.mxu0
      %v2735 = vadd.f32 0.0, %v2734
      %v2736 = vpop.f32.mrf.mxu0
      %2737 = vmatprep.mubr.f32.mxu0 0.0
      %2738 = vmatmul.mubr.f32.gmra.mxu0 %v2548
      %v2739 = vpop.f32.mrf.mxu0
      %v2740 = vadd.f32 0.0, %v2739
      %v2741 = vpop.f32.mrf.mxu0
      %2742 = vmatprep.mubr.f32.mxu0 0.0
      %2743 = vmatmul.mubr.f32.gmra.mxu0 %v2551
      %v2744 = vpop.f32.mrf.mxu0
      %v2745 = vadd.f32 0.0, %v2744
      %v2746 = vpop.f32.mrf.mxu0
      %2747 = vmatprep.mubr.f32.mxu0 0.0
      %2748 = vmatmul.mubr.f32.gmra.mxu0 %v2554
      %v2749 = vpop.f32.mrf.mxu0
      %v2750 = vadd.f32 0.0, %v2749
      %v2751 = vpop.f32.mrf.mxu0
      %2752 = vmatprep.mubr.f32.mxu0 0.0
      %2753 = vmatmul.mubr.f32.gmra.mxu0 %v2557
      %v2754 = vpop.f32.mrf.mxu0
      %v2755 = vadd.f32 0.0, %v2754
      %v2756 = vpop.f32.mrf.mxu0
      %2757 = vmatprep.mubr.f32.mxu0 0.0
      %2758 = vmatmul.mubr.f32.gmra.mxu0 %v2560
      %v2759 = vpop.f32.mrf.mxu0
      %v2760 = vadd.f32 0.0, %v2759
      %v2761 = vpop.f32.mrf.mxu0
      %2762 = vmatprep.mubr.f32.mxu0 0.0
      %2763 = vmatmul.mubr.f32.gmra.mxu0 %v2563
      %v2764 = vpop.f32.mrf.mxu0
      %v2765 = vadd.f32 0.0, %v2764
      %v2766 = vpop.f32.mrf.mxu0
      %2767 = vmatprep.mubr.f32.mxu0 0.0
      %2768 = vmatmul.mubr.f32.gmra.mxu0 %v2566
      %v2769 = vpop.f32.mrf.mxu0
      %v2770 = vadd.f32 0.0, %v2769
      %v2771 = vpop.f32.mrf.mxu0
      %2772 = vmatprep.mubr.f32.mxu0 0.0
      %2773 = vmatmul.mubr.f32.gmra.mxu0 %v2569
      %v2774 = vpop.f32.mrf.mxu0
      %v2775 = vadd.f32 0.0, %v2774
      %v2776 = vpop.f32.mrf.mxu0
      %2777 = vmatprep.mubr.f32.mxu0 0.0
      %2778 = vmatmul.mubr.f32.gmra.mxu0 %v2572
      %v2779 = vpop.f32.mrf.mxu0
      %v2780 = vadd.f32 0.0, %v2779
      %v2781 = vpop.f32.mrf.mxu0
      %2782 = vmatprep.mubr.f32.mxu0 0.0
      %2783 = vmatmul.mubr.f32.gmra.mxu0 %v2575
      %v2784 = vpop.f32.mrf.mxu0
      %v2785 = vadd.f32 0.0, %v2784
      %v2786 = vpop.f32.mrf.mxu0
      %2787 = vmatprep.mubr.f32.mxu0 0.0
      %2788 = vmatmul.mubr.f32.gmra.mxu0 %v2578
      %v2789 = vpop.f32.mrf.mxu0
      %v2790 = vadd.f32 0.0, %v2789
      %v2791 = vpop.f32.mrf.mxu0
      %2792 = vmatprep.mubr.f32.mxu0 0.0
      %2793 = vmatmul.mubr.f32.gmra.mxu0 %v2581
      %v2794 = vpop.f32.mrf.mxu0
      %v2795 = vadd.f32 0.0, %v2794
      %v2796 = vpop.f32.mrf.mxu0
      %2797 = vmatprep.mubr.f32.mxu0 0.0
      %2798 = vmatmul.mubr.f32.gmra.mxu0 %v2584
      %v2799 = vpop.f32.mrf.mxu0
      %v2800 = vadd.f32 0.0, %v2799
      %v2801 = vpop.f32.mrf.mxu0
      %2802 = vmatprep.mubr.f32.mxu0 0.0
      %2803 = vmatmul.mubr.f32.gmra.mxu0 %v2587
      %v2804 = vpop.f32.mrf.mxu0
      %v2805 = vadd.f32 0.0, %v2804
      %v2806 = vpop.f32.mrf.mxu0
      %2807 = vmatprep.mubr.f32.mxu0 0.0
      %2808 = vmatmul.mubr.f32.gmra.mxu0 %v2590
      %v2809 = vpop.f32.mrf.mxu0
      %v2810 = vadd.f32 0.0, %v2809
      %v2811 = vpop.f32.mrf.mxu0
      %2812 = vmatprep.mubr.f32.mxu0 0.0
      %2813 = vmatmul.mubr.f32.gmra.mxu0 %v2593
      %v2814 = vpop.f32.mrf.mxu0
      %v2815 = vadd.f32 0.0, %v2814
      %v2816 = vpop.f32.mrf.mxu0
      %2817 = vmatprep.mubr.f32.mxu0 0.0
      %2818 = vmatmul.mubr.f32.gmra.mxu0 %v2596
      %v2819 = vpop.f32.mrf.mxu0
      %v2820 = vadd.f32 0.0, %v2819
      %v2821 = vpop.f32.mrf.mxu0
      %2822 = vdwg.mxu0
      %v2823 = vrot.slane %v2437, 4
      %v2824 = vadd.f32 %v2437, %v2823
      %v2825 = vrot.slane %v2824, 2
      %v2826 = vadd.f32 %v2824, %v2825
      %v2827 = vrot.slane %v2826, 1
      %v2828 = vadd.f32 %v2826, %v2827
      %v2829 = vlaneseq
      %v2830 = vand.u32 %v2829, 127
      %vm2831 = vcmp.eq.f32.partialorder %v2219, %v2224
      %v2832 = vsel %vm2831, %v2830, 8
      %v2833 = vsel %vm748, %v2832, 2147483647
      %v2834 = vand.u32 %v2833, 65535
      %v2835 = vshra.s32 %v2833, 16
      %v2836 = vcvt.s32.f32 %v2834
      %v2837 = vcvt.s32.f32 %v2835
      %2838 = vmin.xlane.f32.xlu0 %v2837
      %v2839 = vpop.xlane.xlu0 %2838
      %vm2840 = vcmp.eq.f32.partialorder %v2837, %v2839
      %v2841 = vsel %vm2840, %v2836, inf
      %2842 = vmin.xlane.f32.xlu0 %v2841
      %v2843 = vpop.xlane.xlu0 %2842
      %v2844 = vcvt.f32.s32 %v2843
      %v2845 = vcvt.f32.s32 %v2839
      %v2846 = vshll.u32 %v2845, 16
      %v2847 = vadd.s32 %v2846, %v2844
      %v2848 = vcvt.s32.f32 %v2830
      %v2849 = vmul.f32 %v556, %v2848
      %v2850 = vsel %vm748, %v2849, 0.0
      %2851 = vadd.xlane.f32.xlu0 %v2850
      %v2852 = vpop.xlane.xlu0 %2851
      %v2853 = vcvt.f32.s32.to.zero.pseudo %v2852
      %vm2854 = vcmp.eq.s32.totalorder %v2847, %v2853
      %v2855 = vsel %vm2854, 1, 0
      %v2856 = vcvt.s32.f32 %v2855
      %vm2857 = vcmask 7168
      %v2858 = vsel %vm2857, %v2856, 0.0
      %2859 = vadd.xlane.f32.xlu0 %v2858
      %v2860 = vpop.xlane.xlu0 %2859
      %v2861 = vrot.slane %v2860, 4
      %v2862 = vadd.f32 %v2860, %v2861
      %v2863 = vrot.slane %v2862, 2
      %v2864 = vadd.f32 %v2862, %v2863
      %v2865 = vrot.slane %v2864, 1
      %v2866 = vadd.f32 %v2864, %v2865
      %s2867 = vtos %v2866
      %2868 = vmatprep.subr.mxu0 0.0
      %2869 = vmatpush1.msra.mxu0 %v2740
      %2870 = vmatprep.subr.mxu0 0.0
      %2871 = vmatpush1.msra.mxu0 %v2735
      %2872 = vmatprep.subr.mxu0 0.0
      %2873 = vmatpush1.msra.mxu0 %v2730
      %2874 = vmatprep.subr.mxu0 0.0
      %2875 = vmatpush1.msra.mxu0 %v2725
      %2876 = vmatprep.subr.mxu0 0.0
      %2877 = vmatpush1.msra.mxu0 %v2720
      %2878 = vmatprep.subr.mxu0 0.0
      %2879 = vmatpush1.msra.mxu0 %v2715
      %2880 = vmatprep.subr.mxu0 0.0
      %2881 = vmatpush1.msra.mxu0 %v2710
      %2882 = vmatprep.subr.mxu0 0.0
      %2883 = vmatpush1.msra.mxu0 %v2705
      %2884 = vmatprep.subr.mxu0 0.0
      %2885 = vmatpush1.msra.mxu0 %v2700
      %2886 = vmatprep.subr.mxu0 0.0
      %2887 = vmatpush1.msra.mxu0 %v2695
      %2888 = vmatprep.subr.mxu0 0.0
      %2889 = vmatpush1.msra.mxu0 %v2690
      %2890 = vmatprep.subr.mxu0 0.0
      %2891 = vmatpush1.msra.mxu0 %v2685
      %2892 = vmatprep.subr.mxu0 0.0
      %2893 = vmatpush1.msra.mxu0 %v2680
      %2894 = vmatprep.subr.mxu0 0.0
      %2895 = vmatpush1.msra.mxu0 %v2675
      %2896 = vmatprep.subr.mxu0 0.0
      %2897 = vmatpush1.msra.mxu0 %v2670
      %2898 = vmatprep.subr.mxu0 0.0
      %2899 = vmatpush1.msra.mxu0 %v2665
      %2900 = vmatprep.subr.mxu0 0.0
      %2901 = vmatpush2.msra.mxu0 %v2820
      %2902 = vmatprep.subr.mxu0 0.0
      %2903 = vmatpush2.msra.mxu0 %v2815
      %2904 = vmatprep.subr.mxu0 0.0
      %2905 = vmatpush2.msra.mxu0 %v2810
      %2906 = vmatprep.subr.mxu0 0.0
      %2907 = vmatpush2.msra.mxu0 %v2805
      %2908 = vmatprep.subr.mxu0 0.0
      %2909 = vmatpush2.msra.mxu0 %v2800
      %2910 = vmatprep.subr.mxu0 0.0
      %2911 = vmatpush2.msra.mxu0 %v2795
      %2912 = vmatprep.subr.mxu0 0.0
      %2913 = vmatpush2.msra.mxu0 %v2790
      %2914 = vmatprep.subr.mxu0 0.0
      %2915 = vmatpush2.msra.mxu0 %v2785
      %2916 = vmatprep.subr.mxu0 0.0
      %2917 = vmatpush2.msra.mxu0 %v2780
      %2918 = vmatprep.subr.mxu0 0.0
      %2919 = vmatpush2.msra.mxu0 %v2775
      %2920 = vmatprep.subr.mxu0 0.0
      %2921 = vmatpush2.msra.mxu0 %v2770
      %2922 = vmatprep.subr.mxu0 0.0
      %2923 = vmatpush2.msra.mxu0 %v2765
      %2924 = vmatprep.subr.mxu0 0.0
      %2925 = vmatpush2.msra.mxu0 %v2760
      %2926 = vmatprep.subr.mxu0 0.0
      %2927 = vmatpush2.msra.mxu0 %v2755
      %2928 = vmatprep.subr.mxu0 0.0
      %2929 = vmatpush2.msra.mxu0 %v2750
      %2930 = vmatprep.subr.mxu0 0.0
      %2931 = vmatpush2.msra.mxu0 %v2745
      %2932 = vmatprep.mubr.f32.mxu0 %v552
      %2933 = vmatmul.mubr.f32.gmra.mxu0 %v551
      %v2934 = vpop.f32.mrf.mxu0
      %v2935 = vadd.f32 %v2828, %v2934
      %v2936 = vpop.f32.mrf.mxu0
      %2937 = vdwg.mxu0
      %v2938 = vmul.f32 %v2935, %v1488
      %2939 = vmatprep.subr.mxu0 0.0
      %2940 = vmatpush1.xpose.msra.mxu0 0.0
      %2941 = vmatprep.subr.mxu0 0.0
      %2942 = vmatpush1.xpose.msra.mxu0 0.0
      %2943 = vmatprep.subr.mxu0 0.0
      %2944 = vmatpush1.xpose.msra.mxu0 0.0
      %2945 = vmatprep.subr.mxu0 0.0
      %2946 = vmatpush1.xpose.msra.mxu0 0.0
      %2947 = vmatprep.subr.mxu0 0.0
      %2948 = vmatpush1.xpose.msra.mxu0 0.0
      %2949 = vmatprep.subr.mxu0 0.0
      %2950 = vmatpush1.xpose.msra.mxu0 0.0
      %2951 = vmatprep.subr.mxu0 0.0
      %2952 = vmatpush1.xpose.msra.mxu0 0.0
      %2953 = vmatprep.subr.mxu0 0.0
      %2954 = vmatpush1.xpose.msra.mxu0 0.0
      %2955 = vmatprep.subr.mxu0 0.0
      %2956 = vmatpush1.xpose.msra.mxu0 0.0
      %2957 = vmatprep.subr.mxu0 0.0
      %2958 = vmatpush1.xpose.msra.mxu0 0.0
      %2959 = vmatprep.subr.mxu0 0.0
      %2960 = vmatpush1.xpose.msra.mxu0 0.0
      %2961 = vmatprep.subr.mxu0 0.0
      %2962 = vmatpush1.xpose.msra.mxu0 0.0
      %2963 = vmatprep.subr.mxu0 0.0
      %2964 = vmatpush1.xpose.msra.mxu0 0.0
      %2965 = vmatprep.subr.mxu0 0.0
      %2966 = vmatpush1.xpose.msra.mxu0 0.0
      %2967 = vmatprep.subr.mxu0 0.0
      %2968 = vmatpush1.xpose.msra.mxu0 0.0
      %2969 = vmatprep.subr.mxu0 %v2354
      %2970 = vmatpush1.xpose.msra.mxu0 %v1407
      %2971 = vmatprep.subr.mxu0 0.0
      %2972 = vmatpush2.xpose.msra.mxu0 0.0
      %2973 = vmatprep.subr.mxu0 0.0
      %2974 = vmatpush2.xpose.msra.mxu0 0.0
      %2975 = vmatprep.subr.mxu0 0.0
      %2976 = vmatpush2.xpose.msra.mxu0 0.0
      %2977 = vmatprep.subr.mxu0 0.0
      %2978 = vmatpush2.xpose.msra.mxu0 0.0
      %2979 = vmatprep.subr.mxu0 0.0
      %2980 = vmatpush2.xpose.msra.mxu0 0.0
      %2981 = vmatprep.subr.mxu0 0.0
      %2982 = vmatpush2.xpose.msra.mxu0 0.0
      %2983 = vmatprep.subr.mxu0 0.0
      %2984 = vmatpush2.xpose.msra.mxu0 0.0
      %2985 = vmatprep.subr.mxu0 0.0
      %2986 = vmatpush2.xpose.msra.mxu0 0.0
      %2987 = vmatprep.subr.mxu0 0.0
      %2988 = vmatpush2.xpose.msra.mxu0 0.0
      %2989 = vmatprep.subr.mxu0 0.0
      %2990 = vmatpush2.xpose.msra.mxu0 0.0
      %2991 = vmatprep.subr.mxu0 0.0
      %2992 = vmatpush2.xpose.msra.mxu0 0.0
      %2993 = vmatprep.subr.mxu0 0.0
      %2994 = vmatpush2.xpose.msra.mxu0 0.0
      %2995 = vmatprep.subr.mxu0 0.0
      %2996 = vmatpush2.xpose.msra.mxu0 0.0
      %2997 = vmatprep.subr.mxu0 0.0
      %2998 = vmatpush2.xpose.msra.mxu0 0.0
      %2999 = vmatprep.subr.mxu0 0.0
      %3000 = vmatpush2.xpose.msra.mxu0 0.0
      %3001 = vmatprep.subr.mxu0 0.0
      %3002 = vmatpush2.xpose.msra.mxu0 0.0
      %3003 = vmatprep.mubr.f32.mxu0 %v1489
      %3004 = vmatmul.mubr.f32.gmra.mxu0 %v2938
      %v3005 = vpop.f32.mrf.mxu0
      %v3006 = vadd.f32 %v2363, %v3005
      %v3007 = vpop.f32.mrf.mxu0
      %3008 = vdwg.mxu0
      %v3009 = vmul.f32 %v1576, %v3006
      %v3010 = vsel %vm748, %v3009, 0.0
      %3011 = vadd.xlane.f32.xlu0 %v3010
      %v3012 = vpop.xlane.xlu0 %3011
      %v3013 = vsub.f32 %v3006, %v3012
      %v3014 = vmul.f32 %v1576, %v3013
      %v3015 = vmul.f32 %v3014, %v761
      %3016 = vxpose.xlu0.b32.start [1/16] %v3015, 128
      %3017 = vxpose.xlu0.b32.cont [2/16] %v1578, 128
      %3018 = vxpose.xlu0.b32.cont [3/16] 0.0, 128
      %3019 = vxpose.xlu0.b32.cont [4/16] 0.0, 128
      %3020 = vxpose.xlu0.b32.cont [5/16] 0.0, 128
      %3021 = vxpose.xlu0.b32.cont [6/16] 0.0, 128
      %3022 = vxpose.xlu0.b32.cont [7/16] 0.0, 128
      %3023 = vxpose.xlu0.b32.cont [8/16] 0.0, 128
      %3024 = vxpose.xlu0.b32.cont [9/16] 0.0, 128
      %3025 = vxpose.xlu0.b32.cont [10/16] 0.0, 128
      %3026 = vxpose.xlu0.b32.cont [11/16] 0.0, 128
      %3027 = vxpose.xlu0.b32.cont [12/16] 0.0, 128
      %3028 = vxpose.xlu0.b32.cont [13/16] 0.0, 128
      %3029 = vxpose.xlu0.b32.cont [14/16] 0.0, 128
      %3030 = vxpose.xlu0.b32.cont [15/16] 0.0, 128
      %3031 = vxpose.xlu0.b32.end [16/16] 0.0, 128
      %v3032 = vpop.trf.xlu0
      %v3033 = vpop.trf.xlu0
      %v3034 = vpop.trf.xlu0
      %v3035 = vpop.trf.xlu0
      %v3036 = vpop.trf.xlu0
      %v3037 = vpop.trf.xlu0
      %v3038 = vpop.trf.xlu0
      %v3039 = vpop.trf.xlu0
      %v3040 = vpop.trf.xlu0
      %v3041 = vpop.trf.xlu0
      %v3042 = vpop.trf.xlu0
      %v3043 = vpop.trf.xlu0
      %v3044 = vpop.trf.xlu0
      %v3045 = vpop.trf.xlu0
      %v3046 = vpop.trf.xlu0
      %v3047 = vpop.trf.xlu0
      %vm3048 = vcmask 130048
      %v3050 = vsel %vm3048, %v3032, 0
      %3052 = vmatprep.subr.mxu0 0.0
      %3053 = vmatpush1.msra.mxu0 0.0
      %3054 = vmatprep.subr.mxu0 0.0
      %3055 = vmatpush1.msra.mxu0 0.0
      %3056 = vmatprep.subr.mxu0 0.0
      %3057 = vmatpush1.msra.mxu0 0.0
      %3058 = vmatprep.subr.mxu0 0.0
      %3059 = vmatpush1.msra.mxu0 0.0
      %3060 = vmatprep.subr.mxu0 0.0
      %3061 = vmatpush1.msra.mxu0 0.0
      %3062 = vmatprep.subr.mxu0 0.0
      %3063 = vmatpush1.msra.mxu0 0.0
      %3064 = vmatprep.subr.mxu0 0.0
      %3065 = vmatpush1.msra.mxu0 0.0
      %3066 = vmatprep.subr.mxu0 0.0
      %3067 = vmatpush1.msra.mxu0 0.0
      %3068 = vmatprep.subr.mxu0 0.0
      %3069 = vmatpush1.msra.mxu0 0.0
      %3070 = vmatprep.subr.mxu0 0.0
      %3071 = vmatpush1.msra.mxu0 0.0
      %3072 = vmatprep.subr.mxu0 0.0
      %3073 = vmatpush1.msra.mxu0 0.0
      %3074 = vmatprep.subr.mxu0 0.0
      %3075 = vmatpush1.msra.mxu0 0.0
      %3076 = vmatprep.subr.mxu0 0.0
      %3077 = vmatpush1.msra.mxu0 0.0
      %3078 = vmatprep.subr.mxu0 0.0
      %3079 = vmatpush1.msra.mxu0 0.0
      %3080 = vmatprep.subr.mxu0 0.0
      %3081 = vmatpush1.msra.mxu0 %v2938
      %3082 = vmatprep.subr.mxu0 0.0
      %3083 = vmatpush1.msra.mxu0 %v1489
      %3084 = vmatprep.subr.mxu0 0.0
      %3085 = vmatpush2.msra.mxu0 0.0
      %3086 = vmatprep.subr.mxu0 0.0
      %3087 = vmatpush2.msra.mxu0 0.0
      %3088 = vmatprep.subr.mxu0 0.0
      %3089 = vmatpush2.msra.mxu0 0.0
      %3090 = vmatprep.subr.mxu0 0.0
      %3091 = vmatpush2.msra.mxu0 0.0
      %3092 = vmatprep.subr.mxu0 0.0
      %3093 = vmatpush2.msra.mxu0 0.0
      %3094 = vmatprep.subr.mxu0 0.0
      %3095 = vmatpush2.msra.mxu0 0.0
      %3096 = vmatprep.subr.mxu0 0.0
      %3097 = vmatpush2.msra.mxu0 0.0
      %3098 = vmatprep.subr.mxu0 0.0
      %3099 = vmatpush2.msra.mxu0 0.0
      %3100 = vmatprep.subr.mxu0 0.0
      %3101 = vmatpush2.msra.mxu0 0.0
      %3102 = vmatprep.subr.mxu0 0.0
      %3103 = vmatpush2.msra.mxu0 0.0
      %3104 = vmatprep.subr.mxu0 0.0
      %3105 = vmatpush2.msra.mxu0 0.0
      %3106 = vmatprep.subr.mxu0 0.0
      %3107 = vmatpush2.msra.mxu0 0.0
      %3108 = vmatprep.subr.mxu0 0.0
      %3109 = vmatpush2.msra.mxu0 0.0
      %3110 = vmatprep.subr.mxu0 0.0
      %3111 = vmatpush2.msra.mxu0 0.0
      %3112 = vmatprep.subr.mxu0 0.0
      %3113 = vmatpush2.msra.mxu0 0.0
      %3114 = vmatprep.subr.mxu0 0.0
      %3115 = vmatpush2.msra.mxu0 0.0
      %3116 = vmatprep.mubr.f32.mxu0 0.0
      %3117 = vmatmul.mubr.f32.gmra.mxu0 %v3050
      %v3118 = vpop.f32.mrf.mxu0
      %v3119 = vadd.f32 0.0, %v3118
      %v3120 = vpop.f32.mrf.mxu0
      %3121 = vdwg.mxu0
      %v3122 = vsel %vm748, %v3015, 0.0
      %v3123 = vrot.slane %v3122, 4
      %v3124 = vadd.f32 %v3122, %v3123
      %v3125 = vrot.slane %v3124, 2
      %v3126 = vadd.f32 %v3124, %v3125
      %v3127 = vrot.slane %v3126, 1
      %v3128 = vadd.f32 %v3126, %v3127
      %3129 = vmatprep.subr.mxu0 0.0
      %3130 = vmatpush1.msra.mxu0 0.0
      %3131 = vmatprep.subr.mxu0 0.0
      %3132 = vmatpush1.msra.mxu0 0.0
      %3133 = vmatprep.subr.mxu0 0.0
      %3134 = vmatpush1.msra.mxu0 0.0
      %3135 = vmatprep.subr.mxu0 0.0
      %3136 = vmatpush1.msra.mxu0 0.0
      %3137 = vmatprep.subr.mxu0 0.0
      %3138 = vmatpush1.msra.mxu0 0.0
      %3139 = vmatprep.subr.mxu0 0.0
      %3140 = vmatpush1.msra.mxu0 0.0
      %3141 = vmatprep.subr.mxu0 0.0
      %3142 = vmatpush1.msra.mxu0 0.0
      %3143 = vmatprep.subr.mxu0 0.0
      %3144 = vmatpush1.msra.mxu0 0.0
      %3145 = vmatprep.subr.mxu0 0.0
      %3146 = vmatpush1.msra.mxu0 0.0
      %3147 = vmatprep.subr.mxu0 0.0
      %3148 = vmatpush1.msra.mxu0 0.0
      %3149 = vmatprep.subr.mxu0 0.0
      %3150 = vmatpush1.msra.mxu0 0.0
      %3151 = vmatprep.subr.mxu0 0.0
      %3152 = vmatpush1.msra.mxu0 0.0
      %3153 = vmatprep.subr.mxu0 0.0
      %3154 = vmatpush1.msra.mxu0 0.0
      %3155 = vmatprep.subr.mxu0 0.0
      %3156 = vmatpush1.msra.mxu0 0.0
      %3157 = vmatprep.subr.mxu0 0.0
      %3158 = vmatpush1.msra.mxu0 0.0
      %3159 = vmatprep.subr.mxu0 0.0
      %3160 = vmatpush1.msra.mxu0 %v2354
      %3161 = vmatprep.subr.mxu0 0.0
      %3162 = vmatpush2.msra.mxu0 0.0
      %3163 = vmatprep.subr.mxu0 0.0
      %3164 = vmatpush2.msra.mxu0 0.0
      %3165 = vmatprep.subr.mxu0 0.0
      %3166 = vmatpush2.msra.mxu0 0.0
      %3167 = vmatprep.subr.mxu0 0.0
      %3168 = vmatpush2.msra.mxu0 0.0
      %3169 = vmatprep.subr.mxu0 0.0
      %3170 = vmatpush2.msra.mxu0 0.0
      %3171 = vmatprep.subr.mxu0 0.0
      %3172 = vmatpush2.msra.mxu0 0.0
      %3173 = vmatprep.subr.mxu0 0.0
      %3174 = vmatpush2.msra.mxu0 0.0
      %3175 = vmatprep.subr.mxu0 0.0
      %3176 = vmatpush2.msra.mxu0 0.0
      %3177 = vmatprep.subr.mxu0 0.0
      %3178 = vmatpush2.msra.mxu0 0.0
      %3179 = vmatprep.subr.mxu0 0.0
      %3180 = vmatpush2.msra.mxu0 0.0
      %3181 = vmatprep.subr.mxu0 0.0
      %3182 = vmatpush2.msra.mxu0 0.0
      %3183 = vmatprep.subr.mxu0 0.0
      %3184 = vmatpush2.msra.mxu0 0.0
      %3185 = vmatprep.subr.mxu0 0.0
      %3186 = vmatpush2.msra.mxu0 0.0
      %3187 = vmatprep.subr.mxu0 0.0
      %3188 = vmatpush2.msra.mxu0 0.0
      %3189 = vmatprep.subr.mxu0 0.0
      %3190 = vmatpush2.msra.mxu0 0.0
      %3191 = vmatprep.subr.mxu0 0.0
      %3192 = vmatpush2.msra.mxu0 0.0
      %3193 = vmatprep.mubr.f32.mxu0 0.0
      %3194 = vmatmul.mubr.f32.gmra.mxu0 %v1692
      %v3195 = vpop.f32.mrf.mxu0
      %v3196 = vadd.f32 0.0, %v3195
      %v3197 = vpop.f32.mrf.mxu0
      %3198 = vdwg.mxu0
      %v3200 = vsel %vm748, %v3015, 0
      %3202 = vmatprep.subr.mxu0 0.0
      %3203 = vmatpush1.msra.mxu0 0.0
      %3204 = vmatprep.subr.mxu0 0.0
      %3205 = vmatpush1.msra.mxu0 0.0
      %3206 = vmatprep.subr.mxu0 0.0
      %3207 = vmatpush1.msra.mxu0 0.0
      %3208 = vmatprep.subr.mxu0 0.0
      %3209 = vmatpush1.msra.mxu0 0.0
      %3210 = vmatprep.subr.mxu0 0.0
      %3211 = vmatpush1.msra.mxu0 0.0
      %3212 = vmatprep.subr.mxu0 0.0
      %3213 = vmatpush1.msra.mxu0 0.0
      %3214 = vmatprep.subr.mxu0 0.0
      %3215 = vmatpush1.msra.mxu0 0.0
      %3216 = vmatprep.subr.mxu0 0.0
      %3217 = vmatpush1.msra.mxu0 0.0
      %3218 = vmatprep.subr.mxu0 0.0
      %3219 = vmatpush1.msra.mxu0 0.0
      %3220 = vmatprep.subr.mxu0 0.0
      %3221 = vmatpush1.msra.mxu0 0.0
      %3222 = vmatprep.subr.mxu0 0.0
      %3223 = vmatpush1.msra.mxu0 0.0
      %3224 = vmatprep.subr.mxu0 0.0
      %3225 = vmatpush1.msra.mxu0 0.0
      %3226 = vmatprep.subr.mxu0 0.0
      %3227 = vmatpush1.msra.mxu0 0.0
      %3228 = vmatprep.subr.mxu0 0.0
      %3229 = vmatpush1.msra.mxu0 0.0
      %3230 = vmatprep.subr.mxu0 0.0
      %3231 = vmatpush1.msra.mxu0 0.0
      %3232 = vmatprep.subr.mxu0 0.0
      %3233 = vmatpush1.msra.mxu0 %v1407
      %3234 = vmatprep.subr.mxu0 0.0
      %3235 = vmatpush2.msra.mxu0 0.0
      %3236 = vmatprep.subr.mxu0 0.0
      %3237 = vmatpush2.msra.mxu0 0.0
      %3238 = vmatprep.subr.mxu0 0.0
      %3239 = vmatpush2.msra.mxu0 0.0
      %3240 = vmatprep.subr.mxu0 0.0
      %3241 = vmatpush2.msra.mxu0 0.0
      %3242 = vmatprep.subr.mxu0 0.0
      %3243 = vmatpush2.msra.mxu0 0.0
      %3244 = vmatprep.subr.mxu0 0.0
      %3245 = vmatpush2.msra.mxu0 0.0
      %3246 = vmatprep.subr.mxu0 0.0
      %3247 = vmatpush2.msra.mxu0 0.0
      %3248 = vmatprep.subr.mxu0 0.0
      %3249 = vmatpush2.msra.mxu0 0.0
      %3250 = vmatprep.subr.mxu0 0.0
      %3251 = vmatpush2.msra.mxu0 0.0
      %3252 = vmatprep.subr.mxu0 0.0
      %3253 = vmatpush2.msra.mxu0 0.0
      %3254 = vmatprep.subr.mxu0 0.0
      %3255 = vmatpush2.msra.mxu0 0.0
      %3256 = vmatprep.subr.mxu0 0.0
      %3257 = vmatpush2.msra.mxu0 0.0
      %3258 = vmatprep.subr.mxu0 0.0
      %3259 = vmatpush2.msra.mxu0 0.0
      %3260 = vmatprep.subr.mxu0 0.0
      %3261 = vmatpush2.msra.mxu0 0.0
      %3262 = vmatprep.subr.mxu0 0.0
      %3263 = vmatpush2.msra.mxu0 0.0
      %3264 = vmatprep.subr.mxu0 0.0
      %3265 = vmatpush2.msra.mxu0 0.0
      %3266 = vmatprep.mubr.f32.mxu0 0.0
      %3267 = vmatmul.mubr.f32.gmra.mxu0 %v3200
      %v3268 = vpop.f32.mrf.mxu0
      %v3269 = vadd.f32 %v3196, %v3268
      %v3270 = vpop.f32.mrf.mxu0
      %3271 = vdwg.mxu0
      %v3272 = vmul.f32 %v3269, %v1488
      %3273 = vmatprep.subr.mxu0 0.0
      %3274 = vmatpush1.msra.mxu0 0.0
      %3275 = vmatprep.subr.mxu0 0.0
      %3276 = vmatpush1.msra.mxu0 0.0
      %3277 = vmatprep.subr.mxu0 0.0
      %3278 = vmatpush1.msra.mxu0 0.0
      %3279 = vmatprep.subr.mxu0 0.0
      %3280 = vmatpush1.msra.mxu0 0.0
      %3281 = vmatprep.subr.mxu0 0.0
      %3282 = vmatpush1.msra.mxu0 0.0
      %3283 = vmatprep.subr.mxu0 0.0
      %3284 = vmatpush1.msra.mxu0 0.0
      %3285 = vmatprep.subr.mxu0 0.0
      %3286 = vmatpush1.msra.mxu0 0.0
      %3287 = vmatprep.subr.mxu0 0.0
      %3288 = vmatpush1.msra.mxu0 0.0
      %3289 = vmatprep.subr.mxu0 0.0
      %3290 = vmatpush1.msra.mxu0 0.0
      %3291 = vmatprep.subr.mxu0 0.0
      %3292 = vmatpush1.msra.mxu0 0.0
      %3293 = vmatprep.subr.mxu0 0.0
      %3294 = vmatpush1.msra.mxu0 0.0
      %3295 = vmatprep.subr.mxu0 0.0
      %3296 = vmatpush1.msra.mxu0 0.0
      %3297 = vmatprep.subr.mxu0 0.0
      %3298 = vmatpush1.msra.mxu0 0.0
      %3299 = vmatprep.subr.mxu0 0.0
      %3300 = vmatpush1.msra.mxu0 0.0
      %3301 = vmatprep.subr.mxu0 0.0
      %3302 = vmatpush1.msra.mxu0 0.0
      %3303 = vmatprep.subr.mxu0 0.0
      %3304 = vmatpush1.msra.mxu0 %v3272
      %3305 = vmatprep.subr.mxu0 0.0
      %3306 = vmatpush2.msra.mxu0 0.0
      %3307 = vmatprep.subr.mxu0 0.0
      %3308 = vmatpush2.msra.mxu0 0.0
      %3309 = vmatprep.subr.mxu0 0.0
      %3310 = vmatpush2.msra.mxu0 0.0
      %3311 = vmatprep.subr.mxu0 0.0
      %3312 = vmatpush2.msra.mxu0 0.0
      %3313 = vmatprep.subr.mxu0 0.0
      %3314 = vmatpush2.msra.mxu0 0.0
      %3315 = vmatprep.subr.mxu0 0.0
      %3316 = vmatpush2.msra.mxu0 0.0
      %3317 = vmatprep.subr.mxu0 0.0
      %3318 = vmatpush2.msra.mxu0 0.0
      %3319 = vmatprep.subr.mxu0 0.0
      %3320 = vmatpush2.msra.mxu0 0.0
      %3321 = vmatprep.subr.mxu0 0.0
      %3322 = vmatpush2.msra.mxu0 0.0
      %3323 = vmatprep.subr.mxu0 0.0
      %3324 = vmatpush2.msra.mxu0 0.0
      %3325 = vmatprep.subr.mxu0 0.0
      %3326 = vmatpush2.msra.mxu0 0.0
      %3327 = vmatprep.subr.mxu0 0.0
      %3328 = vmatpush2.msra.mxu0 0.0
      %3329 = vmatprep.subr.mxu0 0.0
      %3330 = vmatpush2.msra.mxu0 0.0
      %3331 = vmatprep.subr.mxu0 0.0
      %3332 = vmatpush2.msra.mxu0 0.0
      %3333 = vmatprep.subr.mxu0 0.0
      %3334 = vmatpush2.msra.mxu0 0.0
      %3335 = vmatprep.subr.mxu0 0.0
      %3336 = vmatpush2.msra.mxu0 0.0
      %3337 = vmatprep.mubr.f32.mxu0 0.0
      %3338 = vmatmul.mubr.f32.gmra.mxu0 %v1014
      %v3339 = vpop.f32.mrf.mxu0
      %v3340 = vadd.f32 0.0, %v3339
      %v3341 = vpop.f32.mrf.mxu0
      %3342 = vmatprep.mubr.f32.mxu0 0.0
      %3343 = vmatmul.mubr.f32.gmra.mxu0 %v1017
      %v3344 = vpop.f32.mrf.mxu0
      %v3345 = vadd.f32 0.0, %v3344
      %v3346 = vpop.f32.mrf.mxu0
      %3347 = vmatprep.mubr.f32.mxu0 0.0
      %3348 = vmatmul.mubr.f32.gmra.mxu0 %v1020
      %v3349 = vpop.f32.mrf.mxu0
      %v3350 = vadd.f32 0.0, %v3349
      %v3351 = vpop.f32.mrf.mxu0
      %3352 = vmatprep.mubr.f32.mxu0 0.0
      %3353 = vmatmul.mubr.f32.gmra.mxu0 %v1023
      %v3354 = vpop.f32.mrf.mxu0
      %v3355 = vadd.f32 0.0, %v3354
      %v3356 = vpop.f32.mrf.mxu0
      %3357 = vmatprep.mubr.f32.mxu0 0.0
      %3358 = vmatmul.mubr.f32.gmra.mxu0 %v1026
      %v3359 = vpop.f32.mrf.mxu0
      %v3360 = vadd.f32 0.0, %v3359
      %v3361 = vpop.f32.mrf.mxu0
      %3362 = vmatprep.mubr.f32.mxu0 0.0
      %3363 = vmatmul.mubr.f32.gmra.mxu0 %v1029
      %v3364 = vpop.f32.mrf.mxu0
      %v3365 = vadd.f32 0.0, %v3364
      %v3366 = vpop.f32.mrf.mxu0
      %3367 = vmatprep.mubr.f32.mxu0 0.0
      %3368 = vmatmul.mubr.f32.gmra.mxu0 %v1032
      %v3369 = vpop.f32.mrf.mxu0
      %v3370 = vadd.f32 0.0, %v3369
      %v3371 = vpop.f32.mrf.mxu0
      %3372 = vmatprep.mubr.f32.mxu0 0.0
      %3373 = vmatmul.mubr.f32.gmra.mxu0 %v1035
      %v3374 = vpop.f32.mrf.mxu0
      %v3375 = vadd.f32 0.0, %v3374
      %v3376 = vpop.f32.mrf.mxu0
      %3377 = vmatprep.mubr.f32.mxu0 0.0
      %3378 = vmatmul.mubr.f32.gmra.mxu0 %v1038
      %v3379 = vpop.f32.mrf.mxu0
      %v3380 = vadd.f32 0.0, %v3379
      %v3381 = vpop.f32.mrf.mxu0
      %3382 = vmatprep.mubr.f32.mxu0 0.0
      %3383 = vmatmul.mubr.f32.gmra.mxu0 %v1041
      %v3384 = vpop.f32.mrf.mxu0
      %v3385 = vadd.f32 0.0, %v3384
      %v3386 = vpop.f32.mrf.mxu0
      %3387 = vmatprep.mubr.f32.mxu0 0.0
      %3388 = vmatmul.mubr.f32.gmra.mxu0 %v1044
      %v3389 = vpop.f32.mrf.mxu0
      %v3390 = vadd.f32 0.0, %v3389
      %v3391 = vpop.f32.mrf.mxu0
      %3392 = vmatprep.mubr.f32.mxu0 0.0
      %3393 = vmatmul.mubr.f32.gmra.mxu0 %v1047
      %v3394 = vpop.f32.mrf.mxu0
      %v3395 = vadd.f32 0.0, %v3394
      %v3396 = vpop.f32.mrf.mxu0
      %3397 = vmatprep.mubr.f32.mxu0 0.0
      %3398 = vmatmul.mubr.f32.gmra.mxu0 %v1050
      %v3399 = vpop.f32.mrf.mxu0
      %v3400 = vadd.f32 0.0, %v3399
      %v3401 = vpop.f32.mrf.mxu0
      %3402 = vmatprep.mubr.f32.mxu0 0.0
      %3403 = vmatmul.mubr.f32.gmra.mxu0 %v1053
      %v3404 = vpop.f32.mrf.mxu0
      %v3405 = vadd.f32 0.0, %v3404
      %v3406 = vpop.f32.mrf.mxu0
      %3407 = vmatprep.mubr.f32.mxu0 0.0
      %3408 = vmatmul.mubr.f32.gmra.mxu0 %v1056
      %v3409 = vpop.f32.mrf.mxu0
      %v3410 = vadd.f32 0.0, %v3409
      %v3411 = vpop.f32.mrf.mxu0
      %3412 = vmatprep.mubr.f32.mxu0 0.0
      %3413 = vmatmul.mubr.f32.gmra.mxu0 %v1059
      %v3414 = vpop.f32.mrf.mxu0
      %v3415 = vadd.f32 0.0, %v3414
      %v3416 = vpop.f32.mrf.mxu0
      %3417 = vmatprep.mubr.f32.mxu0 0.0
      %3418 = vmatmul.mubr.f32.gmra.mxu0 %v1062
      %v3419 = vpop.f32.mrf.mxu0
      %v3420 = vadd.f32 0.0, %v3419
      %v3421 = vpop.f32.mrf.mxu0
      %3422 = vmatprep.mubr.f32.mxu0 0.0
      %3423 = vmatmul.mubr.f32.gmra.mxu0 %v1065
      %v3424 = vpop.f32.mrf.mxu0
      %v3425 = vadd.f32 0.0, %v3424
      %v3426 = vpop.f32.mrf.mxu0
      %3427 = vmatprep.mubr.f32.mxu0 0.0
      %3428 = vmatmul.mubr.f32.gmra.mxu0 %v1068
      %v3429 = vpop.f32.mrf.mxu0
      %v3430 = vadd.f32 0.0, %v3429
      %v3431 = vpop.f32.mrf.mxu0
      %3432 = vmatprep.mubr.f32.mxu0 0.0
      %3433 = vmatmul.mubr.f32.gmra.mxu0 %v1071
      %v3434 = vpop.f32.mrf.mxu0
      %v3435 = vadd.f32 0.0, %v3434
      %v3436 = vpop.f32.mrf.mxu0
      %3437 = vmatprep.mubr.f32.mxu0 0.0
      %3438 = vmatmul.mubr.f32.gmra.mxu0 %v1074
      %v3439 = vpop.f32.mrf.mxu0
      %v3440 = vadd.f32 0.0, %v3439
      %v3441 = vpop.f32.mrf.mxu0
      %3442 = vmatprep.mubr.f32.mxu0 0.0
      %3443 = vmatmul.mubr.f32.gmra.mxu0 %v1077
      %v3444 = vpop.f32.mrf.mxu0
      %v3445 = vadd.f32 0.0, %v3444
      %v3446 = vpop.f32.mrf.mxu0
      %3447 = vmatprep.mubr.f32.mxu0 0.0
      %3448 = vmatmul.mubr.f32.gmra.mxu0 %v1080
      %v3449 = vpop.f32.mrf.mxu0
      %v3450 = vadd.f32 0.0, %v3449
      %v3451 = vpop.f32.mrf.mxu0
      %3452 = vmatprep.mubr.f32.mxu0 0.0
      %3453 = vmatmul.mubr.f32.gmra.mxu0 %v1083
      %v3454 = vpop.f32.mrf.mxu0
      %v3455 = vadd.f32 0.0, %v3454
      %v3456 = vpop.f32.mrf.mxu0
      %3457 = vmatprep.mubr.f32.mxu0 0.0
      %3458 = vmatmul.mubr.f32.gmra.mxu0 %v1086
      %v3459 = vpop.f32.mrf.mxu0
      %v3460 = vadd.f32 0.0, %v3459
      %v3461 = vpop.f32.mrf.mxu0
      %3462 = vmatprep.mubr.f32.mxu0 0.0
      %3463 = vmatmul.mubr.f32.gmra.mxu0 %v1089
      %v3464 = vpop.f32.mrf.mxu0
      %v3465 = vadd.f32 0.0, %v3464
      %v3466 = vpop.f32.mrf.mxu0
      %3467 = vmatprep.mubr.f32.mxu0 0.0
      %3468 = vmatmul.mubr.f32.gmra.mxu0 %v1092
      %v3469 = vpop.f32.mrf.mxu0
      %v3470 = vadd.f32 0.0, %v3469
      %v3471 = vpop.f32.mrf.mxu0
      %3472 = vmatprep.mubr.f32.mxu0 0.0
      %3473 = vmatmul.mubr.f32.gmra.mxu0 %v1095
      %v3474 = vpop.f32.mrf.mxu0
      %v3475 = vadd.f32 0.0, %v3474
      %v3476 = vpop.f32.mrf.mxu0
      %3477 = vmatprep.mubr.f32.mxu0 0.0
      %3478 = vmatmul.mubr.f32.gmra.mxu0 %v1098
      %v3479 = vpop.f32.mrf.mxu0
      %v3480 = vadd.f32 0.0, %v3479
      %v3481 = vpop.f32.mrf.mxu0
      %3482 = vmatprep.mubr.f32.mxu0 0.0
      %3483 = vmatmul.mubr.f32.gmra.mxu0 %v1101
      %v3484 = vpop.f32.mrf.mxu0
      %v3485 = vadd.f32 0.0, %v3484
      %v3486 = vpop.f32.mrf.mxu0
      %3487 = vmatprep.mubr.f32.mxu0 0.0
      %3488 = vmatmul.mubr.f32.gmra.mxu0 %v1104
      %v3489 = vpop.f32.mrf.mxu0
      %v3490 = vadd.f32 0.0, %v3489
      %v3491 = vpop.f32.mrf.mxu0
      %3492 = vmatprep.mubr.f32.mxu0 0.0
      %3493 = vmatmul.mubr.f32.gmra.mxu0 %v1107
      %v3494 = vpop.f32.mrf.mxu0
      %v3495 = vadd.f32 0.0, %v3494
      %v3496 = vpop.f32.mrf.mxu0
      %3497 = vdwg.mxu0
      %v3498 = vrot.slane %v3272, 4
      %v3499 = vadd.f32 %v3272, %v3498
      %v3500 = vrot.slane %v3499, 2
      %v3501 = vadd.f32 %v3499, %v3500
      %v3502 = vrot.slane %v3501, 1
      %v3503 = vadd.f32 %v3501, %v3502
      %v3504 = vmul.f32 %v3340, 0.4
      %v3505 = vmul.f32 %v3345, 0.4
      %v3506 = vmul.f32 %v3350, 0.4
      %v3507 = vmul.f32 %v3355, 0.4
      %v3508 = vmul.f32 %v3360, 0.4
      %v3509 = vmul.f32 %v3365, 0.4
      %v3510 = vmul.f32 %v3370, 0.4
      %v3511 = vmul.f32 %v3375, 0.4
      %v3512 = vmul.f32 %v3380, 0.4
      %v3513 = vmul.f32 %v3385, 0.4
      %v3514 = vmul.f32 %v3390, 0.4
      %v3515 = vmul.f32 %v3395, 0.4
      %v3516 = vmul.f32 %v3400, 0.4
      %v3517 = vmul.f32 %v3405, 0.4
      %v3518 = vmul.f32 %v3410, 0.4
      %v3519 = vmul.f32 %v3415, 0.4
      %v3520 = vmul.f32 %v3420, 0.4
      %v3521 = vmul.f32 %v3425, 0.4
      %v3522 = vmul.f32 %v3430, 0.4
      %v3523 = vmul.f32 %v3435, 0.4
      %v3524 = vmul.f32 %v3440, 0.4
      %v3525 = vmul.f32 %v3445, 0.4
      %v3526 = vmul.f32 %v3450, 0.4
      %v3527 = vmul.f32 %v3455, 0.4
      %v3528 = vmul.f32 %v3460, 0.4
      %v3529 = vmul.f32 %v3465, 0.4
      %v3530 = vmul.f32 %v3470, 0.4
      %v3531 = vmul.f32 %v3475, 0.4
      %v3532 = vmul.f32 %v3480, 0.4
      %v3533 = vmul.f32 %v3485, 0.4
      %v3534 = vmul.f32 %v3490, 0.4
      %v3535 = vmul.f32 %v3495, 0.4
      %v3536 = vsub.f32 %v2665, %v3504
      %v3537 = vsub.f32 %v2670, %v3505
      %v3538 = vsub.f32 %v2675, %v3506
      %v3539 = vsub.f32 %v2680, %v3507
      %v3540 = vsub.f32 %v2685, %v3508
      %v3541 = vsub.f32 %v2690, %v3509
      %v3542 = vsub.f32 %v2695, %v3510
      %v3543 = vsub.f32 %v2700, %v3511
      %v3544 = vsub.f32 %v2705, %v3512
      %v3545 = vsub.f32 %v2710, %v3513
      %v3546 = vsub.f32 %v2715, %v3514
      %v3547 = vsub.f32 %v2720, %v3515
      %v3548 = vsub.f32 %v2725, %v3516
      %v3549 = vsub.f32 %v2730, %v3517
      %v3550 = vsub.f32 %v2735, %v3518
      %v3551 = vsub.f32 %v2740, %v3519
      %v3552 = vsub.f32 %v2745, %v3520
      %v3553 = vsub.f32 %v2750, %v3521
      %v3554 = vsub.f32 %v2755, %v3522
      %v3555 = vsub.f32 %v2760, %v3523
      %v3556 = vsub.f32 %v2765, %v3524
      %v3557 = vsub.f32 %v2770, %v3525
      %v3558 = vsub.f32 %v2775, %v3526
      %v3559 = vsub.f32 %v2780, %v3527
      %v3560 = vsub.f32 %v2785, %v3528
      %v3561 = vsub.f32 %v2790, %v3529
      %v3562 = vsub.f32 %v2795, %v3530
      %v3563 = vsub.f32 %v2800, %v3531
      %v3564 = vsub.f32 %v2805, %v3532
      %v3565 = vsub.f32 %v2810, %v3533
      %v3566 = vsub.f32 %v2815, %v3534
      %v3567 = vsub.f32 %v2820, %v3535
      %v3568 = vmul.f32 %v3503, 0.4
      %v3569 = vsub.f32 %v2828, %v3568
      %v3570 = vmul.f32 %v3119, 0.4
      %v3571 = vsub.f32 %v2354, %v3570
      %v3572 = vmul.f32 %v3128, 0.4
      %v3573 = vsub.f32 %v2363, %v3572
      %3574 = vmatprep.subr.mxu0 0.0
      %3575 = vmatpush1.msra.mxu0 %v3551
      %3576 = vmatprep.subr.mxu0 0.0
      %3577 = vmatpush1.msra.mxu0 %v3550
      %3578 = vmatprep.subr.mxu0 0.0
      %3579 = vmatpush1.msra.mxu0 %v3549
      %3580 = vmatprep.subr.mxu0 0.0
      %3581 = vmatpush1.msra.mxu0 %v3548
      %3582 = vmatprep.subr.mxu0 0.0
      %3583 = vmatpush1.msra.mxu0 %v3547
      %3584 = vmatprep.subr.mxu0 0.0
      %3585 = vmatpush1.msra.mxu0 %v3546
      %3586 = vmatprep.subr.mxu0 0.0
      %3587 = vmatpush1.msra.mxu0 %v3545
      %3588 = vmatprep.subr.mxu0 0.0
      %3589 = vmatpush1.msra.mxu0 %v3544
      %3590 = vmatprep.subr.mxu0 0.0
      %3591 = vmatpush1.msra.mxu0 %v3543
      %3592 = vmatprep.subr.mxu0 0.0
      %3593 = vmatpush1.msra.mxu0 %v3542
      %3594 = vmatprep.subr.mxu0 0.0
      %3595 = vmatpush1.msra.mxu0 %v3541
      %3596 = vmatprep.subr.mxu0 0.0
      %3597 = vmatpush1.msra.mxu0 %v3540
      %3598 = vmatprep.subr.mxu0 0.0
      %3599 = vmatpush1.msra.mxu0 %v3539
      %3600 = vmatprep.subr.mxu0 0.0
      %3601 = vmatpush1.msra.mxu0 %v3538
      %3602 = vmatprep.subr.mxu0 0.0
      %3603 = vmatpush1.msra.mxu0 %v3537
      %3604 = vmatprep.subr.mxu0 0.0
      %3605 = vmatpush1.msra.mxu0 %v3536
      %3606 = vmatprep.subr.mxu0 0.0
      %3607 = vmatpush2.msra.mxu0 %v3567
      %3608 = vmatprep.subr.mxu0 0.0
      %3609 = vmatpush2.msra.mxu0 %v3566
      %3610 = vmatprep.subr.mxu0 0.0
      %3611 = vmatpush2.msra.mxu0 %v3565
      %3612 = vmatprep.subr.mxu0 0.0
      %3613 = vmatpush2.msra.mxu0 %v3564
      %3614 = vmatprep.subr.mxu0 0.0
      %3615 = vmatpush2.msra.mxu0 %v3563
      %3616 = vmatprep.subr.mxu0 0.0
      %3617 = vmatpush2.msra.mxu0 %v3562
      %3618 = vmatprep.subr.mxu0 0.0
      %3619 = vmatpush2.msra.mxu0 %v3561
      %3620 = vmatprep.subr.mxu0 0.0
      %3621 = vmatpush2.msra.mxu0 %v3560
      %3622 = vmatprep.subr.mxu0 0.0
      %3623 = vmatpush2.msra.mxu0 %v3559
      %3624 = vmatprep.subr.mxu0 0.0
      %3625 = vmatpush2.msra.mxu0 %v3558
      %3626 = vmatprep.subr.mxu0 0.0
      %3627 = vmatpush2.msra.mxu0 %v3557
      %3628 = vmatprep.subr.mxu0 0.0
      %3629 = vmatpush2.msra.mxu0 %v3556
      %3630 = vmatprep.subr.mxu0 0.0
      %3631 = vmatpush2.msra.mxu0 %v3555
      %3632 = vmatprep.subr.mxu0 0.0
      %3633 = vmatpush2.msra.mxu0 %v3554
      %3634 = vmatprep.subr.mxu0 0.0
      %3635 = vmatpush2.msra.mxu0 %v3553
      %3636 = vmatprep.subr.mxu0 0.0
      %3637 = vmatpush2.msra.mxu0 %v3552
      %3638 = vmatprep.mubr.f32.mxu0 %v552
      %3639 = vmatmul.mubr.f32.gmra.mxu0 %v551
      %v3640 = vpop.f32.mrf.mxu0
      %v3641 = vadd.f32 %v3569, %v3640
      %v3642 = vpop.f32.mrf.mxu0
      %3643 = vdwg.mxu0
      %v3644 = vmul.f32 %v3641, %v670
      %3645 = vmatprep.subr.mxu0 0.0
      %3646 = vmatpush1.xpose.msra.mxu0 0.0
      %3647 = vmatprep.subr.mxu0 0.0
      %3648 = vmatpush1.xpose.msra.mxu0 0.0
      %3649 = vmatprep.subr.mxu0 0.0
      %3650 = vmatpush1.xpose.msra.mxu0 0.0
      %3651 = vmatprep.subr.mxu0 0.0
      %3652 = vmatpush1.xpose.msra.mxu0 0.0
      %3653 = vmatprep.subr.mxu0 0.0
      %3654 = vmatpush1.xpose.msra.mxu0 0.0
      %3655 = vmatprep.subr.mxu0 0.0
      %3656 = vmatpush1.xpose.msra.mxu0 0.0
      %3657 = vmatprep.subr.mxu0 0.0
      %3658 = vmatpush1.xpose.msra.mxu0 0.0
      %3659 = vmatprep.subr.mxu0 0.0
      %3660 = vmatpush1.xpose.msra.mxu0 0.0
      %3661 = vmatprep.subr.mxu0 0.0
      %3662 = vmatpush1.xpose.msra.mxu0 0.0
      %3663 = vmatprep.subr.mxu0 0.0
      %3664 = vmatpush1.xpose.msra.mxu0 0.0
      %3665 = vmatprep.subr.mxu0 0.0
      %3666 = vmatpush1.xpose.msra.mxu0 0.0
      %3667 = vmatprep.subr.mxu0 0.0
      %3668 = vmatpush1.xpose.msra.mxu0 0.0
      %3669 = vmatprep.subr.mxu0 0.0
      %3670 = vmatpush1.xpose.msra.mxu0 0.0
      %3671 = vmatprep.subr.mxu0 0.0
      %3672 = vmatpush1.xpose.msra.mxu0 0.0
      %3673 = vmatprep.subr.mxu0 0.0
      %3674 = vmatpush1.xpose.msra.mxu0 0.0
      %3675 = vmatprep.subr.mxu0 %v3571
      %3676 = vmatpush1.xpose.msra.mxu0 %v590
      %3677 = vmatprep.subr.mxu0 0.0
      %3678 = vmatpush2.xpose.msra.mxu0 0.0
      %3679 = vmatprep.subr.mxu0 0.0
      %3680 = vmatpush2.xpose.msra.mxu0 0.0
      %3681 = vmatprep.subr.mxu0 0.0
      %3682 = vmatpush2.xpose.msra.mxu0 0.0
      %3683 = vmatprep.subr.mxu0 0.0
      %3684 = vmatpush2.xpose.msra.mxu0 0.0
      %3685 = vmatprep.subr.mxu0 0.0
      %3686 = vmatpush2.xpose.msra.mxu0 0.0
      %3687 = vmatprep.subr.mxu0 0.0
      %3688 = vmatpush2.xpose.msra.mxu0 0.0
      %3689 = vmatprep.subr.mxu0 0.0
      %3690 = vmatpush2.xpose.msra.mxu0 0.0
      %3691 = vmatprep.subr.mxu0 0.0
      %3692 = vmatpush2.xpose.msra.mxu0 0.0
      %3693 = vmatprep.subr.mxu0 0.0
      %3694 = vmatpush2.xpose.msra.mxu0 0.0
      %3695 = vmatprep.subr.mxu0 0.0
      %3696 = vmatpush2.xpose.msra.mxu0 0.0
      %3697 = vmatprep.subr.mxu0 0.0
      %3698 = vmatpush2.xpose.msra.mxu0 0.0
      %3699 = vmatprep.subr.mxu0 0.0
      %3700 = vmatpush2.xpose.msra.mxu0 0.0
      %3701 = vmatprep.subr.mxu0 0.0
      %3702 = vmatpush2.xpose.msra.mxu0 0.0
      %3703 = vmatprep.subr.mxu0 0.0
      %3704 = vmatpush2.xpose.msra.mxu0 0.0
      %3705 = vmatprep.subr.mxu0 0.0
      %3706 = vmatpush2.xpose.msra.mxu0 0.0
      %3707 = vmatprep.subr.mxu0 0.0
      %3708 = vmatpush2.xpose.msra.mxu0 0.0
      %3709 = vmatprep.mubr.f32.mxu0 %v671
      %3710 = vmatmul.mubr.f32.gmra.mxu0 %v3644
      %v3711 = vpop.f32.mrf.mxu0
      %v3712 = vadd.f32 %v3573, %v3711
      %v3713 = vpop.f32.mrf.mxu0
      %3714 = vdwg.mxu0
      %v3715 = vmul.f32 %v759, %v3712
      %v3716 = vsel %vm748, %v3715, 0.0
      %3717 = vadd.xlane.f32.xlu0 %v3716
      %v3718 = vpop.xlane.xlu0 %3717
      %v3719 = vsub.f32 %v3712, %v3718
      %v3720 = vmul.f32 %v759, %v3719
      %v3721 = vmul.f32 %v3720, %v761
      %3722 = vxpose.xlu0.b32.start [1/16] %v3721, 128
      %3723 = vxpose.xlu0.b32.cont [2/16] %v762, 128
      %3724 = vxpose.xlu0.b32.cont [3/16] 0.0, 128
      %3725 = vxpose.xlu0.b32.cont [4/16] 0.0, 128
      %3726 = vxpose.xlu0.b32.cont [5/16] 0.0, 128
      %3727 = vxpose.xlu0.b32.cont [6/16] 0.0, 128
      %3728 = vxpose.xlu0.b32.cont [7/16] 0.0, 128
      %3729 = vxpose.xlu0.b32.cont [8/16] 0.0, 128
      %3730 = vxpose.xlu0.b32.cont [9/16] 0.0, 128
      %3731 = vxpose.xlu0.b32.cont [10/16] 0.0, 128
      %3732 = vxpose.xlu0.b32.cont [11/16] 0.0, 128
      %3733 = vxpose.xlu0.b32.cont [12/16] 0.0, 128
      %3734 = vxpose.xlu0.b32.cont [13/16] 0.0, 128
      %3735 = vxpose.xlu0.b32.cont [14/16] 0.0, 128
      %3736 = vxpose.xlu0.b32.cont [15/16] 0.0, 128
      %3737 = vxpose.xlu0.b32.end [16/16] 0.0, 128
      %v3738 = vpop.trf.xlu0
      %v3739 = vpop.trf.xlu0
      %v3740 = vpop.trf.xlu0
      %v3741 = vpop.trf.xlu0
      %v3742 = vpop.trf.xlu0
      %v3743 = vpop.trf.xlu0
      %v3744 = vpop.trf.xlu0
      %v3745 = vpop.trf.xlu0
      %v3746 = vpop.trf.xlu0
      %v3747 = vpop.trf.xlu0
      %v3748 = vpop.trf.xlu0
      %v3749 = vpop.trf.xlu0
      %v3750 = vpop.trf.xlu0
      %v3751 = vpop.trf.xlu0
      %v3752 = vpop.trf.xlu0
      %v3753 = vpop.trf.xlu0
      %v3755 = vsel %vm3048, %v3738, 0
      %3757 = vmatprep.subr.mxu0 0.0
      %3758 = vmatpush1.msra.mxu0 0.0
      %3759 = vmatprep.subr.mxu0 0.0
      %3760 = vmatpush1.msra.mxu0 0.0
      %3761 = vmatprep.subr.mxu0 0.0
      %3762 = vmatpush1.msra.mxu0 0.0
      %3763 = vmatprep.subr.mxu0 0.0
      %3764 = vmatpush1.msra.mxu0 0.0
      %3765 = vmatprep.subr.mxu0 0.0
      %3766 = vmatpush1.msra.mxu0 0.0
      %3767 = vmatprep.subr.mxu0 0.0
      %3768 = vmatpush1.msra.mxu0 0.0
      %3769 = vmatprep.subr.mxu0 0.0
      %3770 = vmatpush1.msra.mxu0 0.0
      %3771 = vmatprep.subr.mxu0 0.0
      %3772 = vmatpush1.msra.mxu0 0.0
      %3773 = vmatprep.subr.mxu0 0.0
      %3774 = vmatpush1.msra.mxu0 0.0
      %3775 = vmatprep.subr.mxu0 0.0
      %3776 = vmatpush1.msra.mxu0 0.0
      %3777 = vmatprep.subr.mxu0 0.0
      %3778 = vmatpush1.msra.mxu0 0.0
      %3779 = vmatprep.subr.mxu0 0.0
      %3780 = vmatpush1.msra.mxu0 0.0
      %3781 = vmatprep.subr.mxu0 0.0
      %3782 = vmatpush1.msra.mxu0 0.0
      %3783 = vmatprep.subr.mxu0 0.0
      %3784 = vmatpush1.msra.mxu0 0.0
      %3785 = vmatprep.subr.mxu0 0.0
      %3786 = vmatpush1.msra.mxu0 %v3644
      %3787 = vmatprep.subr.mxu0 0.0
      %3788 = vmatpush1.msra.mxu0 %v671
      %3789 = vmatprep.subr.mxu0 0.0
      %3790 = vmatpush2.msra.mxu0 0.0
      %3791 = vmatprep.subr.mxu0 0.0
      %3792 = vmatpush2.msra.mxu0 0.0
      %3793 = vmatprep.subr.mxu0 0.0
      %3794 = vmatpush2.msra.mxu0 0.0
      %3795 = vmatprep.subr.mxu0 0.0
      %3796 = vmatpush2.msra.mxu0 0.0
      %3797 = vmatprep.subr.mxu0 0.0
      %3798 = vmatpush2.msra.mxu0 0.0
      %3799 = vmatprep.subr.mxu0 0.0
      %3800 = vmatpush2.msra.mxu0 0.0
      %3801 = vmatprep.subr.mxu0 0.0
      %3802 = vmatpush2.msra.mxu0 0.0
      %3803 = vmatprep.subr.mxu0 0.0
      %3804 = vmatpush2.msra.mxu0 0.0
      %3805 = vmatprep.subr.mxu0 0.0
      %3806 = vmatpush2.msra.mxu0 0.0
      %3807 = vmatprep.subr.mxu0 0.0
      %3808 = vmatpush2.msra.mxu0 0.0
      %3809 = vmatprep.subr.mxu0 0.0
      %3810 = vmatpush2.msra.mxu0 0.0
      %3811 = vmatprep.subr.mxu0 0.0
      %3812 = vmatpush2.msra.mxu0 0.0
      %3813 = vmatprep.subr.mxu0 0.0
      %3814 = vmatpush2.msra.mxu0 0.0
      %3815 = vmatprep.subr.mxu0 0.0
      %3816 = vmatpush2.msra.mxu0 0.0
      %3817 = vmatprep.subr.mxu0 0.0
      %3818 = vmatpush2.msra.mxu0 0.0
      %3819 = vmatprep.subr.mxu0 0.0
      %3820 = vmatpush2.msra.mxu0 0.0
      %3821 = vmatprep.mubr.f32.mxu0 0.0
      %3822 = vmatmul.mubr.f32.gmra.mxu0 %v3755
      %v3823 = vpop.f32.mrf.mxu0
      %v3824 = vadd.f32 0.0, %v3823
      %v3825 = vpop.f32.mrf.mxu0
      %3826 = vdwg.mxu0
      %v3827 = vsel %vm748, %v3721, 0.0
      %v3828 = vrot.slane %v3827, 4
      %v3829 = vadd.f32 %v3827, %v3828
      %v3830 = vrot.slane %v3829, 2
      %v3831 = vadd.f32 %v3829, %v3830
      %v3832 = vrot.slane %v3831, 1
      %v3833 = vadd.f32 %v3831, %v3832
      %3834 = vmatprep.subr.mxu0 0.0
      %3835 = vmatpush1.msra.mxu0 0.0
      %3836 = vmatprep.subr.mxu0 0.0
      %3837 = vmatpush1.msra.mxu0 0.0
      %3838 = vmatprep.subr.mxu0 0.0
      %3839 = vmatpush1.msra.mxu0 0.0
      %3840 = vmatprep.subr.mxu0 0.0
      %3841 = vmatpush1.msra.mxu0 0.0
      %3842 = vmatprep.subr.mxu0 0.0
      %3843 = vmatpush1.msra.mxu0 0.0
      %3844 = vmatprep.subr.mxu0 0.0
      %3845 = vmatpush1.msra.mxu0 0.0
      %3846 = vmatprep.subr.mxu0 0.0
      %3847 = vmatpush1.msra.mxu0 0.0
      %3848 = vmatprep.subr.mxu0 0.0
      %3849 = vmatpush1.msra.mxu0 0.0
      %3850 = vmatprep.subr.mxu0 0.0
      %3851 = vmatpush1.msra.mxu0 0.0
      %3852 = vmatprep.subr.mxu0 0.0
      %3853 = vmatpush1.msra.mxu0 0.0
      %3854 = vmatprep.subr.mxu0 0.0
      %3855 = vmatpush1.msra.mxu0 0.0
      %3856 = vmatprep.subr.mxu0 0.0
      %3857 = vmatpush1.msra.mxu0 0.0
      %3858 = vmatprep.subr.mxu0 0.0
      %3859 = vmatpush1.msra.mxu0 0.0
      %3860 = vmatprep.subr.mxu0 0.0
      %3861 = vmatpush1.msra.mxu0 0.0
      %3862 = vmatprep.subr.mxu0 0.0
      %3863 = vmatpush1.msra.mxu0 0.0
      %3864 = vmatprep.subr.mxu0 0.0
      %3865 = vmatpush1.msra.mxu0 %v3571
      %3866 = vmatprep.subr.mxu0 0.0
      %3867 = vmatpush2.msra.mxu0 0.0
      %3868 = vmatprep.subr.mxu0 0.0
      %3869 = vmatpush2.msra.mxu0 0.0
      %3870 = vmatprep.subr.mxu0 0.0
      %3871 = vmatpush2.msra.mxu0 0.0
      %3872 = vmatprep.subr.mxu0 0.0
      %3873 = vmatpush2.msra.mxu0 0.0
      %3874 = vmatprep.subr.mxu0 0.0
      %3875 = vmatpush2.msra.mxu0 0.0
      %3876 = vmatprep.subr.mxu0 0.0
      %3877 = vmatpush2.msra.mxu0 0.0
      %3878 = vmatprep.subr.mxu0 0.0
      %3879 = vmatpush2.msra.mxu0 0.0
      %3880 = vmatprep.subr.mxu0 0.0
      %3881 = vmatpush2.msra.mxu0 0.0
      %3882 = vmatprep.subr.mxu0 0.0
      %3883 = vmatpush2.msra.mxu0 0.0
      %3884 = vmatprep.subr.mxu0 0.0
      %3885 = vmatpush2.msra.mxu0 0.0
      %3886 = vmatprep.subr.mxu0 0.0
      %3887 = vmatpush2.msra.mxu0 0.0
      %3888 = vmatprep.subr.mxu0 0.0
      %3889 = vmatpush2.msra.mxu0 0.0
      %3890 = vmatprep.subr.mxu0 0.0
      %3891 = vmatpush2.msra.mxu0 0.0
      %3892 = vmatprep.subr.mxu0 0.0
      %3893 = vmatpush2.msra.mxu0 0.0
      %3894 = vmatprep.subr.mxu0 0.0
      %3895 = vmatpush2.msra.mxu0 0.0
      %3896 = vmatprep.subr.mxu0 0.0
      %3897 = vmatpush2.msra.mxu0 0.0
      %3898 = vmatprep.mubr.f32.mxu0 0.0
      %3899 = vmatmul.mubr.f32.gmra.mxu0 %v876
      %v3900 = vpop.f32.mrf.mxu0
      %v3901 = vadd.f32 0.0, %v3900
      %v3902 = vpop.f32.mrf.mxu0
      %3903 = vdwg.mxu0
      %v3905 = vsel %vm748, %v3721, 0
      %3907 = vmatprep.subr.mxu0 0.0
      %3908 = vmatpush1.msra.mxu0 0.0
      %3909 = vmatprep.subr.mxu0 0.0
      %3910 = vmatpush1.msra.mxu0 0.0
      %3911 = vmatprep.subr.mxu0 0.0
      %3912 = vmatpush1.msra.mxu0 0.0
      %3913 = vmatprep.subr.mxu0 0.0
      %3914 = vmatpush1.msra.mxu0 0.0
      %3915 = vmatprep.subr.mxu0 0.0
      %3916 = vmatpush1.msra.mxu0 0.0
      %3917 = vmatprep.subr.mxu0 0.0
      %3918 = vmatpush1.msra.mxu0 0.0
      %3919 = vmatprep.subr.mxu0 0.0
      %3920 = vmatpush1.msra.mxu0 0.0
      %3921 = vmatprep.subr.mxu0 0.0
      %3922 = vmatpush1.msra.mxu0 0.0
      %3923 = vmatprep.subr.mxu0 0.0
      %3924 = vmatpush1.msra.mxu0 0.0
      %3925 = vmatprep.subr.mxu0 0.0
      %3926 = vmatpush1.msra.mxu0 0.0
      %3927 = vmatprep.subr.mxu0 0.0
      %3928 = vmatpush1.msra.mxu0 0.0
      %3929 = vmatprep.subr.mxu0 0.0
      %3930 = vmatpush1.msra.mxu0 0.0
      %3931 = vmatprep.subr.mxu0 0.0
      %3932 = vmatpush1.msra.mxu0 0.0
      %3933 = vmatprep.subr.mxu0 0.0
      %3934 = vmatpush1.msra.mxu0 0.0
      %3935 = vmatprep.subr.mxu0 0.0
      %3936 = vmatpush1.msra.mxu0 0.0
      %3937 = vmatprep.subr.mxu0 0.0
      %3938 = vmatpush1.msra.mxu0 %v590
      %3939 = vmatprep.subr.mxu0 0.0
      %3940 = vmatpush2.msra.mxu0 0.0
      %3941 = vmatprep.subr.mxu0 0.0
      %3942 = vmatpush2.msra.mxu0 0.0
      %3943 = vmatprep.subr.mxu0 0.0
      %3944 = vmatpush2.msra.mxu0 0.0
      %3945 = vmatprep.subr.mxu0 0.0
      %3946 = vmatpush2.msra.mxu0 0.0
      %3947 = vmatprep.subr.mxu0 0.0
      %3948 = vmatpush2.msra.mxu0 0.0
      %3949 = vmatprep.subr.mxu0 0.0
      %3950 = vmatpush2.msra.mxu0 0.0
      %3951 = vmatprep.subr.mxu0 0.0
      %3952 = vmatpush2.msra.mxu0 0.0
      %3953 = vmatprep.subr.mxu0 0.0
      %3954 = vmatpush2.msra.mxu0 0.0
      %3955 = vmatprep.subr.mxu0 0.0
      %3956 = vmatpush2.msra.mxu0 0.0
      %3957 = vmatprep.subr.mxu0 0.0
      %3958 = vmatpush2.msra.mxu0 0.0
      %3959 = vmatprep.subr.mxu0 0.0
      %3960 = vmatpush2.msra.mxu0 0.0
      %3961 = vmatprep.subr.mxu0 0.0
      %3962 = vmatpush2.msra.mxu0 0.0
      %3963 = vmatprep.subr.mxu0 0.0
      %3964 = vmatpush2.msra.mxu0 0.0
      %3965 = vmatprep.subr.mxu0 0.0
      %3966 = vmatpush2.msra.mxu0 0.0
      %3967 = vmatprep.subr.mxu0 0.0
      %3968 = vmatpush2.msra.mxu0 0.0
      %3969 = vmatprep.subr.mxu0 0.0
      %3970 = vmatpush2.msra.mxu0 0.0
      %3971 = vmatprep.mubr.f32.mxu0 0.0
      %3972 = vmatmul.mubr.f32.gmra.mxu0 %v3905
      %v3973 = vpop.f32.mrf.mxu0
      %v3974 = vadd.f32 %v3901, %v3973
      %v3975 = vpop.f32.mrf.mxu0
      %3976 = vdwg.mxu0
      %v3977 = vmul.f32 %v3974, %v670
      %3978 = vmatprep.subr.mxu0 0.0
      %3979 = vmatpush1.msra.mxu0 0.0
      %3980 = vmatprep.subr.mxu0 0.0
      %3981 = vmatpush1.msra.mxu0 0.0
      %3982 = vmatprep.subr.mxu0 0.0
      %3983 = vmatpush1.msra.mxu0 0.0
      %3984 = vmatprep.subr.mxu0 0.0
      %3985 = vmatpush1.msra.mxu0 0.0
      %3986 = vmatprep.subr.mxu0 0.0
      %3987 = vmatpush1.msra.mxu0 0.0
      %3988 = vmatprep.subr.mxu0 0.0
      %3989 = vmatpush1.msra.mxu0 0.0
      %3990 = vmatprep.subr.mxu0 0.0
      %3991 = vmatpush1.msra.mxu0 0.0
      %3992 = vmatprep.subr.mxu0 0.0
      %3993 = vmatpush1.msra.mxu0 0.0
      %3994 = vmatprep.subr.mxu0 0.0
      %3995 = vmatpush1.msra.mxu0 0.0
      %3996 = vmatprep.subr.mxu0 0.0
      %3997 = vmatpush1.msra.mxu0 0.0
      %3998 = vmatprep.subr.mxu0 0.0
      %3999 = vmatpush1.msra.mxu0 0.0
      %4000 = vmatprep.subr.mxu0 0.0
      %4001 = vmatpush1.msra.mxu0 0.0
      %4002 = vmatprep.subr.mxu0 0.0
      %4003 = vmatpush1.msra.mxu0 0.0
      %4004 = vmatprep.subr.mxu0 0.0
      %4005 = vmatpush1.msra.mxu0 0.0
      %4006 = vmatprep.subr.mxu0 0.0
      %4007 = vmatpush1.msra.mxu0 0.0
      %4008 = vmatprep.subr.mxu0 0.0
      %4009 = vmatpush1.msra.mxu0 %v3977
      %4010 = vmatprep.subr.mxu0 0.0
      %4011 = vmatpush2.msra.mxu0 0.0
      %4012 = vmatprep.subr.mxu0 0.0
      %4013 = vmatpush2.msra.mxu0 0.0
      %4014 = vmatprep.subr.mxu0 0.0
      %4015 = vmatpush2.msra.mxu0 0.0
      %4016 = vmatprep.subr.mxu0 0.0
      %4017 = vmatpush2.msra.mxu0 0.0
      %4018 = vmatprep.subr.mxu0 0.0
      %4019 = vmatpush2.msra.mxu0 0.0
      %4020 = vmatprep.subr.mxu0 0.0
      %4021 = vmatpush2.msra.mxu0 0.0
      %4022 = vmatprep.subr.mxu0 0.0
      %4023 = vmatpush2.msra.mxu0 0.0
      %4024 = vmatprep.subr.mxu0 0.0
      %4025 = vmatpush2.msra.mxu0 0.0
      %4026 = vmatprep.subr.mxu0 0.0
      %4027 = vmatpush2.msra.mxu0 0.0
      %4028 = vmatprep.subr.mxu0 0.0
      %4029 = vmatpush2.msra.mxu0 0.0
      %4030 = vmatprep.subr.mxu0 0.0
      %4031 = vmatpush2.msra.mxu0 0.0
      %4032 = vmatprep.subr.mxu0 0.0
      %4033 = vmatpush2.msra.mxu0 0.0
      %4034 = vmatprep.subr.mxu0 0.0
      %4035 = vmatpush2.msra.mxu0 0.0
      %4036 = vmatprep.subr.mxu0 0.0
      %4037 = vmatpush2.msra.mxu0 0.0
      %4038 = vmatprep.subr.mxu0 0.0
      %4039 = vmatpush2.msra.mxu0 0.0
      %4040 = vmatprep.subr.mxu0 0.0
      %4041 = vmatpush2.msra.mxu0 0.0
      %4042 = vmatprep.mubr.f32.mxu0 0.0
      %4043 = vmatmul.mubr.f32.gmra.mxu0 %v1014
      %v4044 = vpop.f32.mrf.mxu0
      %v4045 = vadd.f32 0.0, %v4044
      %v4046 = vpop.f32.mrf.mxu0
      %4047 = vmatprep.mubr.f32.mxu0 0.0
      %4048 = vmatmul.mubr.f32.gmra.mxu0 %v1017
      %v4049 = vpop.f32.mrf.mxu0
      %v4050 = vadd.f32 0.0, %v4049
      %v4051 = vpop.f32.mrf.mxu0
      %4052 = vmatprep.mubr.f32.mxu0 0.0
      %4053 = vmatmul.mubr.f32.gmra.mxu0 %v1020
      %v4054 = vpop.f32.mrf.mxu0
      %v4055 = vadd.f32 0.0, %v4054
      %v4056 = vpop.f32.mrf.mxu0
      %4057 = vmatprep.mubr.f32.mxu0 0.0
      %4058 = vmatmul.mubr.f32.gmra.mxu0 %v1023
      %v4059 = vpop.f32.mrf.mxu0
      %v4060 = vadd.f32 0.0, %v4059
      %v4061 = vpop.f32.mrf.mxu0
      %4062 = vmatprep.mubr.f32.mxu0 0.0
      %4063 = vmatmul.mubr.f32.gmra.mxu0 %v1026
      %v4064 = vpop.f32.mrf.mxu0
      %v4065 = vadd.f32 0.0, %v4064
      %v4066 = vpop.f32.mrf.mxu0
      %4067 = vmatprep.mubr.f32.mxu0 0.0
      %4068 = vmatmul.mubr.f32.gmra.mxu0 %v1029
      %v4069 = vpop.f32.mrf.mxu0
      %v4070 = vadd.f32 0.0, %v4069
      %v4071 = vpop.f32.mrf.mxu0
      %4072 = vmatprep.mubr.f32.mxu0 0.0
      %4073 = vmatmul.mubr.f32.gmra.mxu0 %v1032
      %v4074 = vpop.f32.mrf.mxu0
      %v4075 = vadd.f32 0.0, %v4074
      %v4076 = vpop.f32.mrf.mxu0
      %4077 = vmatprep.mubr.f32.mxu0 0.0
      %4078 = vmatmul.mubr.f32.gmra.mxu0 %v1035
      %v4079 = vpop.f32.mrf.mxu0
      %v4080 = vadd.f32 0.0, %v4079
      %v4081 = vpop.f32.mrf.mxu0
      %4082 = vmatprep.mubr.f32.mxu0 0.0
      %4083 = vmatmul.mubr.f32.gmra.mxu0 %v1038
      %v4084 = vpop.f32.mrf.mxu0
      %v4085 = vadd.f32 0.0, %v4084
      %v4086 = vpop.f32.mrf.mxu0
      %4087 = vmatprep.mubr.f32.mxu0 0.0
      %4088 = vmatmul.mubr.f32.gmra.mxu0 %v1041
      %v4089 = vpop.f32.mrf.mxu0
      %v4090 = vadd.f32 0.0, %v4089
      %v4091 = vpop.f32.mrf.mxu0
      %4092 = vmatprep.mubr.f32.mxu0 0.0
      %4093 = vmatmul.mubr.f32.gmra.mxu0 %v1044
      %v4094 = vpop.f32.mrf.mxu0
      %v4095 = vadd.f32 0.0, %v4094
      %v4096 = vpop.f32.mrf.mxu0
      %4097 = vmatprep.mubr.f32.mxu0 0.0
      %4098 = vmatmul.mubr.f32.gmra.mxu0 %v1047
      %v4099 = vpop.f32.mrf.mxu0
      %v4100 = vadd.f32 0.0, %v4099
      %v4101 = vpop.f32.mrf.mxu0
      %4102 = vmatprep.mubr.f32.mxu0 0.0
      %4103 = vmatmul.mubr.f32.gmra.mxu0 %v1050
      %v4104 = vpop.f32.mrf.mxu0
      %v4105 = vadd.f32 0.0, %v4104
      %v4106 = vpop.f32.mrf.mxu0
      %4107 = vmatprep.mubr.f32.mxu0 0.0
      %4108 = vmatmul.mubr.f32.gmra.mxu0 %v1053
      %v4109 = vpop.f32.mrf.mxu0
      %v4110 = vadd.f32 0.0, %v4109
      %v4111 = vpop.f32.mrf.mxu0
      %4112 = vmatprep.mubr.f32.mxu0 0.0
      %4113 = vmatmul.mubr.f32.gmra.mxu0 %v1056
      %v4114 = vpop.f32.mrf.mxu0
      %v4115 = vadd.f32 0.0, %v4114
      %v4116 = vpop.f32.mrf.mxu0
      %4117 = vmatprep.mubr.f32.mxu0 0.0
      %4118 = vmatmul.mubr.f32.gmra.mxu0 %v1059
      %v4119 = vpop.f32.mrf.mxu0
      %v4120 = vadd.f32 0.0, %v4119
      %v4121 = vpop.f32.mrf.mxu0
      %4122 = vmatprep.mubr.f32.mxu0 0.0
      %4123 = vmatmul.mubr.f32.gmra.mxu0 %v1062
      %v4124 = vpop.f32.mrf.mxu0
      %v4125 = vadd.f32 0.0, %v4124
      %v4126 = vpop.f32.mrf.mxu0
      %4127 = vmatprep.mubr.f32.mxu0 0.0
      %4128 = vmatmul.mubr.f32.gmra.mxu0 %v1065
      %v4129 = vpop.f32.mrf.mxu0
      %v4130 = vadd.f32 0.0, %v4129
      %v4131 = vpop.f32.mrf.mxu0
      %4132 = vmatprep.mubr.f32.mxu0 0.0
      %4133 = vmatmul.mubr.f32.gmra.mxu0 %v1068
      %v4134 = vpop.f32.mrf.mxu0
      %v4135 = vadd.f32 0.0, %v4134
      %v4136 = vpop.f32.mrf.mxu0
      %4137 = vmatprep.mubr.f32.mxu0 0.0
      %4138 = vmatmul.mubr.f32.gmra.mxu0 %v1071
      %v4139 = vpop.f32.mrf.mxu0
      %v4140 = vadd.f32 0.0, %v4139
      %v4141 = vpop.f32.mrf.mxu0
      %4142 = vmatprep.mubr.f32.mxu0 0.0
      %4143 = vmatmul.mubr.f32.gmra.mxu0 %v1074
      %v4144 = vpop.f32.mrf.mxu0
      %v4145 = vadd.f32 0.0, %v4144
      %v4146 = vpop.f32.mrf.mxu0
      %4147 = vmatprep.mubr.f32.mxu0 0.0
      %4148 = vmatmul.mubr.f32.gmra.mxu0 %v1077
      %v4149 = vpop.f32.mrf.mxu0
      %v4150 = vadd.f32 0.0, %v4149
      %v4151 = vpop.f32.mrf.mxu0
      %4152 = vmatprep.mubr.f32.mxu0 0.0
      %4153 = vmatmul.mubr.f32.gmra.mxu0 %v1080
      %v4154 = vpop.f32.mrf.mxu0
      %v4155 = vadd.f32 0.0, %v4154
      %v4156 = vpop.f32.mrf.mxu0
      %4157 = vmatprep.mubr.f32.mxu0 0.0
      %4158 = vmatmul.mubr.f32.gmra.mxu0 %v1083
      %v4159 = vpop.f32.mrf.mxu0
      %v4160 = vadd.f32 0.0, %v4159
      %v4161 = vpop.f32.mrf.mxu0
      %4162 = vmatprep.mubr.f32.mxu0 0.0
      %4163 = vmatmul.mubr.f32.gmra.mxu0 %v1086
      %v4164 = vpop.f32.mrf.mxu0
      %v4165 = vadd.f32 0.0, %v4164
      %v4166 = vpop.f32.mrf.mxu0
      %4167 = vmatprep.mubr.f32.mxu0 0.0
      %4168 = vmatmul.mubr.f32.gmra.mxu0 %v1089
      %v4169 = vpop.f32.mrf.mxu0
      %v4170 = vadd.f32 0.0, %v4169
      %v4171 = vpop.f32.mrf.mxu0
      %4172 = vmatprep.mubr.f32.mxu0 0.0
      %4173 = vmatmul.mubr.f32.gmra.mxu0 %v1092
      %v4174 = vpop.f32.mrf.mxu0
      %v4175 = vadd.f32 0.0, %v4174
      %v4176 = vpop.f32.mrf.mxu0
      %4177 = vmatprep.mubr.f32.mxu0 0.0
      %4178 = vmatmul.mubr.f32.gmra.mxu0 %v1095
      %v4179 = vpop.f32.mrf.mxu0
      %v4180 = vadd.f32 0.0, %v4179
      %v4181 = vpop.f32.mrf.mxu0
      %4182 = vmatprep.mubr.f32.mxu0 0.0
      %4183 = vmatmul.mubr.f32.gmra.mxu0 %v1098
      %v4184 = vpop.f32.mrf.mxu0
      %v4185 = vadd.f32 0.0, %v4184
      %v4186 = vpop.f32.mrf.mxu0
      %4187 = vmatprep.mubr.f32.mxu0 0.0
      %4188 = vmatmul.mubr.f32.gmra.mxu0 %v1101
      %v4189 = vpop.f32.mrf.mxu0
      %v4190 = vadd.f32 0.0, %v4189
      %v4191 = vpop.f32.mrf.mxu0
      %4192 = vmatprep.mubr.f32.mxu0 0.0
      %4193 = vmatmul.mubr.f32.gmra.mxu0 %v1104
      %v4194 = vpop.f32.mrf.mxu0
      %v4195 = vadd.f32 0.0, %v4194
      %v4196 = vpop.f32.mrf.mxu0
      %4197 = vmatprep.mubr.f32.mxu0 0.0
      %4198 = vmatmul.mubr.f32.gmra.mxu0 %v1107
      %v4199 = vpop.f32.mrf.mxu0
      %v4200 = vadd.f32 0.0, %v4199
      %v4201 = vpop.f32.mrf.mxu0
      %4202 = vdwg.mxu0
      %v4203 = vrot.slane %v3977, 4
      %v4204 = vadd.f32 %v3977, %v4203
      %v4205 = vrot.slane %v4204, 2
      %v4206 = vadd.f32 %v4204, %v4205
      %v4207 = vrot.slane %v4206, 1
      %v4208 = vadd.f32 %v4206, %v4207
      %v4209 = vmul.f32 %v4045, 0.4
      %v4210 = vmul.f32 %v4050, 0.4
      %v4211 = vmul.f32 %v4055, 0.4
      %v4212 = vmul.f32 %v4060, 0.4
      %v4213 = vmul.f32 %v4065, 0.4
      %v4214 = vmul.f32 %v4070, 0.4
      %v4215 = vmul.f32 %v4075, 0.4
      %v4216 = vmul.f32 %v4080, 0.4
      %v4217 = vmul.f32 %v4085, 0.4
      %v4218 = vmul.f32 %v4090, 0.4
      %v4219 = vmul.f32 %v4095, 0.4
      %v4220 = vmul.f32 %v4100, 0.4
      %v4221 = vmul.f32 %v4105, 0.4
      %v4222 = vmul.f32 %v4110, 0.4
      %v4223 = vmul.f32 %v4115, 0.4
      %v4224 = vmul.f32 %v4120, 0.4
      %v4225 = vmul.f32 %v4125, 0.4
      %v4226 = vmul.f32 %v4130, 0.4
      %v4227 = vmul.f32 %v4135, 0.4
      %v4228 = vmul.f32 %v4140, 0.4
      %v4229 = vmul.f32 %v4145, 0.4
      %v4230 = vmul.f32 %v4150, 0.4
      %v4231 = vmul.f32 %v4155, 0.4
      %v4232 = vmul.f32 %v4160, 0.4
      %v4233 = vmul.f32 %v4165, 0.4
      %v4234 = vmul.f32 %v4170, 0.4
      %v4235 = vmul.f32 %v4175, 0.4
      %v4236 = vmul.f32 %v4180, 0.4
      %v4237 = vmul.f32 %v4185, 0.4
      %v4238 = vmul.f32 %v4190, 0.4
      %v4239 = vmul.f32 %v4195, 0.4
      %v4240 = vmul.f32 %v4200, 0.4
      %v4241 = vsub.f32 %v3536, %v4209
      %v4242 = vsub.f32 %v3537, %v4210
      %v4243 = vsub.f32 %v3538, %v4211
      %v4244 = vsub.f32 %v3539, %v4212
      %v4245 = vsub.f32 %v3540, %v4213
      %v4246 = vsub.f32 %v3541, %v4214
      %v4247 = vsub.f32 %v3542, %v4215
      %v4248 = vsub.f32 %v3543, %v4216
      %v4249 = vsub.f32 %v3544, %v4217
      %v4250 = vsub.f32 %v3545, %v4218
      %v4251 = vsub.f32 %v3546, %v4219
      %v4252 = vsub.f32 %v3547, %v4220
      %v4253 = vsub.f32 %v3548, %v4221
      %v4254 = vsub.f32 %v3549, %v4222
      %v4255 = vsub.f32 %v3550, %v4223
      %v4256 = vsub.f32 %v3551, %v4224
      %v4257 = vsub.f32 %v3552, %v4225
      %v4258 = vsub.f32 %v3553, %v4226
      %v4259 = vsub.f32 %v3554, %v4227
      %v4260 = vsub.f32 %v3555, %v4228
      %v4261 = vsub.f32 %v3556, %v4229
      %v4262 = vsub.f32 %v3557, %v4230
      %v4263 = vsub.f32 %v3558, %v4231
      %v4264 = vsub.f32 %v3559, %v4232
      %v4265 = vsub.f32 %v3560, %v4233
      %v4266 = vsub.f32 %v3561, %v4234
      %v4267 = vsub.f32 %v3562, %v4235
      %v4268 = vsub.f32 %v3563, %v4236
      %v4269 = vsub.f32 %v3564, %v4237
      %v4270 = vsub.f32 %v3565, %v4238
      %v4271 = vsub.f32 %v3566, %v4239
      %v4272 = vsub.f32 %v3567, %v4240
      %v4273 = vmul.f32 %v4208, 0.4
      %v4274 = vsub.f32 %v3569, %v4273
      %v4275 = vmul.f32 %v3824, 0.4
      %v4276 = vsub.f32 %v3571, %v4275
      %v4277 = vmul.f32 %v3833, 0.4
      %v4278 = vsub.f32 %v3573, %v4277
      %v4279 = vlaneseq
      %v4280 = vshrl.u32 %v4279, 7
      %vm4281 = vcmp.eq.s32.totalorder %v2830, %v4280
      %v4282 = vsel %vm4281, 1, 0
      %v4283 = vcvt.s32.f32 %v4282
      %v4284 = vadd.s32 %v4280, 8
      %vm4285 = vcmp.eq.s32.totalorder %v2830, %v4284
      %v4286 = vsel %vm4285, 1, 0
      %v4287 = vcvt.s32.f32 %v4286
      %v4288 = vsel %vm748, %v2065, 0
      %4290 = vmatprep.subr.mxu0 0.0
      %4291 = vmatpush1.msra.mxu0 0.0
      %4292 = vmatprep.subr.mxu0 0.0
      %4293 = vmatpush1.msra.mxu0 0.0
      %4294 = vmatprep.subr.mxu0 0.0
      %4295 = vmatpush1.msra.mxu0 0.0
      %4296 = vmatprep.subr.mxu0 0.0
      %4297 = vmatpush1.msra.mxu0 0.0
      %4298 = vmatprep.subr.mxu0 0.0
      %4299 = vmatpush1.msra.mxu0 0.0
      %4300 = vmatprep.subr.mxu0 0.0
      %4301 = vmatpush1.msra.mxu0 0.0
      %4302 = vmatprep.subr.mxu0 0.0
      %4303 = vmatpush1.msra.mxu0 0.0
      %4304 = vmatprep.subr.mxu0 0.0
      %4305 = vmatpush1.msra.mxu0 0.0
      %4306 = vmatprep.subr.mxu0 0.0
      %4307 = vmatpush1.msra.mxu0 0.0
      %4308 = vmatprep.subr.mxu0 0.0
      %4309 = vmatpush1.msra.mxu0 0.0
      %4310 = vmatprep.subr.mxu0 0.0
      %4311 = vmatpush1.msra.mxu0 0.0
      %4312 = vmatprep.subr.mxu0 0.0
      %4313 = vmatpush1.msra.mxu0 0.0
      %4314 = vmatprep.subr.mxu0 0.0
      %4315 = vmatpush1.msra.mxu0 0.0
      %4316 = vmatprep.subr.mxu0 0.0
      %4317 = vmatpush1.msra.mxu0 0.0
      %4318 = vmatprep.subr.mxu0 0.0
      %4319 = vmatpush1.msra.mxu0 0.0
      %4320 = vmatprep.subr.mxu0 0.0
      %4321 = vmatpush1.msra.mxu0 %v4287
      %4322 = vmatprep.subr.mxu0 0.0
      %4323 = vmatpush2.msra.mxu0 0.0
      %4324 = vmatprep.subr.mxu0 0.0
      %4325 = vmatpush2.msra.mxu0 0.0
      %4326 = vmatprep.subr.mxu0 0.0
      %4327 = vmatpush2.msra.mxu0 0.0
      %4328 = vmatprep.subr.mxu0 0.0
      %4329 = vmatpush2.msra.mxu0 0.0
      %4330 = vmatprep.subr.mxu0 0.0
      %4331 = vmatpush2.msra.mxu0 0.0
      %4332 = vmatprep.subr.mxu0 0.0
      %4333 = vmatpush2.msra.mxu0 0.0
      %4334 = vmatprep.subr.mxu0 0.0
      %4335 = vmatpush2.msra.mxu0 0.0
      %4336 = vmatprep.subr.mxu0 0.0
      %4337 = vmatpush2.msra.mxu0 0.0
      %4338 = vmatprep.subr.mxu0 0.0
      %4339 = vmatpush2.msra.mxu0 0.0
      %4340 = vmatprep.subr.mxu0 0.0
      %4341 = vmatpush2.msra.mxu0 0.0
      %4342 = vmatprep.subr.mxu0 0.0
      %4343 = vmatpush2.msra.mxu0 0.0
      %4344 = vmatprep.subr.mxu0 0.0
      %4345 = vmatpush2.msra.mxu0 0.0
      %4346 = vmatprep.subr.mxu0 0.0
      %4347 = vmatpush2.msra.mxu0 0.0
      %4348 = vmatprep.subr.mxu0 0.0
      %4349 = vmatpush2.msra.mxu0 0.0
      %4350 = vmatprep.subr.mxu0 0.0
      %4351 = vmatpush2.msra.mxu0 0.0
      %4352 = vmatprep.subr.mxu0 0.0
      %4353 = vmatpush2.msra.mxu0 0.0
      %4354 = vmatprep.mubr.f32.mxu0 0.0
      %4355 = vmatmul.mubr.f32.gmra.mxu0 %v4288
      %v4356 = vpop.f32.mrf.mxu0
      %v4357 = vadd.f32 0.0, %v4356
      %v4358 = vpop.f32.mrf.mxu0
      %4359 = vdwg.mxu0
      %v4361 = vsel %vm748, %v4278, 0
      %4363 = vmatprep.subr.mxu0 0.0
      %4364 = vmatpush1.msra.mxu0 0.0
      %4365 = vmatprep.subr.mxu0 0.0
      %4366 = vmatpush1.msra.mxu0 0.0
      %4367 = vmatprep.subr.mxu0 0.0
      %4368 = vmatpush1.msra.mxu0 0.0
      %4369 = vmatprep.subr.mxu0 0.0
      %4370 = vmatpush1.msra.mxu0 0.0
      %4371 = vmatprep.subr.mxu0 0.0
      %4372 = vmatpush1.msra.mxu0 0.0
      %4373 = vmatprep.subr.mxu0 0.0
      %4374 = vmatpush1.msra.mxu0 0.0
      %4375 = vmatprep.subr.mxu0 0.0
      %4376 = vmatpush1.msra.mxu0 0.0
      %4377 = vmatprep.subr.mxu0 0.0
      %4378 = vmatpush1.msra.mxu0 0.0
      %4379 = vmatprep.subr.mxu0 0.0
      %4380 = vmatpush1.msra.mxu0 0.0
      %4381 = vmatprep.subr.mxu0 0.0
      %4382 = vmatpush1.msra.mxu0 0.0
      %4383 = vmatprep.subr.mxu0 0.0
      %4384 = vmatpush1.msra.mxu0 0.0
      %4385 = vmatprep.subr.mxu0 0.0
      %4386 = vmatpush1.msra.mxu0 0.0
      %4387 = vmatprep.subr.mxu0 0.0
      %4388 = vmatpush1.msra.mxu0 0.0
      %4389 = vmatprep.subr.mxu0 0.0
      %4390 = vmatpush1.msra.mxu0 0.0
      %4391 = vmatprep.subr.mxu0 0.0
      %4392 = vmatpush1.msra.mxu0 0.0
      %4393 = vmatprep.subr.mxu0 0.0
      %4394 = vmatpush1.msra.mxu0 %v4283
      %4395 = vmatprep.subr.mxu0 0.0
      %4396 = vmatpush2.msra.mxu0 0.0
      %4397 = vmatprep.subr.mxu0 0.0
      %4398 = vmatpush2.msra.mxu0 0.0
      %4399 = vmatprep.subr.mxu0 0.0
      %4400 = vmatpush2.msra.mxu0 0.0
      %4401 = vmatprep.subr.mxu0 0.0
      %4402 = vmatpush2.msra.mxu0 0.0
      %4403 = vmatprep.subr.mxu0 0.0
      %4404 = vmatpush2.msra.mxu0 0.0
      %4405 = vmatprep.subr.mxu0 0.0
      %4406 = vmatpush2.msra.mxu0 0.0
      %4407 = vmatprep.subr.mxu0 0.0
      %4408 = vmatpush2.msra.mxu0 0.0
      %4409 = vmatprep.subr.mxu0 0.0
      %4410 = vmatpush2.msra.mxu0 0.0
      %4411 = vmatprep.subr.mxu0 0.0
      %4412 = vmatpush2.msra.mxu0 0.0
      %4413 = vmatprep.subr.mxu0 0.0
      %4414 = vmatpush2.msra.mxu0 0.0
      %4415 = vmatprep.subr.mxu0 0.0
      %4416 = vmatpush2.msra.mxu0 0.0
      %4417 = vmatprep.subr.mxu0 0.0
      %4418 = vmatpush2.msra.mxu0 0.0
      %4419 = vmatprep.subr.mxu0 0.0
      %4420 = vmatpush2.msra.mxu0 0.0
      %4421 = vmatprep.subr.mxu0 0.0
      %4422 = vmatpush2.msra.mxu0 0.0
      %4423 = vmatprep.subr.mxu0 0.0
      %4424 = vmatpush2.msra.mxu0 0.0
      %4425 = vmatprep.subr.mxu0 0.0
      %4426 = vmatpush2.msra.mxu0 0.0
      %4427 = vmatprep.mubr.f32.mxu0 0.0
      %4428 = vmatmul.mubr.f32.gmra.mxu0 %v4361
      %v4429 = vpop.f32.mrf.mxu0
      %v4430 = vadd.f32 %v4357, %v4429
      %v4431 = vpop.f32.mrf.mxu0
      %4432 = vdwg.mxu0
      %vm4433 = vcmp.eq.s32.totalorder %v2830, 16
      %v4434 = vsel %vm4433, 1, 0
      %v4435 = vcvt.s32.f32 %v4434
      %v4436 = vmul.f32 %v2249, %v4435
      %v4437 = vadd.f32 %v4430, %v4436
      %vm4438 = vcmp.eq.s32.totalorder %v2830, 17
      %v4439 = vsel %vm4438, 1, 0
      %v4440 = vcvt.s32.f32 %v4439
      %v4441 = vstv %s2867
      %v4442 = vmul.f32 %v4441, %v4440
      %v4443 = vadd.f32 %v4437, %v4442
      %vm4444 = vcmp.eq.s32.totalorder %v4280, 0
      %v4445 = vsel %vm4444, 1, 0
      %v4446 = vcvt.s32.f32 %v4445
      %v4447 = vmul.f32 %v4446, %v4274
      %vm4448 = vcmp.eq.s32.totalorder %v4280, 1
      %v4449 = vsel %vm4448, 1, 0
      %v4450 = vcvt.s32.f32 %v4449
      %v4451 = vmul.f32 %v4450, %v2070
      %v4452 = vadd.f32 %v4447, %v4451
      %vm4453 = vcmp.eq.s32.totalorder %v4280, 2
      %v4454 = vsel %vm4453, 1, 0
      %v4455 = vcvt.s32.f32 %v4454
      %v4456 = vlaneseq
      %v4457 = vshrl.u32 %v4456, 7
      %v4458 = vsub.s32 0, %v4457
      %v4459 = vrot.slane %v4443, %v4458
      %v4460 = vmul.f32 %v4455, %v4459
      %v4461 = vadd.f32 %v4452, %v4460
      %p4462 = scmp.eq.s32.totalorder %s29, 0
      // Predicated region
      $region53: #{_meta_forward_impl.1} parent=51 // pred_check
        %p4463 = pneg %p4462
      $region54: #{_meta_forward_impl.1} parent=51 // pred_check_branch
        %4465 = sbr.rel (%p4463) target = $region56
      $region55: #{_meta_forward_impl.1} parent=51 // pred_region
        %4466 = vst [vmem:[%s533] sm:$0xff] %v4241
        %4467 = vst [vmem:[%s533 + $0x8] sm:$0xff] %v4242
        %4468 = vst [vmem:[%s533 + $0x10] sm:$0xff] %v4243
        %4469 = vst [vmem:[%s533 + $0x18] sm:$0xff] %v4244
        %4470 = vst [vmem:[%s533 + $0x20] sm:$0xff] %v4245
        %4471 = vst [vmem:[%s533 + $0x28] sm:$0xff] %v4246
        %4472 = vst [vmem:[%s533 + $0x30] sm:$0xff] %v4247
        %4473 = vst [vmem:[%s533 + $0x38] sm:$0xff] %v4248
        %4474 = vst [vmem:[%s533 + $0x40] sm:$0xff] %v4249
        %4475 = vst [vmem:[%s533 + $0x48] sm:$0xff] %v4250
        %4476 = vst [vmem:[%s533 + $0x50] sm:$0xff] %v4251
        %4477 = vst [vmem:[%s533 + $0x58] sm:$0xff] %v4252
        %4478 = vst [vmem:[%s533 + $0x60] sm:$0xff] %v4253
        %4479 = vst [vmem:[%s533 + $0x68] sm:$0xff] %v4254
        %4480 = vst [vmem:[%s533 + $0x70] sm:$0xff] %v4255
        %4481 = vst [vmem:[%s533 + $0x78] sm:$0xff] %v4256
        %4482 = vst [vmem:[%s533 + $0x80] sm:$0xff] %v4257
        %4483 = vst [vmem:[%s533 + $0x88] sm:$0xff] %v4258
        %4484 = vst [vmem:[%s533 + $0x90] sm:$0xff] %v4259
        %4485 = vst [vmem:[%s533 + $0x98] sm:$0xff] %v4260
        %4486 = vst [vmem:[%s533 + $0xa0] sm:$0xff] %v4261
        %4487 = vst [vmem:[%s533 + $0xa8] sm:$0xff] %v4262
        %4488 = vst [vmem:[%s533 + $0xb0] sm:$0xff] %v4263
        %4489 = vst [vmem:[%s533 + $0xb8] sm:$0xff] %v4264
        %4490 = vst [vmem:[%s533 + $0xc0] sm:$0xff] %v4265
        %4491 = vst [vmem:[%s533 + $0xc8] sm:$0xff] %v4266
        %4492 = vst [vmem:[%s533 + $0xd0] sm:$0xff] %v4267
        %4493 = vst [vmem:[%s533 + $0xd8] sm:$0xff] %v4268
        %4494 = vst [vmem:[%s533 + $0xe0] sm:$0xff] %v4269
        %4495 = vst [vmem:[%s533 + $0xe8] sm:$0xff] %v4270
        %4496 = vst [vmem:[%s533 + $0xf0] sm:$0xff] %v4271
        %4497 = vst [vmem:[%s533 + $0xf8] sm:$0xff] %v4272
        %4498 = vst [vmem:[%s537] sm:$0xff] %v4276
        %4499 = vst [vmem:[%s542] sm:$0xff] %v2028
        %4500 = vst [vmem:[%s542 + $0x8] sm:$0xff] %v2029
        %4501 = vst [vmem:[%s542 + $0x10] sm:$0xff] %v2030
        %4502 = vst [vmem:[%s542 + $0x18] sm:$0xff] %v2031
        %4503 = vst [vmem:[%s542 + $0x20] sm:$0xff] %v2032
        %4504 = vst [vmem:[%s542 + $0x28] sm:$0xff] %v2033
        %4505 = vst [vmem:[%s542 + $0x30] sm:$0xff] %v2034
        %4506 = vst [vmem:[%s542 + $0x38] sm:$0xff] %v2035
        %4507 = vst [vmem:[%s542 + $0x40] sm:$0xff] %v2036
        %4508 = vst [vmem:[%s542 + $0x48] sm:$0xff] %v2037
        %4509 = vst [vmem:[%s542 + $0x50] sm:$0xff] %v2038
        %4510 = vst [vmem:[%s542 + $0x58] sm:$0xff] %v2039
        %4511 = vst [vmem:[%s542 + $0x60] sm:$0xff] %v2040
        %4512 = vst [vmem:[%s542 + $0x68] sm:$0xff] %v2041
        %4513 = vst [vmem:[%s542 + $0x70] sm:$0xff] %v2042
        %4514 = vst [vmem:[%s542 + $0x78] sm:$0xff] %v2043
        %4515 = vst [vmem:[%s542 + $0x80] sm:$0xff] %v2044
        %4516 = vst [vmem:[%s542 + $0x88] sm:$0xff] %v2045
        %4517 = vst [vmem:[%s542 + $0x90] sm:$0xff] %v2046
        %4518 = vst [vmem:[%s542 + $0x98] sm:$0xff] %v2047
        %4519 = vst [vmem:[%s542 + $0xa0] sm:$0xff] %v2048
        %4520 = vst [vmem:[%s542 + $0xa8] sm:$0xff] %v2049
        %4521 = vst [vmem:[%s542 + $0xb0] sm:$0xff] %v2050
        %4522 = vst [vmem:[%s542 + $0xb8] sm:$0xff] %v2051
        %4523 = vst [vmem:[%s542 + $0xc0] sm:$0xff] %v2052
        %4524 = vst [vmem:[%s542 + $0xc8] sm:$0xff] %v2053
        %4525 = vst [vmem:[%s542 + $0xd0] sm:$0xff] %v2054
        %4526 = vst [vmem:[%s542 + $0xd8] sm:$0xff] %v2055
        %4527 = vst [vmem:[%s542 + $0xe0] sm:$0xff] %v2056
        %4528 = vst [vmem:[%s542 + $0xe8] sm:$0xff] %v2057
        %4529 = vst [vmem:[%s542 + $0xf0] sm:$0xff] %v2058
        %4530 = vst [vmem:[%s542 + $0xf8] sm:$0xff] %v2059
        %4531 = vst [vmem:[%s546] sm:$0xff] %v2063
        %4532 = vst [vmem:[%s550] sm:$0xff] %v4461
      $region56: #{_meta_forward_impl.1} parent=51 // pred_fallthru
        _
      %p4533 = scmp.gt.s32.totalorder %s29, 0
      // Predicated region
      $region57: #{_meta_forward_impl.1} parent=51 // pred_check
        %p4534 = pneg %p4533
      $region58: #{_meta_forward_impl.1} parent=51 // pred_check_branch
        %4536 = sbr.rel (%p4534) target = $region60
      $region59: #{_meta_forward_impl.1} parent=51 // pred_region
        %v4537 = vld [vmem:[%s533] sm:$0xff]
        %v4538 = vld [vmem:[%s533 + $0x8] sm:$0xff]
        %v4539 = vld [vmem:[%s533 + $0x10] sm:$0xff]
        %v4540 = vld [vmem:[%s533 + $0x18] sm:$0xff]
        %v4541 = vld [vmem:[%s533 + $0x20] sm:$0xff]
        %v4542 = vld [vmem:[%s533 + $0x28] sm:$0xff]
        %v4543 = vld [vmem:[%s533 + $0x30] sm:$0xff]
        %v4544 = vld [vmem:[%s533 + $0x38] sm:$0xff]
        %v4545 = vld [vmem:[%s533 + $0x40] sm:$0xff]
        %v4546 = vld [vmem:[%s533 + $0x48] sm:$0xff]
        %v4547 = vld [vmem:[%s533 + $0x50] sm:$0xff]
        %v4548 = vld [vmem:[%s533 + $0x58] sm:$0xff]
        %v4549 = vld [vmem:[%s533 + $0x60] sm:$0xff]
        %v4550 = vld [vmem:[%s533 + $0x68] sm:$0xff]
        %v4551 = vld [vmem:[%s533 + $0x70] sm:$0xff]
        %v4552 = vld [vmem:[%s533 + $0x78] sm:$0xff]
        %v4553 = vld [vmem:[%s533 + $0x80] sm:$0xff]
        %v4554 = vld [vmem:[%s533 + $0x88] sm:$0xff]
        %v4555 = vld [vmem:[%s533 + $0x90] sm:$0xff]
        %v4556 = vld [vmem:[%s533 + $0x98] sm:$0xff]
        %v4557 = vld [vmem:[%s533 + $0xa0] sm:$0xff]
        %v4558 = vld [vmem:[%s533 + $0xa8] sm:$0xff]
        %v4559 = vld [vmem:[%s533 + $0xb0] sm:$0xff]
        %v4560 = vld [vmem:[%s533 + $0xb8] sm:$0xff]
        %v4561 = vld [vmem:[%s533 + $0xc0] sm:$0xff]
        %v4562 = vld [vmem:[%s533 + $0xc8] sm:$0xff]
        %v4563 = vld [vmem:[%s533 + $0xd0] sm:$0xff]
        %v4564 = vld [vmem:[%s533 + $0xd8] sm:$0xff]
        %v4565 = vld [vmem:[%s533 + $0xe0] sm:$0xff]
        %v4566 = vld [vmem:[%s533 + $0xe8] sm:$0xff]
        %v4567 = vld [vmem:[%s533 + $0xf0] sm:$0xff]
        %v4568 = vld [vmem:[%s533 + $0xf8] sm:$0xff]
        %v4569 = vadd.f32 %v4537, %v4241
        %v4570 = vadd.f32 %v4538, %v4242
        %v4571 = vadd.f32 %v4539, %v4243
        %v4572 = vadd.f32 %v4540, %v4244
        %v4573 = vadd.f32 %v4541, %v4245
        %v4574 = vadd.f32 %v4542, %v4246
        %v4575 = vadd.f32 %v4543, %v4247
        %v4576 = vadd.f32 %v4544, %v4248
        %v4577 = vadd.f32 %v4545, %v4249
        %v4578 = vadd.f32 %v4546, %v4250
        %v4579 = vadd.f32 %v4547, %v4251
        %v4580 = vadd.f32 %v4548, %v4252
        %v4581 = vadd.f32 %v4549, %v4253
        %v4582 = vadd.f32 %v4550, %v4254
        %v4583 = vadd.f32 %v4551, %v4255
        %v4584 = vadd.f32 %v4552, %v4256
        %v4585 = vadd.f32 %v4553, %v4257
        %v4586 = vadd.f32 %v4554, %v4258
        %v4587 = vadd.f32 %v4555, %v4259
        %v4588 = vadd.f32 %v4556, %v4260
        %v4589 = vadd.f32 %v4557, %v4261
        %v4590 = vadd.f32 %v4558, %v4262
        %v4591 = vadd.f32 %v4559, %v4263
        %v4592 = vadd.f32 %v4560, %v4264
        %v4593 = vadd.f32 %v4561, %v4265
        %v4594 = vadd.f32 %v4562, %v4266
        %v4595 = vadd.f32 %v4563, %v4267
        %v4596 = vadd.f32 %v4564, %v4268
        %v4597 = vadd.f32 %v4565, %v4269
        %v4598 = vadd.f32 %v4566, %v4270
        %v4599 = vadd.f32 %v4567, %v4271
        %v4600 = vadd.f32 %v4568, %v4272
        %4601 = vst [vmem:[%s533] sm:$0xff] %v4569
        %4602 = vst [vmem:[%s533 + $0x8] sm:$0xff] %v4570
        %4603 = vst [vmem:[%s533 + $0x10] sm:$0xff] %v4571
        %4604 = vst [vmem:[%s533 + $0x18] sm:$0xff] %v4572
        %4605 = vst [vmem:[%s533 + $0x20] sm:$0xff] %v4573
        %4606 = vst [vmem:[%s533 + $0x28] sm:$0xff] %v4574
        %4607 = vst [vmem:[%s533 + $0x30] sm:$0xff] %v4575
        %4608 = vst [vmem:[%s533 + $0x38] sm:$0xff] %v4576
        %4609 = vst [vmem:[%s533 + $0x40] sm:$0xff] %v4577
        %4610 = vst [vmem:[%s533 + $0x48] sm:$0xff] %v4578
        %4611 = vst [vmem:[%s533 + $0x50] sm:$0xff] %v4579
        %4612 = vst [vmem:[%s533 + $0x58] sm:$0xff] %v4580
        %4613 = vst [vmem:[%s533 + $0x60] sm:$0xff] %v4581
        %4614 = vst [vmem:[%s533 + $0x68] sm:$0xff] %v4582
        %4615 = vst [vmem:[%s533 + $0x70] sm:$0xff] %v4583
        %4616 = vst [vmem:[%s533 + $0x78] sm:$0xff] %v4584
        %4617 = vst [vmem:[%s533 + $0x80] sm:$0xff] %v4585
        %4618 = vst [vmem:[%s533 + $0x88] sm:$0xff] %v4586
        %4619 = vst [vmem:[%s533 + $0x90] sm:$0xff] %v4587
        %4620 = vst [vmem:[%s533 + $0x98] sm:$0xff] %v4588
        %4621 = vst [vmem:[%s533 + $0xa0] sm:$0xff] %v4589
        %4622 = vst [vmem:[%s533 + $0xa8] sm:$0xff] %v4590
        %4623 = vst [vmem:[%s533 + $0xb0] sm:$0xff] %v4591
        %4624 = vst [vmem:[%s533 + $0xb8] sm:$0xff] %v4592
        %4625 = vst [vmem:[%s533 + $0xc0] sm:$0xff] %v4593
        %4626 = vst [vmem:[%s533 + $0xc8] sm:$0xff] %v4594
        %4627 = vst [vmem:[%s533 + $0xd0] sm:$0xff] %v4595
        %4628 = vst [vmem:[%s533 + $0xd8] sm:$0xff] %v4596
        %4629 = vst [vmem:[%s533 + $0xe0] sm:$0xff] %v4597
        %4630 = vst [vmem:[%s533 + $0xe8] sm:$0xff] %v4598
        %4631 = vst [vmem:[%s533 + $0xf0] sm:$0xff] %v4599
        %4632 = vst [vmem:[%s533 + $0xf8] sm:$0xff] %v4600
        %v4633 = vld [vmem:[%s537] sm:$0xff]
        %v4634 = vadd.f32 %v4633, %v4276
        %4635 = vst [vmem:[%s537] sm:$0xff] %v4634
        %v4636 = vld [vmem:[%s542] sm:$0xff]
        %v4637 = vld [vmem:[%s542 + $0x8] sm:$0xff]
        %v4638 = vld [vmem:[%s542 + $0x10] sm:$0xff]
        %v4639 = vld [vmem:[%s542 + $0x18] sm:$0xff]
        %v4640 = vld [vmem:[%s542 + $0x20] sm:$0xff]
        %v4641 = vld [vmem:[%s542 + $0x28] sm:$0xff]
        %v4642 = vld [vmem:[%s542 + $0x30] sm:$0xff]
        %v4643 = vld [vmem:[%s542 + $0x38] sm:$0xff]
        %v4644 = vld [vmem:[%s542 + $0x40] sm:$0xff]
        %v4645 = vld [vmem:[%s542 + $0x48] sm:$0xff]
        %v4646 = vld [vmem:[%s542 + $0x50] sm:$0xff]
        %v4647 = vld [vmem:[%s542 + $0x58] sm:$0xff]
        %v4648 = vld [vmem:[%s542 + $0x60] sm:$0xff]
        %v4649 = vld [vmem:[%s542 + $0x68] sm:$0xff]
        %v4650 = vld [vmem:[%s542 + $0x70] sm:$0xff]
        %v4651 = vld [vmem:[%s542 + $0x78] sm:$0xff]
        %v4652 = vld [vmem:[%s542 + $0x80] sm:$0xff]
        %v4653 = vld [vmem:[%s542 + $0x88] sm:$0xff]
        %v4654 = vld [vmem:[%s542 + $0x90] sm:$0xff]
        %v4655 = vld [vmem:[%s542 + $0x98] sm:$0xff]
        %v4656 = vld [vmem:[%s542 + $0xa0] sm:$0xff]
        %v4657 = vld [vmem:[%s542 + $0xa8] sm:$0xff]
        %v4658 = vld [vmem:[%s542 + $0xb0] sm:$0xff]
        %v4659 = vld [vmem:[%s542 + $0xb8] sm:$0xff]
        %v4660 = vld [vmem:[%s542 + $0xc0] sm:$0xff]
        %v4661 = vld [vmem:[%s542 + $0xc8] sm:$0xff]
        %v4662 = vld [vmem:[%s542 + $0xd0] sm:$0xff]
        %v4663 = vld [vmem:[%s542 + $0xd8] sm:$0xff]
        %v4664 = vld [vmem:[%s542 + $0xe0] sm:$0xff]
        %v4665 = vld [vmem:[%s542 + $0xe8] sm:$0xff]
        %v4666 = vld [vmem:[%s542 + $0xf0] sm:$0xff]
        %v4667 = vld [vmem:[%s542 + $0xf8] sm:$0xff]
        %v4668 = vadd.f32 %v4636, %v2028
        %v4669 = vadd.f32 %v4637, %v2029
        %v4670 = vadd.f32 %v4638, %v2030
        %v4671 = vadd.f32 %v4639, %v2031
        %v4672 = vadd.f32 %v4640, %v2032
        %v4673 = vadd.f32 %v4641, %v2033
        %v4674 = vadd.f32 %v4642, %v2034
        %v4675 = vadd.f32 %v4643, %v2035
        %v4676 = vadd.f32 %v4644, %v2036
        %v4677 = vadd.f32 %v4645, %v2037
        %v4678 = vadd.f32 %v4646, %v2038
        %v4679 = vadd.f32 %v4647, %v2039
        %v4680 = vadd.f32 %v4648, %v2040
        %v4681 = vadd.f32 %v4649, %v2041
        %v4682 = vadd.f32 %v4650, %v2042
        %v4683 = vadd.f32 %v4651, %v2043
        %v4684 = vadd.f32 %v4652, %v2044
        %v4685 = vadd.f32 %v4653, %v2045
        %v4686 = vadd.f32 %v4654, %v2046
        %v4687 = vadd.f32 %v4655, %v2047
        %v4688 = vadd.f32 %v4656, %v2048
        %v4689 = vadd.f32 %v4657, %v2049
        %v4690 = vadd.f32 %v4658, %v2050
        %v4691 = vadd.f32 %v4659, %v2051
        %v4692 = vadd.f32 %v4660, %v2052
        %v4693 = vadd.f32 %v4661, %v2053
        %v4694 = vadd.f32 %v4662, %v2054
        %v4695 = vadd.f32 %v4663, %v2055
        %v4696 = vadd.f32 %v4664, %v2056
        %v4697 = vadd.f32 %v4665, %v2057
        %v4698 = vadd.f32 %v4666, %v2058
        %v4699 = vadd.f32 %v4667, %v2059
        %4700 = vst [vmem:[%s542] sm:$0xff] %v4668
        %4701 = vst [vmem:[%s542 + $0x8] sm:$0xff] %v4669
        %4702 = vst [vmem:[%s542 + $0x10] sm:$0xff] %v4670
        %4703 = vst [vmem:[%s542 + $0x18] sm:$0xff] %v4671
        %4704 = vst [vmem:[%s542 + $0x20] sm:$0xff] %v4672
        %4705 = vst [vmem:[%s542 + $0x28] sm:$0xff] %v4673
        %4706 = vst [vmem:[%s542 + $0x30] sm:$0xff] %v4674
        %4707 = vst [vmem:[%s542 + $0x38] sm:$0xff] %v4675
        %4708 = vst [vmem:[%s542 + $0x40] sm:$0xff] %v4676
        %4709 = vst [vmem:[%s542 + $0x48] sm:$0xff] %v4677
        %4710 = vst [vmem:[%s542 + $0x50] sm:$0xff] %v4678
        %4711 = vst [vmem:[%s542 + $0x58] sm:$0xff] %v4679
        %4712 = vst [vmem:[%s542 + $0x60] sm:$0xff] %v4680
        %4713 = vst [vmem:[%s542 + $0x68] sm:$0xff] %v4681
        %4714 = vst [vmem:[%s542 + $0x70] sm:$0xff] %v4682
        %4715 = vst [vmem:[%s542 + $0x78] sm:$0xff] %v4683
        %4716 = vst [vmem:[%s542 + $0x80] sm:$0xff] %v4684
        %4717 = vst [vmem:[%s542 + $0x88] sm:$0xff] %v4685
        %4718 = vst [vmem:[%s542 + $0x90] sm:$0xff] %v4686
        %4719 = vst [vmem:[%s542 + $0x98] sm:$0xff] %v4687
        %4720 = vst [vmem:[%s542 + $0xa0] sm:$0xff] %v4688
        %4721 = vst [vmem:[%s542 + $0xa8] sm:$0xff] %v4689
        %4722 = vst [vmem:[%s542 + $0xb0] sm:$0xff] %v4690
        %4723 = vst [vmem:[%s542 + $0xb8] sm:$0xff] %v4691
        %4724 = vst [vmem:[%s542 + $0xc0] sm:$0xff] %v4692
        %4725 = vst [vmem:[%s542 + $0xc8] sm:$0xff] %v4693
        %4726 = vst [vmem:[%s542 + $0xd0] sm:$0xff] %v4694
        %4727 = vst [vmem:[%s542 + $0xd8] sm:$0xff] %v4695
        %4728 = vst [vmem:[%s542 + $0xe0] sm:$0xff] %v4696
        %4729 = vst [vmem:[%s542 + $0xe8] sm:$0xff] %v4697
        %4730 = vst [vmem:[%s542 + $0xf0] sm:$0xff] %v4698
        %4731 = vst [vmem:[%s542 + $0xf8] sm:$0xff] %v4699
        %v4732 = vld [vmem:[%s546] sm:$0xff]
        %v4733 = vadd.f32 %v4732, %v2063
        %4734 = vst [vmem:[%s546] sm:$0xff] %v4733
        %v4735 = vld [vmem:[%s550] sm:$0xff]
        %v4736 = vadd.f32 %v4735, %v4461
        %4737 = vst [vmem:[%s550] sm:$0xff] %v4736
      $region60: #{_meta_forward_impl.1} parent=51 // pred_fallthru
        _
      %p4738 = scmp.lt.s32.totalorder %s28, 1
      %s4739 = scalar_select %p4738, %s28, 1
      %s4740 = smul.addr %s4739, 32
      %s4741 = smul.addr %s4740, 8
      %s4742 = scalar_lea.vmem %s8, %s4741
      %p4743 = scmp.lt.s32.totalorder %s28, 1
      %s4744 = scalar_select %p4743, %s28, 1
      %s4745 = smul.addr %s4744, 8
      %s4746 = scalar_lea.vmem %s9, %s4745
      %p4747 = scmp.lt.s32.totalorder %s28, 1
      %s4748 = scalar_select %p4747, %s28, 1
      %s4749 = smul.addr %s4748, 32
      %s4750 = smul.addr %s4749, 8
      %s4751 = scalar_lea.vmem %s10, %s4750
      %p4752 = scmp.lt.s32.totalorder %s28, 1
      %s4753 = scalar_select %p4752, %s28, 1
      %s4754 = smul.addr %s4753, 8
      %s4755 = scalar_lea.vmem %s11, %s4754
      %p4756 = scmp.lt.s32.totalorder %s28, 1
      %s4757 = scalar_select %p4756, %s28, 1
      %s4758 = smul.addr %s4757, 8
      %s4759 = scalar_lea.vmem %s12, %s4758
      // Predicated region
      $region61: #{_meta_forward_impl.1} parent=51 // pred_check
        %p4760 = pneg %p250
      $region62: #{_meta_forward_impl.1} parent=51 // pred_check_branch
        %4762 = sbr.rel (%p4760) target = $region64
      $region63: #{_meta_forward_impl.1} parent=51 // pred_region
        _
      $region64: #{_meta_forward_impl.1} parent=51 // pred_fallthru
        _
      // Predicated region
      $region65: #{_meta_forward_impl.1} parent=51 // pred_check
        %p4763 = pneg %p276
      $region66: #{_meta_forward_impl.1} parent=51 // pred_check_branch
        %4765 = sbr.rel (%p4763) target = $region68
      $region67: #{_meta_forward_impl.1} parent=51 // pred_region
        _
      $region68: #{_meta_forward_impl.1} parent=51 // pred_fallthru
        _
      // Predicated region
      $region69: #{_meta_forward_impl.1} parent=51 // pred_check
        %p4766 = pneg %p302
      $region70: #{_meta_forward_impl.1} parent=51 // pred_check_branch
        %4768 = sbr.rel (%p4766) target = $region72
      $region71: #{_meta_forward_impl.1} parent=51 // pred_region
        _
      $region72: #{_meta_forward_impl.1} parent=51 // pred_fallthru
        _
      // Predicated region
      $region73: #{_meta_forward_impl.1} parent=51 // pred_check
        %p4769 = pneg %p328
      $region74: #{_meta_forward_impl.1} parent=51 // pred_check_branch
        %4771 = sbr.rel (%p4769) target = $region76
      $region75: #{_meta_forward_impl.1} parent=51 // pred_region
        _
      $region76: #{_meta_forward_impl.1} parent=51 // pred_fallthru
        _
      // Predicated region
      $region77: #{_meta_forward_impl.1} parent=51 // pred_check
        %p4772 = pneg %p354
      $region78: #{_meta_forward_impl.1} parent=51 // pred_check_branch
        %4774 = sbr.rel (%p4772) target = $region80
      $region79: #{_meta_forward_impl.1} parent=51 // pred_region
        _
      $region80: #{_meta_forward_impl.1} parent=51 // pred_fallthru
        _
    $region52: #{_meta_forward_impl.1} parent=5 // pred_fallthru
      _
    %p4775 = scmp.le.s32.totalorder 2, %s19
    // Predicated region
    $region81: #{_meta_forward_impl.1} parent=5 // pred_check
      %p4776 = pneg %p4775
    $region82: #{_meta_forward_impl.1} parent=5 // pred_check_branch
      %4778 = sbr.rel (%p4776) target = $region84
    $region83: #{_meta_forward_impl.1} parent=5 // pred_region
      %s4779 = ssub.s32 %s19, 2
      // Predicated region
      $region85: #{_meta_forward_impl.1} parent=83 // pred_check
        %p4780 = pneg %p256
      $region86: #{_meta_forward_impl.1} parent=83 // pred_check_branch
        %4782 = sbr.rel (%p4780) target = $region88
      $region87: #{_meta_forward_impl.1} parent=83 // pred_region
        %p4783 = scmp.lt.s32.totalorder %s30, 1
        %s4784 = scalar_select %p4783, %s30, 1
        %s4785 = smul.addr %s4784, 32
        %s4786 = smul.addr %s4785, 8
        %s4787 = scalar_lea.vmem %s8, %s4786
      $region88: #{_meta_forward_impl.1} parent=83 // pred_fallthru
        _
      // Predicated region
      $region89: #{_meta_forward_impl.1} parent=83 // pred_check
        %p4788 = pneg %p282
      $region90: #{_meta_forward_impl.1} parent=83 // pred_check_branch
        %4790 = sbr.rel (%p4788) target = $region92
      $region91: #{_meta_forward_impl.1} parent=83 // pred_region
        %p4791 = scmp.lt.s32.totalorder %s30, 1
        %s4792 = scalar_select %p4791, %s30, 1
        %s4793 = smul.addr %s4792, 8
        %s4794 = scalar_lea.vmem %s9, %s4793
      $region92: #{_meta_forward_impl.1} parent=83 // pred_fallthru
        _
      // Predicated region
      $region93: #{_meta_forward_impl.1} parent=83 // pred_check
        %p4795 = pneg %p308
      $region94: #{_meta_forward_impl.1} parent=83 // pred_check_branch
        %4797 = sbr.rel (%p4795) target = $region96
      $region95: #{_meta_forward_impl.1} parent=83 // pred_region
        %p4798 = scmp.lt.s32.totalorder %s30, 1
        %s4799 = scalar_select %p4798, %s30, 1
        %s4800 = smul.addr %s4799, 32
        %s4801 = smul.addr %s4800, 8
        %s4802 = scalar_lea.vmem %s10, %s4801
      $region96: #{_meta_forward_impl.1} parent=83 // pred_fallthru
        _
      // Predicated region
      $region97: #{_meta_forward_impl.1} parent=83 // pred_check
        %p4803 = pneg %p334
      $region98: #{_meta_forward_impl.1} parent=83 // pred_check_branch
        %4805 = sbr.rel (%p4803) target = $region100
      $region99: #{_meta_forward_impl.1} parent=83 // pred_region
        %p4806 = scmp.lt.s32.totalorder %s30, 1
        %s4807 = scalar_select %p4806, %s30, 1
        %s4808 = smul.addr %s4807, 8
        %s4809 = scalar_lea.vmem %s11, %s4808
      $region100: #{_meta_forward_impl.1} parent=83 // pred_fallthru
        _
      // Predicated region
      $region101: #{_meta_forward_impl.1} parent=83 // pred_check
        %p4810 = pneg %p360
      $region102: #{_meta_forward_impl.1} parent=83 // pred_check_branch
        %4812 = sbr.rel (%p4810) target = $region104
      $region103: #{_meta_forward_impl.1} parent=83 // pred_region
        %p4813 = scmp.lt.s32.totalorder %s30, 1
        %s4814 = scalar_select %p4813, %s30, 1
        %s4815 = smul.addr %s4814, 8
        %s4816 = scalar_lea.vmem %s12, %s4815
      $region104: #{_meta_forward_impl.1} parent=83 // pred_fallthru
        _
    $region84: #{_meta_forward_impl.1} parent=5 // pred_fallthru
      _
  $region6: #{_meta_forward_impl.1} parent=0 // loop_footer
    %s23 = sadd.s32 1, %s19
  $region7: #{_meta_forward_impl.1} parent=0 // loop_footer_branch
    %18 = sbr.rel target = $region3
  $region8: #{_meta_forward_impl.1} parent=0 // loop_exit
    _

</llo_original>
